<compile_context>
chip_gen: v7x
topology: tpu7x:2x2x1
jax: 0.10.0
libtpu: 0.0.40
codegen_flags: <defaults>
</compile_context>

<pallas_src>
import jax
import jax.numpy as jnp
from jax import lax
from jax.experimental import pallas as pl
from jax.experimental.pallas import tpu as pltpu

LANES = 128


def _round_up(x, m):
    return (x + m - 1) // m * m


def _zero_halo_border(ref):
    """Zero only the 1-pixel border of a (H+2, W+2, C) VMEM scratch.

    The interior is fully overwritten every grid step, so zeroing the border
    (O(H+W) elements) replaces the old full-slab zero (O(H*W) elements)."""
    hp, wp, c = ref.shape
    zrow = jnp.zeros((1, wp, c), ref.dtype)
    zcol = jnp.zeros((hp, 1, c), ref.dtype)
    ref[0:1, :, :] = zrow
    ref[hp - 1:hp, :, :] = zrow
    ref[:, 0:1, :] = zcol
    ref[:, wp - 1:wp, :] = zcol


def fused_dr_kernel(x_ref, w1_ref, b1_ref, w2_ref, b2_ref, o_ref,
                    xpad_ref, ypad_ref):
    # x_ref:    (1, H, W, Cin)     f32  input tile (one image)
    # w1_ref:   (9*Cin, Cp)        bf16 im2col-packed conv1 weights (BN1 folded)
    # b1_ref:   (1, Cp)            f32  folded BN1 bias
    # w2_ref:   (9, Cp, Cp)        bf16 per-tap conv2 weights (BN2 folded)
    # b2_ref:   (1, Cp)            f32  folded BN2 bias
    # o_ref:    (1, H, W, Cout)    f32  unpadded-channel output tile
    # xpad_ref: (H+2, W+2, Cin)    bf16 scratch, halo'd conv1 input
    # ypad_ref: (H+2, W+2, Cp)     bf16 scratch, halo'd conv1 output
    H, W = o_ref.shape[1], o_ref.shape[2]
    Cout = o_ref.shape[3]
    Cin = x_ref.shape[3]
    Cp = ypad_ref.shape[2]

    # Halo borders only; interiors are fully overwritten below.
    _zero_halo_border(xpad_ref)
    _zero_halo_border(ypad_ref)

    # f32 -> bf16 cast happens here (no separate XLA cast pass in the wrapper).
    xpad_ref[1:H + 1, 1:W + 1, :] = x_ref[0].astype(xpad_ref.dtype)

    def taps(src_ref, c):
        # dx (sublane-axis) shift once per dx; dy taps are sublane-aligned row
        # slices of one reshaped view (3 reshapes per conv instead of 9).
        # W is kept a multiple of 16 (bf16 sublane packing) so slices/reshapes
        # stay relayout-free.
        out = []
        for dx in range(3):
            flat = src_ref[:, dx:dx + W, :].reshape((H + 2) * W, c)
            for dy in range(3):
                out.append(flat[dy * W:dy * W + H * W])
        return out  # 9 taps of (H*W, c), tap index t = dx*3 + dy

    # ---- ConvBR #1: im2col (K = 9*Cin) -> ONE MXU matmul -> bias -> ReLU ----
    lhs1 = jnp.concatenate(taps(xpad_ref, Cin), axis=-1)        # (H*W, 9*Cin)
    y1 = jnp.dot(lhs1, w1_ref[...], preferred_element_type=jnp.float32)
    y1 = jnp.maximum(y1 + b1_ref[...], 0.0)

    # Intermediate stays in VMEM (bf16), written into the halo'd scratch.
    ypad_ref[1:H + 1, 1:W + 1, :] = y1.reshape(H, W, Cp).astype(ypad_ref.dtype)

    # ---- ConvBR #2: 9 taps, K = Cp, accumulator seeded by the first dot ----
    # TODO(synk): on v6e/v7x, pair taps (concat two activations -> K=2*Cp and
    #             stack the matching weight blocks) to fill the 256-wide MXU;
    #             K=Cp=128 is kept here since it is already optimal on v5e.
    acc = None
    for t, lhs in enumerate(taps(ypad_ref, Cp)):
        d = jnp.dot(lhs, w2_ref[t], preferred_element_type=jnp.float32)
        acc = d if acc is None else acc + d
    y2 = jnp.maximum(acc + b2_ref[...], 0.0)

    # Unpadded-channel store: 16x fewer HBM writeback bytes than a padded
    # 128-lane f32 store at Cout=8, and no wrapper-side slice pass.
    o_ref[...] = y2[:, :Cout].reshape(1, H, W, Cout).astype(o_ref.dtype)


def dimensional_reduction(x, prep):
    """x: (N, H, W, Cin) float32 NHWC. prep: output of prepare_params."""
    N, H, W, Cin = x.shape
    Cp = prep["cp"]
    Cout = prep["cout"]

    # NOTE: at these demo shapes one image is one block and grid=(N,) (batch
    # axis marked "parallel" -> megacore-sharded on v7x).
    # TODO(synk): for production H,W tile H into row strips (~32-48 rows on
    #             v7x, 64-96 on v6e) with a 2-row halo, mark the strip axis
    #             "parallel", and raise vmem_limit_bytes accordingly.
    return pl.pallas_call(
        fused_dr_kernel,
        out_shape=jax.ShapeDtypeStruct((N, H, W, Cout), jnp.float32),
        grid_spec=pltpu.PrefetchScalarGridSpec(
            num_scalar_prefetch=0,
            grid=(N,),
            in_specs=[
                pl.BlockSpec((1, H, W, Cin), lambda n: (n, 0, 0, 0)),
                pl.BlockSpec((9 * Cin, Cp), lambda n: (0, 0)),
                pl.BlockSpec((1, Cp), lambda n: (0, 0)),
                pl.BlockSpec((9, Cp, Cp), lambda n: (0, 0, 0)),
                pl.BlockSpec((1, Cp), lambda n: (0, 0)),
            ],
            out_specs=pl.BlockSpec((1, H, W, Cout), lambda n: (n, 0, 0, 0)),
            scratch_shapes=[
                pltpu.VMEM((H + 2, W + 2, Cin), jnp.bfloat16),
                pltpu.VMEM((H + 2, W + 2, Cp), jnp.bfloat16),
            ],
        ),
        compiler_params=pltpu.CompilerParams(
            dimension_semantics=("parallel",),
            vmem_limit_bytes=32 * 1024 * 1024,
        ),
    )(x, prep["w1"], prep["b1"], prep["w2"], prep["b2"])


def prepare_params(w1_pt, g1, be1, m1, v1, w2_pt, g2, be2, m2, v2,
                   eps=1e-5, lanes=LANES):
    """Fold BN scale into conv weights, pad out-channels to the lane width,
    pack for the kernel (im2col rows for conv1, per-tap blocks for conv2),
    and cast weights to bf16.  w*_pt are in PyTorch (Cout, Cin, 3, 3) layout."""
    def fold(w_pt, gamma, beta, mean, var):
        scale = gamma / jnp.sqrt(var + eps)
        bias = beta - mean * scale
        w = jnp.transpose(w_pt, (2, 3, 1, 0))           # (kh=dy, kw=dx, Cin, Cout)
        return w * scale[None, None, None, :], bias

    w1, b1 = fold(w1_pt, g1, be1, m1, v1)
    w2, b2 = fold(w2_pt, g2, be2, m2, v2)
    cin, cout = w1.shape[2], w1.shape[3]
    cp = _round_up(cout, lanes)

    # Pad out-channels (and conv2 in-channels) to the lane width with zeros.
    w1p = jnp.zeros((3, 3, cin, cp), jnp.float32).at[..., :cout].set(w1)
    w2p = jnp.zeros((3, 3, cp, cp), jnp.float32).at[:, :, :cout, :cout].set(w2)
    b1p = jnp.zeros((1, cp), jnp.float32).at[0, :cout].set(b1)
    b2p = jnp.zeros((1, cp), jnp.float32).at[0, :cout].set(b2)

    # Kernel packings.  Tap order matches the kernel: t = dx*3 + dy.
    w1_im2col = jnp.transpose(w1p, (1, 0, 2, 3)).reshape(9 * cin, cp)
    w2_taps = jnp.transpose(w2p, (1, 0, 2, 3)).reshape(9, cp, cp)

    return dict(
        w1=w1_im2col.astype(jnp.bfloat16), b1=b1p,
        w2=w2_taps.astype(jnp.bfloat16), b2=b2p,
        cin=cin, cout=cout, cp=cp,
        # HWIO copies (padded) for the pure-JAX reference only.
        w1_hwio=w1p.astype(jnp.bfloat16), w2_hwio=w2p.astype(jnp.bfloat16),
    )


def _reference(x, prep):
    """Pure-JAX reference with identical numerics choices (bf16 operands,
    f32 accumulation, folded-BN bias, bf16 intermediate)."""
    def block(h, w, b):
        out = lax.conv_general_dilated(
            h, w, window_strides=(1, 1), padding=((1, 1), (1, 1)),
            dimension_numbers=("NHWC", "HWIO", "NHWC"),
            preferred_element_type=jnp.float32,
        )
        return jnp.maximum(out + b.reshape(1, 1, 1, -1), 0.0)

    y1 = block(x.astype(jnp.bfloat16), prep["w1_hwio"], prep["b1"])
    y2 = block(y1.astype(jnp.bfloat16), prep["w2_hwio"], prep["b2"])
    return y2[..., :prep["cout"]]


if __name__ == "__main__":
    # Small shapes consistent with the module: N=2, in_channel=4, H=W=16, out_channel=8
    N, Cin, H, W = 2, 4, 16, 16
    Cout = 8

    key = jax.random.PRNGKey(0)
    k_x, k_w1, k_w2, k_g1, k_b1, k_g2, k_b2 = jax.random.split(key, 7)

    # PyTorch-style NCHW input, transposed to the kernel's NHWC layout.
    x_nchw = jax.random.normal(k_x, (N, Cin, H, W), dtype=jnp.float32)
    x = jnp.transpose(x_nchw, (0, 2, 3, 1))  # NHWC

    # Conv weights in PyTorch shape (Cout, Cin, 3, 3).
    w1_pt = jax.random.normal(k_w1, (Cout, Cin, 3, 3), dtype=jnp.float32) * 0.1
    w2_pt = jax.random.normal(k_w2, (Cout, Cout, 3, 3), dtype=jnp.float32) * 0.1

    # BatchNorm parameters (inference semantics: running stats folded).
    gamma1 = 1.0 + 0.1 * jax.random.normal(k_g1, (Cout,), dtype=jnp.float32)
    beta1 = 0.1 * jax.random.normal(k_b1, (Cout,), dtype=jnp.float32)
    gamma2 = 1.0 + 0.1 * jax.random.normal(k_g2, (Cout,), dtype=jnp.float32)
    beta2 = 0.1 * jax.random.normal(k_b2, (Cout,), dtype=jnp.float32)
    rmean = jnp.zeros((Cout,), jnp.float32)
    rvar = jnp.ones((Cout,), jnp.float32)

    prep = prepare_params(w1_pt, gamma1, beta1, rmean, rvar,
                          w2_pt, gamma2, beta2, rmean, rvar)

    out = jax.block_until_ready(dimensional_reduction(x, prep))
    ref = jax.block_until_ready(_reference(x, prep))

    assert out.shape == (N, H, W, Cout)
    assert jnp.allclose(out, ref, atol=2e-2, rtol=2e-2), "mismatch vs reference"

    print("KERNEL_OK")
</pallas_src>

<mosaic_0001>
module attributes {stable_mosaic.version = 11 : i64} {
  func.func @fused_dr_kernel(%arg0: i32, %arg1: memref<1x16x16x4xf32, #tpu.memory_space<vmem>>, %arg2: memref<36x128xbf16, #tpu.memory_space<vmem>>, %arg3: memref<1x128xf32, #tpu.memory_space<vmem>>, %arg4: memref<9x128x128xbf16, #tpu.memory_space<vmem>>, %arg5: memref<1x128xf32, #tpu.memory_space<vmem>>, %arg6: memref<1x16x16x8xf32, #tpu.memory_space<vmem>>, %arg7: memref<18x18x4xbf16, #tpu.memory_space<vmem>>, %arg8: memref<18x18x128xbf16, #tpu.memory_space<vmem>>) attributes {dimension_semantics = [#tpu.dimension_semantics<parallel>], iteration_bounds = array<i64: 2>, scalar_prefetch = 0 : i64, scratch_operands = 2 : i64, tpu.core_type = #tpu.core_type<tc>, window_params = [{transform_indices = @transform_0, window_bounds = array<i64: 1, 16, 16, 4>}, {pipeline_mode = #tpu.pipeline_mode<synchronous>, transform_indices = @transform_1, window_bounds = array<i64: 36, 128>}, {pipeline_mode = #tpu.pipeline_mode<synchronous>, transform_indices = @transform_2, window_bounds = array<i64: 1, 128>}, {pipeline_mode = #tpu.pipeline_mode<synchronous>, transform_indices = @transform_3, window_bounds = array<i64: 9, 128, 128>}, {pipeline_mode = #tpu.pipeline_mode<synchronous>, transform_indices = @transform_4, window_bounds = array<i64: 1, 128>}, {transform_indices = @transform_5, window_bounds = array<i64: 1, 16, 16, 8>}]} {
    %cst = arith.constant 0.000000e+00 : bf16
    %0 = vector.broadcast %cst : bf16 to vector<1x18x4xbf16>
    %cst_0 = arith.constant 0.000000e+00 : bf16
    %1 = vector.broadcast %cst_0 : bf16 to vector<18x1x4xbf16>
    %c0 = arith.constant 0 : index
    %c0_1 = arith.constant 0 : index
    %c0_2 = arith.constant 0 : index
    %2 = vector.load %arg7[%c0, %c0_1, %c0_2] : memref<18x18x4xbf16, #tpu.memory_space<vmem>>, vector<1x18x4xbf16>
    tpu.vector_store %arg7[%c0, %c0_1, %c0_2], %0 {strides = array<i32>} : memref<18x18x4xbf16, #tpu.memory_space<vmem>>, vector<1x18x4xbf16>,
    %c17 = arith.constant 17 : index
    %c0_3 = arith.constant 0 : index
    %c0_4 = arith.constant 0 : index
    %3 = vector.load %arg7[%c17, %c0_3, %c0_4] : memref<18x18x4xbf16, #tpu.memory_space<vmem>>, vector<1x18x4xbf16>
    tpu.vector_store %arg7[%c17, %c0_3, %c0_4], %0 {strides = array<i32>} : memref<18x18x4xbf16, #tpu.memory_space<vmem>>, vector<1x18x4xbf16>,
    %c0_5 = arith.constant 0 : index
    %c0_6 = arith.constant 0 : index
    %c0_7 = arith.constant 0 : index
    %4 = vector.load %arg7[%c0_5, %c0_6, %c0_7] : memref<18x18x4xbf16, #tpu.memory_space<vmem>>, vector<18x1x4xbf16>
    tpu.vector_store %arg7[%c0_5, %c0_6, %c0_7], %1 {strides = array<i32>} : memref<18x18x4xbf16, #tpu.memory_space<vmem>>, vector<18x1x4xbf16>,
    %c0_8 = arith.constant 0 : index
    %c17_9 = arith.constant 17 : index
    %c0_10 = arith.constant 0 : index
    %5 = vector.load %arg7[%c0_8, %c17_9, %c0_10] : memref<18x18x4xbf16, #tpu.memory_space<vmem>>, vector<18x1x4xbf16>
    tpu.vector_store %arg7[%c0_8, %c17_9, %c0_10], %1 {strides = array<i32>} : memref<18x18x4xbf16, #tpu.memory_space<vmem>>, vector<18x1x4xbf16>,
    %cst_11 = arith.constant 0.000000e+00 : bf16
    %6 = vector.broadcast %cst_11 : bf16 to vector<1x18x128xbf16>
    %cst_12 = arith.constant 0.000000e+00 : bf16
    %7 = vector.broadcast %cst_12 : bf16 to vector<18x1x128xbf16>
    %c0_13 = arith.constant 0 : index
    %c0_14 = arith.constant 0 : index
    %c0_15 = arith.constant 0 : index
    %8 = vector.load %arg8[%c0_13, %c0_14, %c0_15] : memref<18x18x128xbf16, #tpu.memory_space<vmem>>, vector<1x18x128xbf16>
    tpu.vector_store %arg8[%c0_13, %c0_14, %c0_15], %6 {strides = array<i32>} : memref<18x18x128xbf16, #tpu.memory_space<vmem>>, vector<1x18x128xbf16>,
    %c17_16 = arith.constant 17 : index
    %c0_17 = arith.constant 0 : index
    %c0_18 = arith.constant 0 : index
    %9 = vector.load %arg8[%c17_16, %c0_17, %c0_18] : memref<18x18x128xbf16, #tpu.memory_space<vmem>>, vector<1x18x128xbf16>
    tpu.vector_store %arg8[%c17_16, %c0_17, %c0_18], %6 {strides = array<i32>} : memref<18x18x128xbf16, #tpu.memory_space<vmem>>, vector<1x18x128xbf16>,
    %c0_19 = arith.constant 0 : index
    %c0_20 = arith.constant 0 : index
    %c0_21 = arith.constant 0 : index
    %10 = vector.load %arg8[%c0_19, %c0_20, %c0_21] : memref<18x18x128xbf16, #tpu.memory_space<vmem>>, vector<18x1x128xbf16>
    tpu.vector_store %arg8[%c0_19, %c0_20, %c0_21], %7 {strides = array<i32>} : memref<18x18x128xbf16, #tpu.memory_space<vmem>>, vector<18x1x128xbf16>,
    %c0_22 = arith.constant 0 : index
    %c17_23 = arith.constant 17 : index
    %c0_24 = arith.constant 0 : index
    %11 = vector.load %arg8[%c0_22, %c17_23, %c0_24] : memref<18x18x128xbf16, #tpu.memory_space<vmem>>, vector<18x1x128xbf16>
    tpu.vector_store %arg8[%c0_22, %c17_23, %c0_24], %7 {strides = array<i32>} : memref<18x18x128xbf16, #tpu.memory_space<vmem>>, vector<18x1x128xbf16>,
    %c0_25 = arith.constant 0 : index
    %c0_26 = arith.constant 0 : index
    %c0_27 = arith.constant 0 : index
    %c0_28 = arith.constant 0 : index
    %12 = vector.load %arg1[%c0_25, %c0_26, %c0_27, %c0_28] : memref<1x16x16x4xf32, #tpu.memory_space<vmem>>, vector<1x16x16x4xf32>
    %13 = vector.shape_cast %12 : vector<1x16x16x4xf32> to vector<16x16x4xf32>
    %14 = arith.truncf %13 : vector<16x16x4xf32> to vector<16x16x4xbf16>
    %c1 = arith.constant 1 : index
    %c1_29 = arith.constant 1 : index
    %c0_30 = arith.constant 0 : index
    %15 = vector.load %arg7[%c1, %c1_29, %c0_30] : memref<18x18x4xbf16, #tpu.memory_space<vmem>>, vector<16x16x4xbf16>
    tpu.vector_store %arg7[%c1, %c1_29, %c0_30], %14 {strides = array<i32>} : memref<18x18x4xbf16, #tpu.memory_space<vmem>>, vector<16x16x4xbf16>,
    %c0_31 = arith.constant 0 : index
    %c0_32 = arith.constant 0 : index
    %c0_33 = arith.constant 0 : index
    %16 = vector.load %arg7[%c0_31, %c0_32, %c0_33] : memref<18x18x4xbf16, #tpu.memory_space<vmem>>, vector<18x16x4xbf16>
    %17 = vector.shape_cast %16 : vector<18x16x4xbf16> to vector<288x4xbf16>
    %18 = vector.extract_strided_slice %17 {offsets = [0, 0], sizes = [256, 4], strides = [1, 1]} : vector<288x4xbf16> to vector<256x4xbf16>
    %19 = vector.extract_strided_slice %17 {offsets = [16, 0], sizes = [256, 4], strides = [1, 1]} : vector<288x4xbf16> to vector<256x4xbf16>
    %20 = vector.extract_strided_slice %17 {offsets = [32, 0], sizes = [256, 4], strides = [1, 1]} : vector<288x4xbf16> to vector<256x4xbf16>
    %c0_34 = arith.constant 0 : index
    %c1_35 = arith.constant 1 : index
    %c0_36 = arith.constant 0 : index
    %21 = vector.load %arg7[%c0_34, %c1_35, %c0_36] : memref<18x18x4xbf16, #tpu.memory_space<vmem>>, vector<18x16x4xbf16>
    %22 = vector.shape_cast %21 : vector<18x16x4xbf16> to vector<288x4xbf16>
    %23 = vector.extract_strided_slice %22 {offsets = [0, 0], sizes = [256, 4], strides = [1, 1]} : vector<288x4xbf16> to vector<256x4xbf16>
    %24 = vector.extract_strided_slice %22 {offsets = [16, 0], sizes = [256, 4], strides = [1, 1]} : vector<288x4xbf16> to vector<256x4xbf16>
    %25 = vector.extract_strided_slice %22 {offsets = [32, 0], sizes = [256, 4], strides = [1, 1]} : vector<288x4xbf16> to vector<256x4xbf16>
    %c0_37 = arith.constant 0 : index
    %c2 = arith.constant 2 : index
    %c0_38 = arith.constant 0 : index
    %26 = vector.load %arg7[%c0_37, %c2, %c0_38] : memref<18x18x4xbf16, #tpu.memory_space<vmem>>, vector<18x16x4xbf16>
    %27 = vector.shape_cast %26 : vector<18x16x4xbf16> to vector<288x4xbf16>
    %28 = vector.extract_strided_slice %27 {offsets = [0, 0], sizes = [256, 4], strides = [1, 1]} : vector<288x4xbf16> to vector<256x4xbf16>
    %29 = vector.extract_strided_slice %27 {offsets = [16, 0], sizes = [256, 4], strides = [1, 1]} : vector<288x4xbf16> to vector<256x4xbf16>
    %30 = vector.extract_strided_slice %27 {offsets = [32, 0], sizes = [256, 4], strides = [1, 1]} : vector<288x4xbf16> to vector<256x4xbf16>
    %31 = tpu.concatenate %18, %19, %20, %23, %24, %25, %28, %29, %30 in 1 : vector<256x4xbf16>, vector<256x4xbf16>, vector<256x4xbf16>, vector<256x4xbf16>, vector<256x4xbf16>, vector<256x4xbf16>, vector<256x4xbf16>, vector<256x4xbf16>, vector<256x4xbf16> -> vector<256x36xbf16>
    %c0_39 = arith.constant 0 : index
    %c0_40 = arith.constant 0 : index
    %32 = vector.load %arg2[%c0_39, %c0_40] : memref<36x128xbf16, #tpu.memory_space<vmem>>, vector<36x128xbf16>
    %cst_41 = arith.constant dense<0.000000e+00> : vector<256x128xf32>
    %33 = tpu.matmul %31, %32, %cst_41 {dimension_numbers = #tpu.dot_dimension_numbers<[1], [0], [0], [1], [0, 0, 1, 1], [], []>} : vector<256x36xbf16>, vector<36x128xbf16>, vector<256x128xf32> -> vector<256x128xf32>
    %c0_42 = arith.constant 0 : index
    %c0_43 = arith.constant 0 : index
    %34 = vector.load %arg3[%c0_42, %c0_43] : memref<1x128xf32, #tpu.memory_space<vmem>>, vector<1x128xf32>
    %35 = vector.broadcast %34 : vector<1x128xf32> to vector<256x128xf32>
    %36 = arith.addf %33, %35 : vector<256x128xf32>
    %cst_44 = arith.constant 0.000000e+00 : f32
    %37 = vector.broadcast %cst_44 : f32 to vector<256x128xf32>
    %38 = arith.maximumf %36, %37 : vector<256x128xf32>
    %39 = vector.shape_cast %38 : vector<256x128xf32> to vector<16x16x128xf32>
    %40 = arith.truncf %39 : vector<16x16x128xf32> to vector<16x16x128xbf16>
    %c1_45 = arith.constant 1 : index
    %c1_46 = arith.constant 1 : index
    %c0_47 = arith.constant 0 : index
    %41 = vector.load %arg8[%c1_45, %c1_46, %c0_47] : memref<18x18x128xbf16, #tpu.memory_space<vmem>>, vector<16x16x128xbf16>
    tpu.vector_store %arg8[%c1_45, %c1_46, %c0_47], %40 {strides = array<i32>} : memref<18x18x128xbf16, #tpu.memory_space<vmem>>, vector<16x16x128xbf16>,
    %c0_48 = arith.constant 0 : index
    %c0_49 = arith.constant 0 : index
    %c0_50 = arith.constant 0 : index
    %42 = vector.load %arg8[%c0_48, %c0_49, %c0_50] : memref<18x18x128xbf16, #tpu.memory_space<vmem>>, vector<18x16x128xbf16>
    %43 = vector.shape_cast %42 : vector<18x16x128xbf16> to vector<288x128xbf16>
    %44 = vector.extract_strided_slice %43 {offsets = [0, 0], sizes = [256, 128], strides = [1, 1]} : vector<288x128xbf16> to vector<256x128xbf16>
    %45 = vector.extract_strided_slice %43 {offsets = [16, 0], sizes = [256, 128], strides = [1, 1]} : vector<288x128xbf16> to vector<256x128xbf16>
    %46 = vector.extract_strided_slice %43 {offsets = [32, 0], sizes = [256, 128], strides = [1, 1]} : vector<288x128xbf16> to vector<256x128xbf16>
    %c0_51 = arith.constant 0 : index
    %c1_52 = arith.constant 1 : index
    %c0_53 = arith.constant 0 : index
    %47 = vector.load %arg8[%c0_51, %c1_52, %c0_53] : memref<18x18x128xbf16, #tpu.memory_space<vmem>>, vector<18x16x128xbf16>
    %48 = vector.shape_cast %47 : vector<18x16x128xbf16> to vector<288x128xbf16>
    %49 = vector.extract_strided_slice %48 {offsets = [0, 0], sizes = [256, 128], strides = [1, 1]} : vector<288x128xbf16> to vector<256x128xbf16>
    %50 = vector.extract_strided_slice %48 {offsets = [16, 0], sizes = [256, 128], strides = [1, 1]} : vector<288x128xbf16> to vector<256x128xbf16>
    %51 = vector.extract_strided_slice %48 {offsets = [32, 0], sizes = [256, 128], strides = [1, 1]} : vector<288x128xbf16> to vector<256x128xbf16>
    %c0_54 = arith.constant 0 : index
    %c2_55 = arith.constant 2 : index
    %c0_56 = arith.constant 0 : index
    %52 = vector.load %arg8[%c0_54, %c2_55, %c0_56] : memref<18x18x128xbf16, #tpu.memory_space<vmem>>, vector<18x16x128xbf16>
    %53 = vector.shape_cast %52 : vector<18x16x128xbf16> to vector<288x128xbf16>
    %54 = vector.extract_strided_slice %53 {offsets = [0, 0], sizes = [256, 128], strides = [1, 1]} : vector<288x128xbf16> to vector<256x128xbf16>
    %55 = vector.extract_strided_slice %53 {offsets = [16, 0], sizes = [256, 128], strides = [1, 1]} : vector<288x128xbf16> to vector<256x128xbf16>
    %56 = vector.extract_strided_slice %53 {offsets = [32, 0], sizes = [256, 128], strides = [1, 1]} : vector<288x128xbf16> to vector<256x128xbf16>
    %c0_57 = arith.constant 0 : index
    %c0_58 = arith.constant 0 : index
    %c0_59 = arith.constant 0 : index
    %57 = vector.load %arg4[%c0_57, %c0_58, %c0_59] : memref<9x128x128xbf16, #tpu.memory_space<vmem>>, vector<1x128x128xbf16>
    %58 = vector.shape_cast %57 : vector<1x128x128xbf16> to vector<128x128xbf16>
    %cst_60 = arith.constant dense<0.000000e+00> : vector<256x128xf32>
    %59 = tpu.matmul %44, %58, %cst_60 {dimension_numbers = #tpu.dot_dimension_numbers<[1], [0], [0], [1], [0, 0, 1, 1], [], []>} : vector<256x128xbf16>, vector<128x128xbf16>, vector<256x128xf32> -> vector<256x128xf32>
    %c1_61 = arith.constant 1 : index
    %c0_62 = arith.constant 0 : index
    %c0_63 = arith.constant 0 : index
    %60 = vector.load %arg4[%c1_61, %c0_62, %c0_63] : memref<9x128x128xbf16, #tpu.memory_space<vmem>>, vector<1x128x128xbf16>
    %61 = vector.shape_cast %60 : vector<1x128x128xbf16> to vector<128x128xbf16>
    %cst_64 = arith.constant dense<0.000000e+00> : vector<256x128xf32>
    %62 = tpu.matmul %45, %61, %cst_64 {dimension_numbers = #tpu.dot_dimension_numbers<[1], [0], [0], [1], [0, 0, 1, 1], [], []>} : vector<256x128xbf16>, vector<128x128xbf16>, vector<256x128xf32> -> vector<256x128xf32>
    %63 = arith.addf %59, %62 : vector<256x128xf32>
    %c2_65 = arith.constant 2 : index
    %c0_66 = arith.constant 0 : index
    %c0_67 = arith.constant 0 : index
    %64 = vector.load %arg4[%c2_65, %c0_66, %c0_67] : memref<9x128x128xbf16, #tpu.memory_space<vmem>>, vector<1x128x128xbf16>
    %65 = vector.shape_cast %64 : vector<1x128x128xbf16> to vector<128x128xbf16>
    %cst_68 = arith.constant dense<0.000000e+00> : vector<256x128xf32>
    %66 = tpu.matmul %46, %65, %cst_68 {dimension_numbers = #tpu.dot_dimension_numbers<[1], [0], [0], [1], [0, 0, 1, 1], [], []>} : vector<256x128xbf16>, vector<128x128xbf16>, vector<256x128xf32> -> vector<256x128xf32>
    %67 = arith.addf %63, %66 : vector<256x128xf32>
    %c3 = arith.constant 3 : index
    %c0_69 = arith.constant 0 : index
    %c0_70 = arith.constant 0 : index
    %68 = vector.load %arg4[%c3, %c0_69, %c0_70] : memref<9x128x128xbf16, #tpu.memory_space<vmem>>, vector<1x128x128xbf16>
    %69 = vector.shape_cast %68 : vector<1x128x128xbf16> to vector<128x128xbf16>
    %cst_71 = arith.constant dense<0.000000e+00> : vector<256x128xf32>
    %70 = tpu.matmul %49, %69, %cst_71 {dimension_numbers = #tpu.dot_dimension_numbers<[1], [0], [0], [1], [0, 0, 1, 1], [], []>} : vector<256x128xbf16>, vector<128x128xbf16>, vector<256x128xf32> -> vector<256x128xf32>
    %71 = arith.addf %67, %70 : vector<256x128xf32>
    %c4 = arith.constant 4 : index
    %c0_72 = arith.constant 0 : index
    %c0_73 = arith.constant 0 : index
    %72 = vector.load %arg4[%c4, %c0_72, %c0_73] : memref<9x128x128xbf16, #tpu.memory_space<vmem>>, vector<1x128x128xbf16>
    %73 = vector.shape_cast %72 : vector<1x128x128xbf16> to vector<128x128xbf16>
    %cst_74 = arith.constant dense<0.000000e+00> : vector<256x128xf32>
    %74 = tpu.matmul %50, %73, %cst_74 {dimension_numbers = #tpu.dot_dimension_numbers<[1], [0], [0], [1], [0, 0, 1, 1], [], []>} : vector<256x128xbf16>, vector<128x128xbf16>, vector<256x128xf32> -> vector<256x128xf32>
    %75 = arith.addf %71, %74 : vector<256x128xf32>
    %c5 = arith.constant 5 : index
    %c0_75 = arith.constant 0 : index
    %c0_76 = arith.constant 0 : index
    %76 = vector.load %arg4[%c5, %c0_75, %c0_76] : memref<9x128x128xbf16, #tpu.memory_space<vmem>>, vector<1x128x128xbf16>
    %77 = vector.shape_cast %76 : vector<1x128x128xbf16> to vector<128x128xbf16>
    %cst_77 = arith.constant dense<0.000000e+00> : vector<256x128xf32>
    %78 = tpu.matmul %51, %77, %cst_77 {dimension_numbers = #tpu.dot_dimension_numbers<[1], [0], [0], [1], [0, 0, 1, 1], [], []>} : vector<256x128xbf16>, vector<128x128xbf16>, vector<256x128xf32> -> vector<256x128xf32>
    %79 = arith.addf %75, %78 : vector<256x128xf32>
    %c6 = arith.constant 6 : index
    %c0_78 = arith.constant 0 : index
    %c0_79 = arith.constant 0 : index
    %80 = vector.load %arg4[%c6, %c0_78, %c0_79] : memref<9x128x128xbf16, #tpu.memory_space<vmem>>, vector<1x128x128xbf16>
    %81 = vector.shape_cast %80 : vector<1x128x128xbf16> to vector<128x128xbf16>
    %cst_80 = arith.constant dense<0.000000e+00> : vector<256x128xf32>
    %82 = tpu.matmul %54, %81, %cst_80 {dimension_numbers = #tpu.dot_dimension_numbers<[1], [0], [0], [1], [0, 0, 1, 1], [], []>} : vector<256x128xbf16>, vector<128x128xbf16>, vector<256x128xf32> -> vector<256x128xf32>
    %83 = arith.addf %79, %82 : vector<256x128xf32>
    %c7 = arith.constant 7 : index
    %c0_81 = arith.constant 0 : index
    %c0_82 = arith.constant 0 : index
    %84 = vector.load %arg4[%c7, %c0_81, %c0_82] : memref<9x128x128xbf16, #tpu.memory_space<vmem>>, vector<1x128x128xbf16>
    %85 = vector.shape_cast %84 : vector<1x128x128xbf16> to vector<128x128xbf16>
    %cst_83 = arith.constant dense<0.000000e+00> : vector<256x128xf32>
    %86 = tpu.matmul %55, %85, %cst_83 {dimension_numbers = #tpu.dot_dimension_numbers<[1], [0], [0], [1], [0, 0, 1, 1], [], []>} : vector<256x128xbf16>, vector<128x128xbf16>, vector<256x128xf32> -> vector<256x128xf32>
    %87 = arith.addf %83, %86 : vector<256x128xf32>
    %c8 = arith.constant 8 : index
    %c0_84 = arith.constant 0 : index
    %c0_85 = arith.constant 0 : index
    %88 = vector.load %arg4[%c8, %c0_84, %c0_85] : memref<9x128x128xbf16, #tpu.memory_space<vmem>>, vector<1x128x128xbf16>
    %89 = vector.shape_cast %88 : vector<1x128x128xbf16> to vector<128x128xbf16>
    %cst_86 = arith.constant dense<0.000000e+00> : vector<256x128xf32>
    %90 = tpu.matmul %56, %89, %cst_86 {dimension_numbers = #tpu.dot_dimension_numbers<[1], [0], [0], [1], [0, 0, 1, 1], [], []>} : vector<256x128xbf16>, vector<128x128xbf16>, vector<256x128xf32> -> vector<256x128xf32>
    %91 = arith.addf %87, %90 : vector<256x128xf32>
    %c0_87 = arith.constant 0 : index
    %c0_88 = arith.constant 0 : index
    %92 = vector.load %arg5[%c0_87, %c0_88] : memref<1x128xf32, #tpu.memory_space<vmem>>, vector<1x128xf32>
    %93 = vector.broadcast %92 : vector<1x128xf32> to vector<256x128xf32>
    %94 = arith.addf %91, %93 : vector<256x128xf32>
    %cst_89 = arith.constant 0.000000e+00 : f32
    %95 = vector.broadcast %cst_89 : f32 to vector<256x128xf32>
    %96 = arith.maximumf %94, %95 : vector<256x128xf32>
    %97 = vector.extract_strided_slice %96 {offsets = [0, 0], sizes = [256, 8], strides = [1, 1]} : vector<256x128xf32> to vector<256x8xf32>
    %98 = vector.shape_cast %97 : vector<256x8xf32> to vector<1x16x16x8xf32>
    %c0_90 = arith.constant 0 : index
    %c0_91 = arith.constant 0 : index
    %c0_92 = arith.constant 0 : index
    %c0_93 = arith.constant 0 : index
    %99 = vector.load %arg6[%c0_90, %c0_91, %c0_92, %c0_93] : memref<1x16x16x8xf32, #tpu.memory_space<vmem>>, vector<1x16x16x8xf32>
    tpu.vector_store %arg6[%c0_90, %c0_91, %c0_92, %c0_93], %98 {strides = array<i32>} : memref<1x16x16x8xf32, #tpu.memory_space<vmem>>, vector<1x16x16x8xf32>,
    return
  }
  func.func @transform_0(%arg0: i32) -> (i32, i32, i32, i32) {
    %c0_i32 = arith.constant 0 : i32
    %c0_i32_0 = arith.constant 0 : i32
    %c0_i32_1 = arith.constant 0 : i32
    %c0_i32_2 = arith.constant 0 : i32
    return %arg0, %c0_i32, %c0_i32_0, %c0_i32_1 : i32, i32, i32, i32
  }
  func.func @transform_1(%arg0: i32) -> (i32, i32) {
    %c0_i32 = arith.constant 0 : i32
    %c0_i32_0 = arith.constant 0 : i32
    %c0_i32_1 = arith.constant 0 : i32
    return %c0_i32, %c0_i32_0 : i32, i32
  }
  func.func @transform_2(%arg0: i32) -> (i32, i32) {
    %c0_i32 = arith.constant 0 : i32
    %c0_i32_0 = arith.constant 0 : i32
    %c0_i32_1 = arith.constant 0 : i32
    return %c0_i32, %c0_i32_0 : i32, i32
  }
  func.func @transform_3(%arg0: i32) -> (i32, i32, i32) {
    %c0_i32 = arith.constant 0 : i32
    %c0_i32_0 = arith.constant 0 : i32
    %c0_i32_1 = arith.constant 0 : i32
    %c0_i32_2 = arith.constant 0 : i32
    return %c0_i32, %c0_i32_0, %c0_i32_1 : i32, i32, i32
  }
  func.func @transform_4(%arg0: i32) -> (i32, i32) {
    %c0_i32 = arith.constant 0 : i32
    %c0_i32_0 = arith.constant 0 : i32
    %c0_i32_1 = arith.constant 0 : i32
    return %c0_i32, %c0_i32_0 : i32, i32
  }
  func.func @transform_5(%arg0: i32) -> (i32, i32, i32, i32) {
    %c0_i32 = arith.constant 0 : i32
    %c0_i32_0 = arith.constant 0 : i32
    %c0_i32_1 = arith.constant 0 : i32
    %c0_i32_2 = arith.constant 0 : i32
    return %arg0, %c0_i32, %c0_i32_0, %c0_i32_1 : i32, i32, i32, i32
  }
}

</mosaic_0001>

<llo_original>
// kernel: tpu_custom_call.1
$region0: #{tpu_custom_call.1}
  #allocation0 [shape = 'u32[]', space=smem, size = 0x4, offset = 0x4, fixed_abs, tag = 'smem constant byte address 0x4 - core index']
  #allocation1 [shape = 'u32[144,128]{1,0:T(1,128)}', space=vmem, size = 0x12000, scoped, tag = 'internal scratch']
  #allocation2 [shape = 'bf16[18,18,4]{2,1,0:T(8,128)(2,1)}', space=vmem, size = 0x1b000, scoped, tag = 'scratch operand']
  #allocation3 [shape = 'bf16[18,18,128]{2,1,0:T(8,128)(2,1)}', space=vmem, size = 0x1b000, scoped, tag = 'scratch operand']
  %s0 = inlined_call_operand.vmem [shape: f32[2,16,16,4], index: 0, kind: input, shape index: {}]
  %s1 = inlined_call_operand.vmem [shape: bf16[36,128], index: 1, kind: input, shape index: {}]
  %s2 = inlined_call_operand.vmem [shape: f32[1,128], index: 2, kind: input, shape index: {}]
  %s3 = inlined_call_operand.vmem [shape: bf16[9,128,128], index: 3, kind: input, shape index: {}]
  %s4 = inlined_call_operand.vmem [shape: f32[1,128], index: 4, kind: input, shape index: {}]
  %s5 = inlined_call_operand.vmem [shape: f32[2,16,16,8], index: 5, kind: output, shape index: {}]
  %s6 = sld [smem:[#allocation0]]
  $region53: #{tpu_custom_call.1} parent=0
    _
  %s8 = ssub.s32 1, %s6
  %s9 = scalar_select 0, %s8, %s6
  loop: start=0, step=1, limit=4
  $region2: #{tpu_custom_call.1} parent=0 // loop_pre_header
    _
  $region3: #{tpu_custom_call.1} parent=0 // loop_header
    %s11 = sphi 0, %s15
    %p12 = scmp.ge.s32.totalorder %s11, 4
    %s21 = sphi 0, %s23
    %s24 = sphi 0, %s21
    %s25 = sphi 0, %s24
    %s41 = sphi 0, %s25
    %s45 = sphi 0, %s45
    %s47 = sphi 0, %s45
    %s48 = sphi 0, %s47
    %s62 = sphi 0, %s48
    %s66 = sphi 0, %s66
    %s68 = sphi 0, %s66
    %s69 = sphi 0, %s68
    %s83 = sphi 0, %s69
    %s87 = sphi 0, %s87
    %s89 = sphi 0, %s87
    %s90 = sphi 0, %s89
    %s104 = sphi 0, %s90
    %s108 = sphi 0, %s108
    %s110 = sphi 0, %s108
    %s111 = sphi 0, %s110
    %s125 = sphi 0, %s111
    %s131 = sphi 0, %s133
    %s134 = sphi 0, %s131
    %s135 = sphi 0, %s134
    %s151 = sphi 0, %s135
  $region4: #{tpu_custom_call.1} parent=0 // loop_header_branch
    %14 = sbr.rel (%p12) target = $region8
  $region5: #{tpu_custom_call.1} parent=0 // loop_body
    %s16 = ssub.s32 %s11, 1
    %s17 = ssub.s32 %s11, 2
    %s18 = sadd.s32 %s11, 1
    %s19 = ssub.s32 %s11, %s18
    %p20 = scmp.eq.s32.totalorder %s19, 0
    %s22 = sadd.s32 %s21, 1
    %s23 = scalar_select %p20, %s21, %s22
    %p26 = pneg %p20
    %p27 = scmp.eq.s32.totalorder %s11, 1
    %p28 = por %p26, %p27
    %p29 = scmp.ne.s32.totalorder %s21, %s24
    %p30 = scmp.eq.s32.totalorder %s11, 0
    %p31 = por %p29, %p30
    %p32 = scmp.ne.s32.totalorder %s21, %s24
    %p33 = scmp.eq.s32.totalorder %s16, 1
    %p34 = por %p32, %p33
    %p35 = scmp.ne.s32.totalorder %s24, %s25
    %p36 = scmp.eq.s32.totalorder %s16, 0
    %p37 = por %p35, %p36
    %p38 = scmp.ne.s32.totalorder %s24, %s25
    %p39 = scmp.eq.s32.totalorder %s17, 1
    %p40 = por %p38, %p39
    %p42 = scmp.ne.s32.totalorder %s25, %s41
    %p43 = scmp.eq.s32.totalorder %s17, 0
    %p44 = por %p42, %p43
    %s46 = sadd.s32 %s45, 1
    %p49 = scmp.eq.s32.totalorder %s11, 1
    %p50 = scmp.ne.s32.totalorder %s45, %s47
    %p51 = scmp.eq.s32.totalorder %s11, 0
    %p52 = por %p50, %p51
    %p53 = scmp.ne.s32.totalorder %s45, %s47
    %p54 = scmp.eq.s32.totalorder %s16, 1
    %p55 = por %p53, %p54
    %p56 = scmp.ne.s32.totalorder %s47, %s48
    %p57 = scmp.eq.s32.totalorder %s16, 0
    %p58 = por %p56, %p57
    %p59 = scmp.ne.s32.totalorder %s47, %s48
    %p60 = scmp.eq.s32.totalorder %s17, 1
    %p61 = por %p59, %p60
    %p63 = scmp.ne.s32.totalorder %s48, %s62
    %p64 = scmp.eq.s32.totalorder %s17, 0
    %p65 = por %p63, %p64
    %s67 = sadd.s32 %s66, 1
    %p70 = scmp.eq.s32.totalorder %s11, 1
    %p71 = scmp.ne.s32.totalorder %s66, %s68
    %p72 = scmp.eq.s32.totalorder %s11, 0
    %p73 = por %p71, %p72
    %p74 = scmp.ne.s32.totalorder %s66, %s68
    %p75 = scmp.eq.s32.totalorder %s16, 1
    %p76 = por %p74, %p75
    %p77 = scmp.ne.s32.totalorder %s68, %s69
    %p78 = scmp.eq.s32.totalorder %s16, 0
    %p79 = por %p77, %p78
    %p80 = scmp.ne.s32.totalorder %s68, %s69
    %p81 = scmp.eq.s32.totalorder %s17, 1
    %p82 = por %p80, %p81
    %p84 = scmp.ne.s32.totalorder %s69, %s83
    %p85 = scmp.eq.s32.totalorder %s17, 0
    %p86 = por %p84, %p85
    %s88 = sadd.s32 %s87, 1
    %p91 = scmp.eq.s32.totalorder %s11, 1
    %p92 = scmp.ne.s32.totalorder %s87, %s89
    %p93 = scmp.eq.s32.totalorder %s11, 0
    %p94 = por %p92, %p93
    %p95 = scmp.ne.s32.totalorder %s87, %s89
    %p96 = scmp.eq.s32.totalorder %s16, 1
    %p97 = por %p95, %p96
    %p98 = scmp.ne.s32.totalorder %s89, %s90
    %p99 = scmp.eq.s32.totalorder %s16, 0
    %p100 = por %p98, %p99
    %p101 = scmp.ne.s32.totalorder %s89, %s90
    %p102 = scmp.eq.s32.totalorder %s17, 1
    %p103 = por %p101, %p102
    %p105 = scmp.ne.s32.totalorder %s90, %s104
    %p106 = scmp.eq.s32.totalorder %s17, 0
    %p107 = por %p105, %p106
    %s109 = sadd.s32 %s108, 1
    %p112 = scmp.eq.s32.totalorder %s11, 1
    %p113 = scmp.ne.s32.totalorder %s108, %s110
    %p114 = scmp.eq.s32.totalorder %s11, 0
    %p115 = por %p113, %p114
    %p116 = scmp.ne.s32.totalorder %s108, %s110
    %p117 = scmp.eq.s32.totalorder %s16, 1
    %p118 = por %p116, %p117
    %p119 = scmp.ne.s32.totalorder %s110, %s111
    %p120 = scmp.eq.s32.totalorder %s16, 0
    %p121 = por %p119, %p120
    %p122 = scmp.ne.s32.totalorder %s110, %s111
    %p123 = scmp.eq.s32.totalorder %s17, 1
    %p124 = por %p122, %p123
    %p126 = scmp.ne.s32.totalorder %s111, %s125
    %p127 = scmp.eq.s32.totalorder %s17, 0
    %p128 = por %p126, %p127
    %s129 = ssub.s32 %s11, %s18
    %p130 = scmp.eq.s32.totalorder %s129, 0
    %s132 = sadd.s32 %s131, 1
    %s133 = scalar_select %p130, %s131, %s132
    %p136 = pneg %p130
    %p137 = scmp.eq.s32.totalorder %s11, 1
    %p138 = por %p136, %p137
    %p139 = scmp.ne.s32.totalorder %s131, %s134
    %p140 = scmp.eq.s32.totalorder %s11, 0
    %p141 = por %p139, %p140
    %p142 = scmp.ne.s32.totalorder %s131, %s134
    %p143 = scmp.eq.s32.totalorder %s16, 1
    %p144 = por %p142, %p143
    %p145 = scmp.ne.s32.totalorder %s134, %s135
    %p146 = scmp.eq.s32.totalorder %s16, 0
    %p147 = por %p145, %p146
    %p148 = scmp.ne.s32.totalorder %s134, %s135
    %p149 = scmp.eq.s32.totalorder %s17, 1
    %p150 = por %p148, %p149
    %p152 = scmp.ne.s32.totalorder %s135, %s151
    %p153 = scmp.eq.s32.totalorder %s17, 0
    %p154 = por %p152, %p153
    %p155 = scmp.le.s32.totalorder 1, %s11
    %p156 = scmp.lt.s32.totalorder %s11, 3
    %p157 = pnand %p155, %p156
    %p158 = pneg %p157
    // Predicated region
    $region9: #{tpu_custom_call.1} parent=5 // pred_check
      _
    $region10: #{tpu_custom_call.1} parent=5 // pred_check_branch
      %160 = sbr.rel (%p157) target = $region12
    $region11: #{tpu_custom_call.1} parent=5 // pred_region
      %s161 = ssub.s32 %s11, 1
      // Predicated region
      $region13: #{tpu_custom_call.1} parent=11 // pred_check
        %p162 = pneg %p58
      $region14: #{tpu_custom_call.1} parent=11 // pred_check_branch
        %164 = sbr.rel (%p162) target = $region16
      $region15: #{tpu_custom_call.1} parent=11 // pred_region
        _
      $region16: #{tpu_custom_call.1} parent=11 // pred_fallthru
        _
      // Predicated region
      $region17: #{tpu_custom_call.1} parent=11 // pred_check
        %p165 = pneg %p79
      $region18: #{tpu_custom_call.1} parent=11 // pred_check_branch
        %167 = sbr.rel (%p165) target = $region20
      $region19: #{tpu_custom_call.1} parent=11 // pred_region
        _
      $region20: #{tpu_custom_call.1} parent=11 // pred_fallthru
        _
      // Predicated region
      $region21: #{tpu_custom_call.1} parent=11 // pred_check
        %p168 = pneg %p100
      $region22: #{tpu_custom_call.1} parent=11 // pred_check_branch
        %170 = sbr.rel (%p168) target = $region24
      $region23: #{tpu_custom_call.1} parent=11 // pred_region
        _
      $region24: #{tpu_custom_call.1} parent=11 // pred_fallthru
        _
      // Predicated region
      $region25: #{tpu_custom_call.1} parent=11 // pred_check
        %p171 = pneg %p121
      $region26: #{tpu_custom_call.1} parent=11 // pred_check_branch
        %173 = sbr.rel (%p171) target = $region28
      $region27: #{tpu_custom_call.1} parent=11 // pred_region
        _
      $region28: #{tpu_custom_call.1} parent=11 // pred_fallthru
        _
    $region12: #{tpu_custom_call.1} parent=5 // pred_fallthru
      _
    %p174 = scmp.lt.s32.totalorder %s11, 2
    // Predicated region
    $region29: #{tpu_custom_call.1} parent=5 // pred_check
      %p175 = pneg %p174
    $region30: #{tpu_custom_call.1} parent=5 // pred_check_branch
      %177 = sbr.rel (%p175) target = $region32
    $region31: #{tpu_custom_call.1} parent=5 // pred_region
      // Predicated region
      $region33: #{tpu_custom_call.1} parent=31 // pred_check
        %p178 = pneg %p31
      $region34: #{tpu_custom_call.1} parent=31 // pred_check_branch
        %180 = sbr.rel (%p178) target = $region36
      $region35: #{tpu_custom_call.1} parent=31 // pred_region
        %p181 = scmp.lt.s32.totalorder %s11, 1
        %s182 = scalar_select %p181, %s11, 1
        %s183 = smul.addr %s182, 32
        %s184 = smul.addr %s183, 8
        %s185 = scalar_lea.vmem %s0, %s184
      $region36: #{tpu_custom_call.1} parent=31 // pred_fallthru
        _
    $region32: #{tpu_custom_call.1} parent=5 // pred_fallthru
      _
    %p186 = scmp.le.s32.totalorder 1, %s11
    %p187 = scmp.lt.s32.totalorder %s11, 3
    %p188 = pnand %p186, %p187
    %p189 = pneg %p188
    // Predicated region
    $region37: #{tpu_custom_call.1} parent=5 // pred_check
      _
    $region38: #{tpu_custom_call.1} parent=5 // pred_check_branch
      %191 = sbr.rel (%p188) target = $region40
    $region39: #{tpu_custom_call.1} parent=5 // pred_region
      %s192 = ssub.s32 %s11, 1
      %p193 = scmp.lt.s32.totalorder %s16, 1
      %s194 = scalar_select %p193, %s16, 1
      %s195 = smul.addr %s194, 32
      %s196 = smul.addr %s195, 8
      %s197 = scalar_lea.vmem %s0, %s196
      %p198 = pneg %p37
      %p199 = pneg %p34
      %p200 = pneg %p58
      %p201 = pneg %p55
      %p202 = pneg %p79
      %p203 = pneg %p76
      %p204 = pneg %p100
      %p205 = pneg %p97
      %p206 = pneg %p121
      %p207 = pneg %p118
      %p208 = pneg %p147
      %p209 = pneg %p144
      %p210 = scmp.lt.s32.totalorder %s16, 1
      %s211 = scalar_select %p210, %s16, 1
      %s212 = smul.addr %s211, 32
      %s213 = smul.addr %s212, 8
      %s214 = scalar_lea.vmem %s5, %s213
      %p215 = scmp.lt.s32.totalorder %s16, 1
      %s216 = scalar_select %p215, %s16, 1
      %s217 = smul.addr %s216, 32
      %s218 = smul.addr %s217, 8
      %s219 = scalar_lea.vmem %s0, %s218
      %p220 = scmp.lt.s32.totalorder %s16, 1
      %s221 = scalar_select %p220, %s16, 1
      %s222 = smul.addr %s221, 32
      %s223 = smul.addr %s222, 8
      %s224 = scalar_lea.vmem %s5, %s223
      %vm226 = vcmask 27648
      %227 = vst.msk [vmem:[#allocation2] sm:$0xf] %vm226, 0
      %228 = vst.msk [vmem:[#allocation2 + $0x4] sm:$0xf] %vm226, 0
      %vm229 = vcmask 24576
      %230 = vst.msk [vmem:[#allocation2 + $0x8] sm:$0x1] %vm229, 0
      %s231 = scalar_lea.vmem [#allocation2], 204
      %232 = vst.msk [vmem:[%s231] sm:$0xf] %vm226, 0
      %233 = vst.msk [vmem:[%s231 + $0x4] sm:$0xf] %vm226, 0
      %234 = vst.msk [vmem:[%s231 + $0x8] sm:$0x1] %vm229, 0
      %vm235 = vcmask 24576
      %vm236 = vsmask.f32 256
      %vm237 = vmand %vm235, %vm236
      %v238 = vld [vmem:[#allocation2] sm:$0x1]
      %v239 = vsel %vm237, 0, %v238
      %240 = vst [vmem:[#allocation2] sm:$0x1] %v239
      %v241 = vld [vmem:[#allocation2 + $0xc] sm:$0x1]
      %v242 = vsel %vm237, 0, %v241
      %243 = vst [vmem:[#allocation2 + $0xc] sm:$0x1] %v242
      %v244 = vld [vmem:[#allocation2 + $0x18] sm:$0x1]
      %v245 = vsel %vm237, 0, %v244
      %246 = vst [vmem:[#allocation2 + $0x18] sm:$0x1] %v245
      %v247 = vld [vmem:[#allocation2 + $0x24] sm:$0x1]
      %v248 = vsel %vm237, 0, %v247
      %249 = vst [vmem:[#allocation2 + $0x24] sm:$0x1] %v248
      %v250 = vld [vmem:[#allocation2 + $0x30] sm:$0x1]
      %v251 = vsel %vm237, 0, %v250
      %252 = vst [vmem:[#allocation2 + $0x30] sm:$0x1] %v251
      %v253 = vld [vmem:[#allocation2 + $0x3c] sm:$0x1]
      %v254 = vsel %vm237, 0, %v253
      %255 = vst [vmem:[#allocation2 + $0x3c] sm:$0x1] %v254
      %v256 = vld [vmem:[#allocation2 + $0x48] sm:$0x1]
      %v257 = vsel %vm237, 0, %v256
      %258 = vst [vmem:[#allocation2 + $0x48] sm:$0x1] %v257
      %v259 = vld [vmem:[#allocation2 + $0x54] sm:$0x1]
      %v260 = vsel %vm237, 0, %v259
      %261 = vst [vmem:[#allocation2 + $0x54] sm:$0x1] %v260
      %v262 = vld [vmem:[#allocation2 + $0x60] sm:$0x1]
      %v263 = vsel %vm237, 0, %v262
      %264 = vst [vmem:[#allocation2 + $0x60] sm:$0x1] %v263
      %v265 = vld [vmem:[#allocation2 + $0x6c] sm:$0x1]
      %v266 = vsel %vm237, 0, %v265
      %267 = vst [vmem:[#allocation2 + $0x6c] sm:$0x1] %v266
      %v268 = vld [vmem:[#allocation2 + $0x78] sm:$0x1]
      %v269 = vsel %vm237, 0, %v268
      %270 = vst [vmem:[#allocation2 + $0x78] sm:$0x1] %v269
      %v271 = vld [vmem:[#allocation2 + $0x84] sm:$0x1]
      %v272 = vsel %vm237, 0, %v271
      %273 = vst [vmem:[#allocation2 + $0x84] sm:$0x1] %v272
      %v274 = vld [vmem:[#allocation2 + $0x90] sm:$0x1]
      %v275 = vsel %vm237, 0, %v274
      %276 = vst [vmem:[#allocation2 + $0x90] sm:$0x1] %v275
      %v277 = vld [vmem:[#allocation2 + $0x9c] sm:$0x1]
      %v278 = vsel %vm237, 0, %v277
      %279 = vst [vmem:[#allocation2 + $0x9c] sm:$0x1] %v278
      %v280 = vld [vmem:[#allocation2 + $0xa8] sm:$0x1]
      %v281 = vsel %vm237, 0, %v280
      %282 = vst [vmem:[#allocation2 + $0xa8] sm:$0x1] %v281
      %v283 = vld [vmem:[#allocation2 + $0xb4] sm:$0x1]
      %v284 = vsel %vm237, 0, %v283
      %285 = vst [vmem:[#allocation2 + $0xb4] sm:$0x1] %v284
      %v286 = vld [vmem:[#allocation2 + $0xc0] sm:$0x1]
      %v287 = vsel %vm237, 0, %v286
      %288 = vst [vmem:[#allocation2 + $0xc0] sm:$0x1] %v287
      %v289 = vld [vmem:[#allocation2 + $0xcc] sm:$0x1]
      %v290 = vsel %vm237, 0, %v289
      %291 = vst [vmem:[#allocation2 + $0xcc] sm:$0x1] %v290
      %vm292 = vsmask.f32 7938
      %vm293 = vmand %vm235, %vm292
      %v294 = vld [vmem:[#allocation2 + $0x8] sm:$0x1]
      %v295 = vsel %vm293, 0, %v294
      %296 = vst [vmem:[#allocation2 + $0x8] sm:$0x1] %v295
      %v297 = vld [vmem:[#allocation2 + $0x14] sm:$0x1]
      %v298 = vsel %vm293, 0, %v297
      %299 = vst [vmem:[#allocation2 + $0x14] sm:$0x1] %v298
      %v300 = vld [vmem:[#allocation2 + $0x20] sm:$0x1]
      %v301 = vsel %vm293, 0, %v300
      %302 = vst [vmem:[#allocation2 + $0x20] sm:$0x1] %v301
      %v303 = vld [vmem:[#allocation2 + $0x2c] sm:$0x1]
      %v304 = vsel %vm293, 0, %v303
      %305 = vst [vmem:[#allocation2 + $0x2c] sm:$0x1] %v304
      %v306 = vld [vmem:[#allocation2 + $0x38] sm:$0x1]
      %v307 = vsel %vm293, 0, %v306
      %308 = vst [vmem:[#allocation2 + $0x38] sm:$0x1] %v307
      %v309 = vld [vmem:[#allocation2 + $0x44] sm:$0x1]
      %v310 = vsel %vm293, 0, %v309
      %311 = vst [vmem:[#allocation2 + $0x44] sm:$0x1] %v310
      %v312 = vld [vmem:[#allocation2 + $0x50] sm:$0x1]
      %v313 = vsel %vm293, 0, %v312
      %314 = vst [vmem:[#allocation2 + $0x50] sm:$0x1] %v313
      %v315 = vld [vmem:[#allocation2 + $0x5c] sm:$0x1]
      %v316 = vsel %vm293, 0, %v315
      %317 = vst [vmem:[#allocation2 + $0x5c] sm:$0x1] %v316
      %v318 = vld [vmem:[#allocation2 + $0x68] sm:$0x1]
      %v319 = vsel %vm293, 0, %v318
      %320 = vst [vmem:[#allocation2 + $0x68] sm:$0x1] %v319
      %v321 = vld [vmem:[#allocation2 + $0x74] sm:$0x1]
      %v322 = vsel %vm293, 0, %v321
      %323 = vst [vmem:[#allocation2 + $0x74] sm:$0x1] %v322
      %v324 = vld [vmem:[#allocation2 + $0x80] sm:$0x1]
      %v325 = vsel %vm293, 0, %v324
      %326 = vst [vmem:[#allocation2 + $0x80] sm:$0x1] %v325
      %v327 = vld [vmem:[#allocation2 + $0x8c] sm:$0x1]
      %v328 = vsel %vm293, 0, %v327
      %329 = vst [vmem:[#allocation2 + $0x8c] sm:$0x1] %v328
      %v330 = vld [vmem:[#allocation2 + $0x98] sm:$0x1]
      %v331 = vsel %vm293, 0, %v330
      %332 = vst [vmem:[#allocation2 + $0x98] sm:$0x1] %v331
      %v333 = vld [vmem:[#allocation2 + $0xa4] sm:$0x1]
      %v334 = vsel %vm293, 0, %v333
      %335 = vst [vmem:[#allocation2 + $0xa4] sm:$0x1] %v334
      %v336 = vld [vmem:[#allocation2 + $0xb0] sm:$0x1]
      %v337 = vsel %vm293, 0, %v336
      %338 = vst [vmem:[#allocation2 + $0xb0] sm:$0x1] %v337
      %v339 = vld [vmem:[#allocation2 + $0xbc] sm:$0x1]
      %v340 = vsel %vm293, 0, %v339
      %341 = vst [vmem:[#allocation2 + $0xbc] sm:$0x1] %v340
      %v342 = vld [vmem:[#allocation2 + $0xc8] sm:$0x1]
      %v343 = vsel %vm293, 0, %v342
      %344 = vst [vmem:[#allocation2 + $0xc8] sm:$0x1] %v343
      %v345 = vld [vmem:[#allocation2 + $0xd4] sm:$0x1]
      %v346 = vsel %vm293, 0, %v345
      %347 = vst [vmem:[#allocation2 + $0xd4] sm:$0x1] %v346
      %348 = vst [vmem:[#allocation3] sm:$0xf] 0
      %349 = vst [vmem:[#allocation3 + $0x4] sm:$0xf] 0
      %350 = vst [vmem:[#allocation3 + $0x8] sm:$0x1] 0
      %s351 = scalar_lea.vmem [#allocation3], 204
      %352 = vst [vmem:[%s351] sm:$0xf] 0
      %353 = vst [vmem:[%s351 + $0x4] sm:$0xf] 0
      %354 = vst [vmem:[%s351 + $0x8] sm:$0x1] 0
      %vm355 = vcmask 1040384
      %vm356 = vmand %vm355, %vm236
      %v357 = vld [vmem:[#allocation3] sm:$0x1]
      %v358 = vsel %vm356, 0, %v357
      %359 = vst [vmem:[#allocation3] sm:$0x1] %v358
      %v360 = vld [vmem:[#allocation3 + $0xc] sm:$0x1]
      %v361 = vsel %vm356, 0, %v360
      %362 = vst [vmem:[#allocation3 + $0xc] sm:$0x1] %v361
      %v363 = vld [vmem:[#allocation3 + $0x18] sm:$0x1]
      %v364 = vsel %vm356, 0, %v363
      %365 = vst [vmem:[#allocation3 + $0x18] sm:$0x1] %v364
      %v366 = vld [vmem:[#allocation3 + $0x24] sm:$0x1]
      %v367 = vsel %vm356, 0, %v366
      %368 = vst [vmem:[#allocation3 + $0x24] sm:$0x1] %v367
      %v369 = vld [vmem:[#allocation3 + $0x30] sm:$0x1]
      %v370 = vsel %vm356, 0, %v369
      %371 = vst [vmem:[#allocation3 + $0x30] sm:$0x1] %v370
      %v372 = vld [vmem:[#allocation3 + $0x3c] sm:$0x1]
      %v373 = vsel %vm356, 0, %v372
      %374 = vst [vmem:[#allocation3 + $0x3c] sm:$0x1] %v373
      %v375 = vld [vmem:[#allocation3 + $0x48] sm:$0x1]
      %v376 = vsel %vm356, 0, %v375
      %377 = vst [vmem:[#allocation3 + $0x48] sm:$0x1] %v376
      %v378 = vld [vmem:[#allocation3 + $0x54] sm:$0x1]
      %v379 = vsel %vm356, 0, %v378
      %380 = vst [vmem:[#allocation3 + $0x54] sm:$0x1] %v379
      %v381 = vld [vmem:[#allocation3 + $0x60] sm:$0x1]
      %v382 = vsel %vm356, 0, %v381
      %383 = vst [vmem:[#allocation3 + $0x60] sm:$0x1] %v382
      %v384 = vld [vmem:[#allocation3 + $0x6c] sm:$0x1]
      %v385 = vsel %vm356, 0, %v384
      %386 = vst [vmem:[#allocation3 + $0x6c] sm:$0x1] %v385
      %v387 = vld [vmem:[#allocation3 + $0x78] sm:$0x1]
      %v388 = vsel %vm356, 0, %v387
      %389 = vst [vmem:[#allocation3 + $0x78] sm:$0x1] %v388
      %v390 = vld [vmem:[#allocation3 + $0x84] sm:$0x1]
      %v391 = vsel %vm356, 0, %v390
      %392 = vst [vmem:[#allocation3 + $0x84] sm:$0x1] %v391
      %v393 = vld [vmem:[#allocation3 + $0x90] sm:$0x1]
      %v394 = vsel %vm356, 0, %v393
      %395 = vst [vmem:[#allocation3 + $0x90] sm:$0x1] %v394
      %v396 = vld [vmem:[#allocation3 + $0x9c] sm:$0x1]
      %v397 = vsel %vm356, 0, %v396
      %398 = vst [vmem:[#allocation3 + $0x9c] sm:$0x1] %v397
      %v399 = vld [vmem:[#allocation3 + $0xa8] sm:$0x1]
      %v400 = vsel %vm356, 0, %v399
      %401 = vst [vmem:[#allocation3 + $0xa8] sm:$0x1] %v400
      %v402 = vld [vmem:[#allocation3 + $0xb4] sm:$0x1]
      %v403 = vsel %vm356, 0, %v402
      %404 = vst [vmem:[#allocation3 + $0xb4] sm:$0x1] %v403
      %v405 = vld [vmem:[#allocation3 + $0xc0] sm:$0x1]
      %v406 = vsel %vm356, 0, %v405
      %407 = vst [vmem:[#allocation3 + $0xc0] sm:$0x1] %v406
      %v408 = vld [vmem:[#allocation3 + $0xcc] sm:$0x1]
      %v409 = vsel %vm356, 0, %v408
      %410 = vst [vmem:[#allocation3 + $0xcc] sm:$0x1] %v409
      %vm411 = vmand %vm355, %vm292
      %v412 = vld [vmem:[#allocation3 + $0x8] sm:$0x1]
      %v413 = vsel %vm411, 0, %v412
      %414 = vst [vmem:[#allocation3 + $0x8] sm:$0x1] %v413
      %v415 = vld [vmem:[#allocation3 + $0x14] sm:$0x1]
      %v416 = vsel %vm411, 0, %v415
      %417 = vst [vmem:[#allocation3 + $0x14] sm:$0x1] %v416
      %v418 = vld [vmem:[#allocation3 + $0x20] sm:$0x1]
      %v419 = vsel %vm411, 0, %v418
      %420 = vst [vmem:[#allocation3 + $0x20] sm:$0x1] %v419
      %v421 = vld [vmem:[#allocation3 + $0x2c] sm:$0x1]
      %v422 = vsel %vm411, 0, %v421
      %423 = vst [vmem:[#allocation3 + $0x2c] sm:$0x1] %v422
      %v424 = vld [vmem:[#allocation3 + $0x38] sm:$0x1]
      %v425 = vsel %vm411, 0, %v424
      %426 = vst [vmem:[#allocation3 + $0x38] sm:$0x1] %v425
      %v427 = vld [vmem:[#allocation3 + $0x44] sm:$0x1]
      %v428 = vsel %vm411, 0, %v427
      %429 = vst [vmem:[#allocation3 + $0x44] sm:$0x1] %v428
      %v430 = vld [vmem:[#allocation3 + $0x50] sm:$0x1]
      %v431 = vsel %vm411, 0, %v430
      %432 = vst [vmem:[#allocation3 + $0x50] sm:$0x1] %v431
      %v433 = vld [vmem:[#allocation3 + $0x5c] sm:$0x1]
      %v434 = vsel %vm411, 0, %v433
      %435 = vst [vmem:[#allocation3 + $0x5c] sm:$0x1] %v434
      %v436 = vld [vmem:[#allocation3 + $0x68] sm:$0x1]
      %v437 = vsel %vm411, 0, %v436
      %438 = vst [vmem:[#allocation3 + $0x68] sm:$0x1] %v437
      %v439 = vld [vmem:[#allocation3 + $0x74] sm:$0x1]
      %v440 = vsel %vm411, 0, %v439
      %441 = vst [vmem:[#allocation3 + $0x74] sm:$0x1] %v440
      %v442 = vld [vmem:[#allocation3 + $0x80] sm:$0x1]
      %v443 = vsel %vm411, 0, %v442
      %444 = vst [vmem:[#allocation3 + $0x80] sm:$0x1] %v443
      %v445 = vld [vmem:[#allocation3 + $0x8c] sm:$0x1]
      %v446 = vsel %vm411, 0, %v445
      %447 = vst [vmem:[#allocation3 + $0x8c] sm:$0x1] %v446
      %v448 = vld [vmem:[#allocation3 + $0x98] sm:$0x1]
      %v449 = vsel %vm411, 0, %v448
      %450 = vst [vmem:[#allocation3 + $0x98] sm:$0x1] %v449
      %v451 = vld [vmem:[#allocation3 + $0xa4] sm:$0x1]
      %v452 = vsel %vm411, 0, %v451
      %453 = vst [vmem:[#allocation3 + $0xa4] sm:$0x1] %v452
      %v454 = vld [vmem:[#allocation3 + $0xb0] sm:$0x1]
      %v455 = vsel %vm411, 0, %v454
      %456 = vst [vmem:[#allocation3 + $0xb0] sm:$0x1] %v455
      %v457 = vld [vmem:[#allocation3 + $0xbc] sm:$0x1]
      %v458 = vsel %vm411, 0, %v457
      %459 = vst [vmem:[#allocation3 + $0xbc] sm:$0x1] %v458
      %v460 = vld [vmem:[#allocation3 + $0xc8] sm:$0x1]
      %v461 = vsel %vm411, 0, %v460
      %462 = vst [vmem:[#allocation3 + $0xc8] sm:$0x1] %v461
      %v463 = vld [vmem:[#allocation3 + $0xd4] sm:$0x1]
      %v464 = vsel %vm411, 0, %v463
      %465 = vst [vmem:[#allocation3 + $0xd4] sm:$0x1] %v464
      %v466 = vld [vmem:[%s219] sm:$0xff]
      %v467 = vld [vmem:[%s219 + $0x8] sm:$0xff]
      %v468 = vld [vmem:[%s219 + $0x10] sm:$0xff]
      %v469 = vld [vmem:[%s219 + $0x18] sm:$0xff]
      %v470 = vld [vmem:[%s219 + $0x20] sm:$0xff]
      %v471 = vld [vmem:[%s219 + $0x28] sm:$0xff]
      %v472 = vld [vmem:[%s219 + $0x30] sm:$0xff]
      %v473 = vld [vmem:[%s219 + $0x38] sm:$0xff]
      %v474 = vld [vmem:[%s219 + $0x40] sm:$0xff]
      %v475 = vld [vmem:[%s219 + $0x48] sm:$0xff]
      %v476 = vld [vmem:[%s219 + $0x50] sm:$0xff]
      %v477 = vld [vmem:[%s219 + $0x58] sm:$0xff]
      %v478 = vld [vmem:[%s219 + $0x60] sm:$0xff]
      %v479 = vld [vmem:[%s219 + $0x68] sm:$0xff]
      %v480 = vld [vmem:[%s219 + $0x70] sm:$0xff]
      %v481 = vld [vmem:[%s219 + $0x78] sm:$0xff]
      %v482 = vld [vmem:[%s219 + $0x80] sm:$0xff]
      %v483 = vld [vmem:[%s219 + $0x88] sm:$0xff]
      %v484 = vld [vmem:[%s219 + $0x90] sm:$0xff]
      %v485 = vld [vmem:[%s219 + $0x98] sm:$0xff]
      %v486 = vld [vmem:[%s219 + $0xa0] sm:$0xff]
      %v487 = vld [vmem:[%s219 + $0xa8] sm:$0xff]
      %v488 = vld [vmem:[%s219 + $0xb0] sm:$0xff]
      %v489 = vld [vmem:[%s219 + $0xb8] sm:$0xff]
      %v490 = vld [vmem:[%s219 + $0xc0] sm:$0xff]
      %v491 = vld [vmem:[%s219 + $0xc8] sm:$0xff]
      %v492 = vld [vmem:[%s219 + $0xd0] sm:$0xff]
      %v493 = vld [vmem:[%s219 + $0xd8] sm:$0xff]
      %v494 = vld [vmem:[%s219 + $0xe0] sm:$0xff]
      %v495 = vld [vmem:[%s219 + $0xe8] sm:$0xff]
      %v496 = vld [vmem:[%s219 + $0xf0] sm:$0xff]
      %v497 = vld [vmem:[%s219 + $0xf8] sm:$0xff]
      %v498 = vpack.c.bf16 %v467, %v466
      %v499 = vpack.c.bf16 %v469, %v468
      %v500 = vpack.c.bf16 %v471, %v470
      %v501 = vpack.c.bf16 %v473, %v472
      %v502 = vpack.c.bf16 %v475, %v474
      %v503 = vpack.c.bf16 %v477, %v476
      %v504 = vpack.c.bf16 %v479, %v478
      %v505 = vpack.c.bf16 %v481, %v480
      %v506 = vpack.c.bf16 %v483, %v482
      %v507 = vpack.c.bf16 %v485, %v484
      %v508 = vpack.c.bf16 %v487, %v486
      %v509 = vpack.c.bf16 %v489, %v488
      %v510 = vpack.c.bf16 %v491, %v490
      %v511 = vpack.c.bf16 %v493, %v492
      %v512 = vpack.c.bf16 %v495, %v494
      %v513 = vpack.c.bf16 %v497, %v496
      %v530 = vunpack.c.l.b16 %v498
      %v531 = vunpack.c.h.b16 %v498
      %v532 = vunpack.c.l.b16 %v499
      %v533 = vunpack.c.h.b16 %v499
      %v534 = vunpack.c.l.b16 %v500
      %v535 = vunpack.c.h.b16 %v500
      %v536 = vunpack.c.l.b16 %v501
      %v537 = vunpack.c.h.b16 %v501
      %v538 = vunpack.c.l.b16 %v502
      %v539 = vunpack.c.h.b16 %v502
      %v540 = vunpack.c.l.b16 %v503
      %v541 = vunpack.c.h.b16 %v503
      %v542 = vunpack.c.l.b16 %v504
      %v543 = vunpack.c.h.b16 %v504
      %v544 = vunpack.c.l.b16 %v505
      %v545 = vunpack.c.h.b16 %v505
      %v546 = vunpack.c.l.b16 %v506
      %v547 = vunpack.c.h.b16 %v506
      %v548 = vunpack.c.l.b16 %v507
      %v549 = vunpack.c.h.b16 %v507
      %v550 = vunpack.c.l.b16 %v508
      %v551 = vunpack.c.h.b16 %v508
      %v552 = vunpack.c.l.b16 %v509
      %v553 = vunpack.c.h.b16 %v509
      %v554 = vunpack.c.l.b16 %v510
      %v555 = vunpack.c.h.b16 %v510
      %v556 = vunpack.c.l.b16 %v511
      %v557 = vunpack.c.h.b16 %v511
      %v558 = vunpack.c.l.b16 %v512
      %v559 = vunpack.c.h.b16 %v512
      %v560 = vunpack.c.l.b16 %v513
      %v561 = vunpack.c.h.b16 %v513
      %v562 = vpack.c.b16 %v530, %v530
      %v563 = vpack.c.b16 %v531, %v531
      %v564 = vpack.c.b16 %v532, %v532
      %v565 = vpack.c.b16 %v533, %v533
      %v566 = vpack.c.b16 %v534, %v534
      %v567 = vpack.c.b16 %v535, %v535
      %v568 = vpack.c.b16 %v536, %v536
      %v569 = vpack.c.b16 %v537, %v537
      %v570 = vpack.c.b16 %v538, %v538
      %v571 = vpack.c.b16 %v539, %v539
      %v572 = vpack.c.b16 %v540, %v540
      %v573 = vpack.c.b16 %v541, %v541
      %v574 = vpack.c.b16 %v542, %v542
      %v575 = vpack.c.b16 %v543, %v543
      %v576 = vpack.c.b16 %v544, %v544
      %v577 = vpack.c.b16 %v545, %v545
      %v578 = vpack.c.b16 %v546, %v546
      %v579 = vpack.c.b16 %v547, %v547
      %v580 = vpack.c.b16 %v548, %v548
      %v581 = vpack.c.b16 %v549, %v549
      %v582 = vpack.c.b16 %v550, %v550
      %v583 = vpack.c.b16 %v551, %v551
      %v584 = vpack.c.b16 %v552, %v552
      %v585 = vpack.c.b16 %v553, %v553
      %v586 = vpack.c.b16 %v554, %v554
      %v587 = vpack.c.b16 %v555, %v555
      %v588 = vpack.c.b16 %v556, %v556
      %v589 = vpack.c.b16 %v557, %v557
      %v590 = vpack.c.b16 %v558, %v558
      %v591 = vpack.c.b16 %v559, %v559
      %v592 = vpack.c.b16 %v560, %v560
      %v593 = vpack.c.b16 %v561, %v561
      %vm594 = vsmask.f32 4368
      %vm595 = vmor %vm236, %vm594
      %v597 = vshrl.u32 %v562, 16
      %v599 = vrot.slane %v597, 7
      %v600 = vshll.u32 %v562, 16
      %v602 = vor.u32 %v599, %v600
      %v603 = vrot.slane %v599, 4
      %v605 = vshrl.u32 %v563, 16
      %v607 = vrot.slane %v605, 7
      %v608 = vshll.u32 %v563, 16
      %v610 = vor.u32 %v607, %v608
      %v611 = vsel %vm595, %v603, %v610
      %v612 = vrot.slane %v607, 4
      %v614 = vshrl.u32 %v564, 16
      %v616 = vrot.slane %v614, 7
      %v617 = vshll.u32 %v564, 16
      %v619 = vor.u32 %v616, %v617
      %v620 = vrot.slane %v616, 4
      %v622 = vshrl.u32 %v565, 16
      %v624 = vrot.slane %v622, 7
      %v625 = vshll.u32 %v565, 16
      %v627 = vor.u32 %v624, %v625
      %v628 = vsel %vm595, %v620, %v627
      %v629 = vrot.slane %v624, 4
      %v631 = vshrl.u32 %v566, 16
      %v633 = vrot.slane %v631, 7
      %v634 = vshll.u32 %v566, 16
      %v636 = vor.u32 %v633, %v634
      %v637 = vrot.slane %v633, 4
      %v639 = vshrl.u32 %v567, 16
      %v641 = vrot.slane %v639, 7
      %v642 = vshll.u32 %v567, 16
      %v644 = vor.u32 %v641, %v642
      %v645 = vsel %vm595, %v637, %v644
      %v646 = vrot.slane %v641, 4
      %v648 = vshrl.u32 %v568, 16
      %v650 = vrot.slane %v648, 7
      %v651 = vshll.u32 %v568, 16
      %v653 = vor.u32 %v650, %v651
      %v654 = vrot.slane %v650, 4
      %v656 = vshrl.u32 %v569, 16
      %v658 = vrot.slane %v656, 7
      %v659 = vshll.u32 %v569, 16
      %v661 = vor.u32 %v658, %v659
      %v662 = vsel %vm595, %v654, %v661
      %v663 = vrot.slane %v658, 4
      %v665 = vshrl.u32 %v570, 16
      %v667 = vrot.slane %v665, 7
      %v668 = vshll.u32 %v570, 16
      %v670 = vor.u32 %v667, %v668
      %v671 = vrot.slane %v667, 4
      %v673 = vshrl.u32 %v571, 16
      %v675 = vrot.slane %v673, 7
      %v676 = vshll.u32 %v571, 16
      %v678 = vor.u32 %v675, %v676
      %v679 = vsel %vm595, %v671, %v678
      %v680 = vrot.slane %v675, 4
      %v682 = vshrl.u32 %v572, 16
      %v684 = vrot.slane %v682, 7
      %v685 = vshll.u32 %v572, 16
      %v687 = vor.u32 %v684, %v685
      %v688 = vrot.slane %v684, 4
      %v690 = vshrl.u32 %v573, 16
      %v692 = vrot.slane %v690, 7
      %v693 = vshll.u32 %v573, 16
      %v695 = vor.u32 %v692, %v693
      %v696 = vsel %vm595, %v688, %v695
      %v697 = vrot.slane %v692, 4
      %v699 = vshrl.u32 %v574, 16
      %v701 = vrot.slane %v699, 7
      %v702 = vshll.u32 %v574, 16
      %v704 = vor.u32 %v701, %v702
      %v705 = vrot.slane %v701, 4
      %v707 = vshrl.u32 %v575, 16
      %v709 = vrot.slane %v707, 7
      %v710 = vshll.u32 %v575, 16
      %v712 = vor.u32 %v709, %v710
      %v713 = vsel %vm595, %v705, %v712
      %v714 = vrot.slane %v709, 4
      %v716 = vshrl.u32 %v576, 16
      %v718 = vrot.slane %v716, 7
      %v719 = vshll.u32 %v576, 16
      %v721 = vor.u32 %v718, %v719
      %v722 = vrot.slane %v718, 4
      %v724 = vshrl.u32 %v577, 16
      %v726 = vrot.slane %v724, 7
      %v727 = vshll.u32 %v577, 16
      %v729 = vor.u32 %v726, %v727
      %v730 = vsel %vm595, %v722, %v729
      %v731 = vrot.slane %v726, 4
      %v733 = vshrl.u32 %v578, 16
      %v735 = vrot.slane %v733, 7
      %v736 = vshll.u32 %v578, 16
      %v738 = vor.u32 %v735, %v736
      %v739 = vrot.slane %v735, 4
      %v741 = vshrl.u32 %v579, 16
      %v743 = vrot.slane %v741, 7
      %v744 = vshll.u32 %v579, 16
      %v746 = vor.u32 %v743, %v744
      %v747 = vsel %vm595, %v739, %v746
      %v748 = vrot.slane %v743, 4
      %v750 = vshrl.u32 %v580, 16
      %v752 = vrot.slane %v750, 7
      %v753 = vshll.u32 %v580, 16
      %v755 = vor.u32 %v752, %v753
      %v756 = vrot.slane %v752, 4
      %v758 = vshrl.u32 %v581, 16
      %v760 = vrot.slane %v758, 7
      %v761 = vshll.u32 %v581, 16
      %v763 = vor.u32 %v760, %v761
      %v764 = vsel %vm595, %v756, %v763
      %v765 = vrot.slane %v760, 4
      %v767 = vshrl.u32 %v582, 16
      %v769 = vrot.slane %v767, 7
      %v770 = vshll.u32 %v582, 16
      %v772 = vor.u32 %v769, %v770
      %v773 = vrot.slane %v769, 4
      %v775 = vshrl.u32 %v583, 16
      %v777 = vrot.slane %v775, 7
      %v778 = vshll.u32 %v583, 16
      %v780 = vor.u32 %v777, %v778
      %v781 = vsel %vm595, %v773, %v780
      %v782 = vrot.slane %v777, 4
      %v784 = vshrl.u32 %v584, 16
      %v786 = vrot.slane %v784, 7
      %v787 = vshll.u32 %v584, 16
      %v789 = vor.u32 %v786, %v787
      %v790 = vrot.slane %v786, 4
      %v792 = vshrl.u32 %v585, 16
      %v794 = vrot.slane %v792, 7
      %v795 = vshll.u32 %v585, 16
      %v797 = vor.u32 %v794, %v795
      %v798 = vsel %vm595, %v790, %v797
      %v799 = vrot.slane %v794, 4
      %v801 = vshrl.u32 %v586, 16
      %v803 = vrot.slane %v801, 7
      %v804 = vshll.u32 %v586, 16
      %v806 = vor.u32 %v803, %v804
      %v807 = vrot.slane %v803, 4
      %v809 = vshrl.u32 %v587, 16
      %v811 = vrot.slane %v809, 7
      %v812 = vshll.u32 %v587, 16
      %v814 = vor.u32 %v811, %v812
      %v815 = vsel %vm595, %v807, %v814
      %v816 = vrot.slane %v811, 4
      %v818 = vshrl.u32 %v588, 16
      %v820 = vrot.slane %v818, 7
      %v821 = vshll.u32 %v588, 16
      %v823 = vor.u32 %v820, %v821
      %v824 = vrot.slane %v820, 4
      %v826 = vshrl.u32 %v589, 16
      %v828 = vrot.slane %v826, 7
      %v829 = vshll.u32 %v589, 16
      %v831 = vor.u32 %v828, %v829
      %v832 = vsel %vm595, %v824, %v831
      %v833 = vrot.slane %v828, 4
      %v835 = vshrl.u32 %v590, 16
      %v837 = vrot.slane %v835, 7
      %v838 = vshll.u32 %v590, 16
      %v840 = vor.u32 %v837, %v838
      %v841 = vrot.slane %v837, 4
      %v843 = vshrl.u32 %v591, 16
      %v845 = vrot.slane %v843, 7
      %v846 = vshll.u32 %v591, 16
      %v848 = vor.u32 %v845, %v846
      %v849 = vsel %vm595, %v841, %v848
      %v850 = vrot.slane %v845, 4
      %v852 = vshrl.u32 %v592, 16
      %v854 = vrot.slane %v852, 7
      %v855 = vshll.u32 %v592, 16
      %v857 = vor.u32 %v854, %v855
      %v858 = vrot.slane %v854, 4
      %v860 = vshrl.u32 %v593, 16
      %v862 = vrot.slane %v860, 7
      %v863 = vshll.u32 %v593, 16
      %v865 = vor.u32 %v862, %v863
      %v866 = vsel %vm595, %v858, %v865
      %v867 = vrot.slane %v862, 4
      %s916 = scalar_lea.vmem [#allocation2], 12
      %vm917 = vcmask 27648
      %vm918 = vmand %vm917, %vm292
      %v919 = vld [vmem:[%s916] sm:$0xf]
      %v920 = vsel %vm918, %v602, %v919
      %921 = vst [vmem:[%s916] sm:$0xf] %v920
      %922 = vst.msk [vmem:[%s916 + $0x4] sm:$0xf] %vm226, %v611
      %v923 = vld [vmem:[%s916 + $0x8] sm:$0x1]
      %v924 = vsel %vm237, %v612, %v923
      %925 = vst [vmem:[%s916 + $0x8] sm:$0x1] %v924
      %v926 = vld [vmem:[%s916 + $0xc] sm:$0xf]
      %v927 = vsel %vm918, %v619, %v926
      %928 = vst [vmem:[%s916 + $0xc] sm:$0xf] %v927
      %929 = vst.msk [vmem:[%s916 + $0x10] sm:$0xf] %vm226, %v628
      %v930 = vld [vmem:[%s916 + $0x14] sm:$0x1]
      %v931 = vsel %vm237, %v629, %v930
      %932 = vst [vmem:[%s916 + $0x14] sm:$0x1] %v931
      %v933 = vld [vmem:[%s916 + $0x18] sm:$0xf]
      %v934 = vsel %vm918, %v636, %v933
      %935 = vst [vmem:[%s916 + $0x18] sm:$0xf] %v934
      %936 = vst.msk [vmem:[%s916 + $0x1c] sm:$0xf] %vm226, %v645
      %v937 = vld [vmem:[%s916 + $0x20] sm:$0x1]
      %v938 = vsel %vm237, %v646, %v937
      %939 = vst [vmem:[%s916 + $0x20] sm:$0x1] %v938
      %v940 = vld [vmem:[%s916 + $0x24] sm:$0xf]
      %v941 = vsel %vm918, %v653, %v940
      %942 = vst [vmem:[%s916 + $0x24] sm:$0xf] %v941
      %943 = vst.msk [vmem:[%s916 + $0x28] sm:$0xf] %vm226, %v662
      %v944 = vld [vmem:[%s916 + $0x2c] sm:$0x1]
      %v945 = vsel %vm237, %v663, %v944
      %946 = vst [vmem:[%s916 + $0x2c] sm:$0x1] %v945
      %v947 = vld [vmem:[%s916 + $0x30] sm:$0xf]
      %v948 = vsel %vm918, %v670, %v947
      %949 = vst [vmem:[%s916 + $0x30] sm:$0xf] %v948
      %950 = vst.msk [vmem:[%s916 + $0x34] sm:$0xf] %vm226, %v679
      %v951 = vld [vmem:[%s916 + $0x38] sm:$0x1]
      %v952 = vsel %vm237, %v680, %v951
      %953 = vst [vmem:[%s916 + $0x38] sm:$0x1] %v952
      %v954 = vld [vmem:[%s916 + $0x3c] sm:$0xf]
      %v955 = vsel %vm918, %v687, %v954
      %956 = vst [vmem:[%s916 + $0x3c] sm:$0xf] %v955
      %957 = vst.msk [vmem:[%s916 + $0x40] sm:$0xf] %vm226, %v696
      %v958 = vld [vmem:[%s916 + $0x44] sm:$0x1]
      %v959 = vsel %vm237, %v697, %v958
      %960 = vst [vmem:[%s916 + $0x44] sm:$0x1] %v959
      %v961 = vld [vmem:[%s916 + $0x48] sm:$0xf]
      %v962 = vsel %vm918, %v704, %v961
      %963 = vst [vmem:[%s916 + $0x48] sm:$0xf] %v962
      %964 = vst.msk [vmem:[%s916 + $0x4c] sm:$0xf] %vm226, %v713
      %v965 = vld [vmem:[%s916 + $0x50] sm:$0x1]
      %v966 = vsel %vm237, %v714, %v965
      %967 = vst [vmem:[%s916 + $0x50] sm:$0x1] %v966
      %v968 = vld [vmem:[%s916 + $0x54] sm:$0xf]
      %v969 = vsel %vm918, %v721, %v968
      %970 = vst [vmem:[%s916 + $0x54] sm:$0xf] %v969
      %971 = vst.msk [vmem:[%s916 + $0x58] sm:$0xf] %vm226, %v730
      %v972 = vld [vmem:[%s916 + $0x5c] sm:$0x1]
      %v973 = vsel %vm237, %v731, %v972
      %974 = vst [vmem:[%s916 + $0x5c] sm:$0x1] %v973
      %v975 = vld [vmem:[%s916 + $0x60] sm:$0xf]
      %v976 = vsel %vm918, %v738, %v975
      %977 = vst [vmem:[%s916 + $0x60] sm:$0xf] %v976
      %978 = vst.msk [vmem:[%s916 + $0x64] sm:$0xf] %vm226, %v747
      %v979 = vld [vmem:[%s916 + $0x68] sm:$0x1]
      %v980 = vsel %vm237, %v748, %v979
      %981 = vst [vmem:[%s916 + $0x68] sm:$0x1] %v980
      %v982 = vld [vmem:[%s916 + $0x6c] sm:$0xf]
      %v983 = vsel %vm918, %v755, %v982
      %984 = vst [vmem:[%s916 + $0x6c] sm:$0xf] %v983
      %985 = vst.msk [vmem:[%s916 + $0x70] sm:$0xf] %vm226, %v764
      %v986 = vld [vmem:[%s916 + $0x74] sm:$0x1]
      %v987 = vsel %vm237, %v765, %v986
      %988 = vst [vmem:[%s916 + $0x74] sm:$0x1] %v987
      %v989 = vld [vmem:[%s916 + $0x78] sm:$0xf]
      %v990 = vsel %vm918, %v772, %v989
      %991 = vst [vmem:[%s916 + $0x78] sm:$0xf] %v990
      %992 = vst.msk [vmem:[%s916 + $0x7c] sm:$0xf] %vm226, %v781
      %v993 = vld [vmem:[%s916 + $0x80] sm:$0x1]
      %v994 = vsel %vm237, %v782, %v993
      %995 = vst [vmem:[%s916 + $0x80] sm:$0x1] %v994
      %v996 = vld [vmem:[%s916 + $0x84] sm:$0xf]
      %v997 = vsel %vm918, %v789, %v996
      %998 = vst [vmem:[%s916 + $0x84] sm:$0xf] %v997
      %999 = vst.msk [vmem:[%s916 + $0x88] sm:$0xf] %vm226, %v798
      %v1000 = vld [vmem:[%s916 + $0x8c] sm:$0x1]
      %v1001 = vsel %vm237, %v799, %v1000
      %1002 = vst [vmem:[%s916 + $0x8c] sm:$0x1] %v1001
      %v1003 = vld [vmem:[%s916 + $0x90] sm:$0xf]
      %v1004 = vsel %vm918, %v806, %v1003
      %1005 = vst [vmem:[%s916 + $0x90] sm:$0xf] %v1004
      %1006 = vst.msk [vmem:[%s916 + $0x94] sm:$0xf] %vm226, %v815
      %v1007 = vld [vmem:[%s916 + $0x98] sm:$0x1]
      %v1008 = vsel %vm237, %v816, %v1007
      %1009 = vst [vmem:[%s916 + $0x98] sm:$0x1] %v1008
      %v1010 = vld [vmem:[%s916 + $0x9c] sm:$0xf]
      %v1011 = vsel %vm918, %v823, %v1010
      %1012 = vst [vmem:[%s916 + $0x9c] sm:$0xf] %v1011
      %1013 = vst.msk [vmem:[%s916 + $0xa0] sm:$0xf] %vm226, %v832
      %v1014 = vld [vmem:[%s916 + $0xa4] sm:$0x1]
      %v1015 = vsel %vm237, %v833, %v1014
      %1016 = vst [vmem:[%s916 + $0xa4] sm:$0x1] %v1015
      %v1017 = vld [vmem:[%s916 + $0xa8] sm:$0xf]
      %v1018 = vsel %vm918, %v840, %v1017
      %1019 = vst [vmem:[%s916 + $0xa8] sm:$0xf] %v1018
      %1020 = vst.msk [vmem:[%s916 + $0xac] sm:$0xf] %vm226, %v849
      %v1021 = vld [vmem:[%s916 + $0xb0] sm:$0x1]
      %v1022 = vsel %vm237, %v850, %v1021
      %1023 = vst [vmem:[%s916 + $0xb0] sm:$0x1] %v1022
      %v1024 = vld [vmem:[%s916 + $0xb4] sm:$0xf]
      %v1025 = vsel %vm918, %v857, %v1024
      %1026 = vst [vmem:[%s916 + $0xb4] sm:$0xf] %v1025
      %1027 = vst.msk [vmem:[%s916 + $0xb8] sm:$0xf] %vm226, %v866
      %v1028 = vld [vmem:[%s916 + $0xbc] sm:$0x1]
      %v1029 = vsel %vm237, %v867, %v1028
      %1030 = vst [vmem:[%s916 + $0xbc] sm:$0x1] %v1029
      %v1031 = vld [vmem:[#allocation2] sm:$0xf]
      %v1032 = vld [vmem:[#allocation2 + $0x4] sm:$0xf]
      %v1033 = vld [vmem:[#allocation2 + $0xc] sm:$0xf]
      %v1034 = vld [vmem:[#allocation2 + $0x10] sm:$0xf]
      %v1035 = vld [vmem:[#allocation2 + $0x18] sm:$0xf]
      %v1036 = vld [vmem:[#allocation2 + $0x1c] sm:$0xf]
      %v1037 = vld [vmem:[#allocation2 + $0x24] sm:$0xf]
      %v1038 = vld [vmem:[#allocation2 + $0x28] sm:$0xf]
      %v1039 = vld [vmem:[#allocation2 + $0x30] sm:$0xf]
      %v1040 = vld [vmem:[#allocation2 + $0x34] sm:$0xf]
      %v1041 = vld [vmem:[#allocation2 + $0x3c] sm:$0xf]
      %v1042 = vld [vmem:[#allocation2 + $0x40] sm:$0xf]
      %v1043 = vld [vmem:[#allocation2 + $0x48] sm:$0xf]
      %v1044 = vld [vmem:[#allocation2 + $0x4c] sm:$0xf]
      %v1045 = vld [vmem:[#allocation2 + $0x54] sm:$0xf]
      %v1046 = vld [vmem:[#allocation2 + $0x58] sm:$0xf]
      %v1047 = vld [vmem:[#allocation2 + $0x60] sm:$0xf]
      %v1048 = vld [vmem:[#allocation2 + $0x64] sm:$0xf]
      %v1049 = vld [vmem:[#allocation2 + $0x6c] sm:$0xf]
      %v1050 = vld [vmem:[#allocation2 + $0x70] sm:$0xf]
      %v1051 = vld [vmem:[#allocation2 + $0x78] sm:$0xf]
      %v1052 = vld [vmem:[#allocation2 + $0x7c] sm:$0xf]
      %v1053 = vld [vmem:[#allocation2 + $0x84] sm:$0xf]
      %v1054 = vld [vmem:[#allocation2 + $0x88] sm:$0xf]
      %v1055 = vld [vmem:[#allocation2 + $0x90] sm:$0xf]
      %v1056 = vld [vmem:[#allocation2 + $0x94] sm:$0xf]
      %v1057 = vld [vmem:[#allocation2 + $0x9c] sm:$0xf]
      %v1058 = vld [vmem:[#allocation2 + $0xa0] sm:$0xf]
      %v1059 = vld [vmem:[#allocation2 + $0xa8] sm:$0xf]
      %v1060 = vld [vmem:[#allocation2 + $0xac] sm:$0xf]
      %v1061 = vld [vmem:[#allocation2 + $0xb4] sm:$0xf]
      %v1062 = vld [vmem:[#allocation2 + $0xb8] sm:$0xf]
      %v1063 = vld [vmem:[#allocation2 + $0xc0] sm:$0xf]
      %v1064 = vld [vmem:[#allocation2 + $0xc4] sm:$0xf]
      %v1065 = vld [vmem:[#allocation2 + $0xcc] sm:$0xf]
      %v1066 = vld [vmem:[#allocation2 + $0xd0] sm:$0xf]
      %v1067 = vld [vmem:[#allocation2 + $0x8] sm:$0x1]
      %v1068 = vld [vmem:[#allocation2 + $0x14] sm:$0x1]
      %v1069 = vld [vmem:[#allocation2 + $0x20] sm:$0x1]
      %v1070 = vld [vmem:[#allocation2 + $0x2c] sm:$0x1]
      %v1071 = vld [vmem:[#allocation2 + $0x38] sm:$0x1]
      %v1072 = vld [vmem:[#allocation2 + $0x44] sm:$0x1]
      %v1073 = vld [vmem:[#allocation2 + $0x50] sm:$0x1]
      %v1074 = vld [vmem:[#allocation2 + $0x5c] sm:$0x1]
      %v1075 = vld [vmem:[#allocation2 + $0x68] sm:$0x1]
      %v1076 = vld [vmem:[#allocation2 + $0x74] sm:$0x1]
      %v1077 = vld [vmem:[#allocation2 + $0x80] sm:$0x1]
      %v1078 = vld [vmem:[#allocation2 + $0x8c] sm:$0x1]
      %v1079 = vld [vmem:[#allocation2 + $0x98] sm:$0x1]
      %v1080 = vld [vmem:[#allocation2 + $0xa4] sm:$0x1]
      %v1081 = vld [vmem:[#allocation2 + $0xb0] sm:$0x1]
      %v1082 = vld [vmem:[#allocation2 + $0xbc] sm:$0x1]
      %v1083 = vld [vmem:[#allocation2 + $0xc8] sm:$0x1]
      %v1084 = vld [vmem:[#allocation2 + $0xd4] sm:$0x1]
      %vm1085 = vsmask.f32 3328
      %vm1086 = vsmask.f32 7440
      %vm1087 = vmor %vm1085, %vm1086
      %v1089 = vshrl.u32 %v1031, 16
      %v1091 = vrot.slane %v1089, 4
      %v1092 = vshll.u32 %v1031, 16
      %v1094 = vrot.slane %v1092, 5
      %v1095 = vor.u32 %v1091, %v1094
      %v1096 = vrot.slane %v1095, 4
      %v1098 = vshll.u32 %v1032, 16
      %v1100 = vrot.slane %v1098, 5
      %v1101 = vsel %vm1087, %v1096, %v1100
      %v1102 = vshrl.u32 %v1032, 16
      %v1104 = vrot.slane %v1102, 4
      %v1105 = vor.u32 %v1104, %v1100
      %v1106 = vrot.slane %v1105, 4
      %v1108 = vshll.u32 %v1067, 16
      %v1110 = vrot.slane %v1108, 5
      %v1111 = vsel %vm1087, %v1106, %v1110
      %v1113 = vshrl.u32 %v1033, 16
      %v1115 = vrot.slane %v1113, 4
      %v1116 = vshll.u32 %v1033, 16
      %v1118 = vrot.slane %v1116, 5
      %v1119 = vor.u32 %v1115, %v1118
      %v1120 = vrot.slane %v1119, 4
      %v1122 = vshll.u32 %v1034, 16
      %v1124 = vrot.slane %v1122, 5
      %v1125 = vsel %vm1087, %v1120, %v1124
      %v1126 = vshrl.u32 %v1034, 16
      %v1128 = vrot.slane %v1126, 4
      %v1129 = vor.u32 %v1128, %v1124
      %v1130 = vrot.slane %v1129, 4
      %v1132 = vshll.u32 %v1068, 16
      %v1134 = vrot.slane %v1132, 5
      %v1135 = vsel %vm1087, %v1130, %v1134
      %v1137 = vshrl.u32 %v1035, 16
      %v1139 = vrot.slane %v1137, 4
      %v1140 = vshll.u32 %v1035, 16
      %v1142 = vrot.slane %v1140, 5
      %v1143 = vor.u32 %v1139, %v1142
      %v1144 = vrot.slane %v1143, 4
      %v1146 = vshll.u32 %v1036, 16
      %v1148 = vrot.slane %v1146, 5
      %v1149 = vsel %vm1087, %v1144, %v1148
      %v1150 = vshrl.u32 %v1036, 16
      %v1152 = vrot.slane %v1150, 4
      %v1153 = vor.u32 %v1152, %v1148
      %v1154 = vrot.slane %v1153, 4
      %v1156 = vshll.u32 %v1069, 16
      %v1158 = vrot.slane %v1156, 5
      %v1159 = vsel %vm1087, %v1154, %v1158
      %v1161 = vshrl.u32 %v1037, 16
      %v1163 = vrot.slane %v1161, 4
      %v1164 = vshll.u32 %v1037, 16
      %v1166 = vrot.slane %v1164, 5
      %v1167 = vor.u32 %v1163, %v1166
      %v1168 = vrot.slane %v1167, 4
      %v1170 = vshll.u32 %v1038, 16
      %v1172 = vrot.slane %v1170, 5
      %v1173 = vsel %vm1087, %v1168, %v1172
      %v1174 = vshrl.u32 %v1038, 16
      %v1176 = vrot.slane %v1174, 4
      %v1177 = vor.u32 %v1176, %v1172
      %v1178 = vrot.slane %v1177, 4
      %v1180 = vshll.u32 %v1070, 16
      %v1182 = vrot.slane %v1180, 5
      %v1183 = vsel %vm1087, %v1178, %v1182
      %v1185 = vshrl.u32 %v1039, 16
      %v1187 = vrot.slane %v1185, 4
      %v1188 = vshll.u32 %v1039, 16
      %v1190 = vrot.slane %v1188, 5
      %v1191 = vor.u32 %v1187, %v1190
      %v1192 = vrot.slane %v1191, 4
      %v1194 = vshll.u32 %v1040, 16
      %v1196 = vrot.slane %v1194, 5
      %v1197 = vsel %vm1087, %v1192, %v1196
      %v1198 = vshrl.u32 %v1040, 16
      %v1200 = vrot.slane %v1198, 4
      %v1201 = vor.u32 %v1200, %v1196
      %v1202 = vrot.slane %v1201, 4
      %v1204 = vshll.u32 %v1071, 16
      %v1206 = vrot.slane %v1204, 5
      %v1207 = vsel %vm1087, %v1202, %v1206
      %v1209 = vshrl.u32 %v1041, 16
      %v1211 = vrot.slane %v1209, 4
      %v1212 = vshll.u32 %v1041, 16
      %v1214 = vrot.slane %v1212, 5
      %v1215 = vor.u32 %v1211, %v1214
      %v1216 = vrot.slane %v1215, 4
      %v1218 = vshll.u32 %v1042, 16
      %v1220 = vrot.slane %v1218, 5
      %v1221 = vsel %vm1087, %v1216, %v1220
      %v1222 = vshrl.u32 %v1042, 16
      %v1224 = vrot.slane %v1222, 4
      %v1225 = vor.u32 %v1224, %v1220
      %v1226 = vrot.slane %v1225, 4
      %v1228 = vshll.u32 %v1072, 16
      %v1230 = vrot.slane %v1228, 5
      %v1231 = vsel %vm1087, %v1226, %v1230
      %v1233 = vshrl.u32 %v1043, 16
      %v1235 = vrot.slane %v1233, 4
      %v1236 = vshll.u32 %v1043, 16
      %v1238 = vrot.slane %v1236, 5
      %v1239 = vor.u32 %v1235, %v1238
      %v1240 = vrot.slane %v1239, 4
      %v1242 = vshll.u32 %v1044, 16
      %v1244 = vrot.slane %v1242, 5
      %v1245 = vsel %vm1087, %v1240, %v1244
      %v1246 = vshrl.u32 %v1044, 16
      %v1248 = vrot.slane %v1246, 4
      %v1249 = vor.u32 %v1248, %v1244
      %v1250 = vrot.slane %v1249, 4
      %v1252 = vshll.u32 %v1073, 16
      %v1254 = vrot.slane %v1252, 5
      %v1255 = vsel %vm1087, %v1250, %v1254
      %v1257 = vshrl.u32 %v1045, 16
      %v1259 = vrot.slane %v1257, 4
      %v1260 = vshll.u32 %v1045, 16
      %v1262 = vrot.slane %v1260, 5
      %v1263 = vor.u32 %v1259, %v1262
      %v1264 = vrot.slane %v1263, 4
      %v1266 = vshll.u32 %v1046, 16
      %v1268 = vrot.slane %v1266, 5
      %v1269 = vsel %vm1087, %v1264, %v1268
      %v1270 = vshrl.u32 %v1046, 16
      %v1272 = vrot.slane %v1270, 4
      %v1273 = vor.u32 %v1272, %v1268
      %v1274 = vrot.slane %v1273, 4
      %v1276 = vshll.u32 %v1074, 16
      %v1278 = vrot.slane %v1276, 5
      %v1279 = vsel %vm1087, %v1274, %v1278
      %v1281 = vshrl.u32 %v1047, 16
      %v1283 = vrot.slane %v1281, 4
      %v1284 = vshll.u32 %v1047, 16
      %v1286 = vrot.slane %v1284, 5
      %v1287 = vor.u32 %v1283, %v1286
      %v1288 = vrot.slane %v1287, 4
      %v1290 = vshll.u32 %v1048, 16
      %v1292 = vrot.slane %v1290, 5
      %v1293 = vsel %vm1087, %v1288, %v1292
      %v1294 = vshrl.u32 %v1048, 16
      %v1296 = vrot.slane %v1294, 4
      %v1297 = vor.u32 %v1296, %v1292
      %v1298 = vrot.slane %v1297, 4
      %v1300 = vshll.u32 %v1075, 16
      %v1302 = vrot.slane %v1300, 5
      %v1303 = vsel %vm1087, %v1298, %v1302
      %v1305 = vshrl.u32 %v1049, 16
      %v1307 = vrot.slane %v1305, 4
      %v1308 = vshll.u32 %v1049, 16
      %v1310 = vrot.slane %v1308, 5
      %v1311 = vor.u32 %v1307, %v1310
      %v1312 = vrot.slane %v1311, 4
      %v1314 = vshll.u32 %v1050, 16
      %v1316 = vrot.slane %v1314, 5
      %v1317 = vsel %vm1087, %v1312, %v1316
      %v1318 = vshrl.u32 %v1050, 16
      %v1320 = vrot.slane %v1318, 4
      %v1321 = vor.u32 %v1320, %v1316
      %v1322 = vrot.slane %v1321, 4
      %v1324 = vshll.u32 %v1076, 16
      %v1326 = vrot.slane %v1324, 5
      %v1327 = vsel %vm1087, %v1322, %v1326
      %v1329 = vshrl.u32 %v1051, 16
      %v1331 = vrot.slane %v1329, 4
      %v1332 = vshll.u32 %v1051, 16
      %v1334 = vrot.slane %v1332, 5
      %v1335 = vor.u32 %v1331, %v1334
      %v1336 = vrot.slane %v1335, 4
      %v1338 = vshll.u32 %v1052, 16
      %v1340 = vrot.slane %v1338, 5
      %v1341 = vsel %vm1087, %v1336, %v1340
      %v1342 = vshrl.u32 %v1052, 16
      %v1344 = vrot.slane %v1342, 4
      %v1345 = vor.u32 %v1344, %v1340
      %v1346 = vrot.slane %v1345, 4
      %v1348 = vshll.u32 %v1077, 16
      %v1350 = vrot.slane %v1348, 5
      %v1351 = vsel %vm1087, %v1346, %v1350
      %v1353 = vshrl.u32 %v1053, 16
      %v1355 = vrot.slane %v1353, 4
      %v1356 = vshll.u32 %v1053, 16
      %v1358 = vrot.slane %v1356, 5
      %v1359 = vor.u32 %v1355, %v1358
      %v1360 = vrot.slane %v1359, 4
      %v1362 = vshll.u32 %v1054, 16
      %v1364 = vrot.slane %v1362, 5
      %v1365 = vsel %vm1087, %v1360, %v1364
      %v1366 = vshrl.u32 %v1054, 16
      %v1368 = vrot.slane %v1366, 4
      %v1369 = vor.u32 %v1368, %v1364
      %v1370 = vrot.slane %v1369, 4
      %v1372 = vshll.u32 %v1078, 16
      %v1374 = vrot.slane %v1372, 5
      %v1375 = vsel %vm1087, %v1370, %v1374
      %v1377 = vshrl.u32 %v1055, 16
      %v1379 = vrot.slane %v1377, 4
      %v1380 = vshll.u32 %v1055, 16
      %v1382 = vrot.slane %v1380, 5
      %v1383 = vor.u32 %v1379, %v1382
      %v1384 = vrot.slane %v1383, 4
      %v1386 = vshll.u32 %v1056, 16
      %v1388 = vrot.slane %v1386, 5
      %v1389 = vsel %vm1087, %v1384, %v1388
      %v1390 = vshrl.u32 %v1056, 16
      %v1392 = vrot.slane %v1390, 4
      %v1393 = vor.u32 %v1392, %v1388
      %v1394 = vrot.slane %v1393, 4
      %v1396 = vshll.u32 %v1079, 16
      %v1398 = vrot.slane %v1396, 5
      %v1399 = vsel %vm1087, %v1394, %v1398
      %v1401 = vshrl.u32 %v1057, 16
      %v1403 = vrot.slane %v1401, 4
      %v1404 = vshll.u32 %v1057, 16
      %v1406 = vrot.slane %v1404, 5
      %v1407 = vor.u32 %v1403, %v1406
      %v1408 = vrot.slane %v1407, 4
      %v1410 = vshll.u32 %v1058, 16
      %v1412 = vrot.slane %v1410, 5
      %v1413 = vsel %vm1087, %v1408, %v1412
      %v1414 = vshrl.u32 %v1058, 16
      %v1416 = vrot.slane %v1414, 4
      %v1417 = vor.u32 %v1416, %v1412
      %v1418 = vrot.slane %v1417, 4
      %v1420 = vshll.u32 %v1080, 16
      %v1422 = vrot.slane %v1420, 5
      %v1423 = vsel %vm1087, %v1418, %v1422
      %v1425 = vshrl.u32 %v1059, 16
      %v1427 = vrot.slane %v1425, 4
      %v1428 = vshll.u32 %v1059, 16
      %v1430 = vrot.slane %v1428, 5
      %v1431 = vor.u32 %v1427, %v1430
      %v1432 = vrot.slane %v1431, 4
      %v1434 = vshll.u32 %v1060, 16
      %v1436 = vrot.slane %v1434, 5
      %v1437 = vsel %vm1087, %v1432, %v1436
      %v1438 = vshrl.u32 %v1060, 16
      %v1440 = vrot.slane %v1438, 4
      %v1441 = vor.u32 %v1440, %v1436
      %v1442 = vrot.slane %v1441, 4
      %v1444 = vshll.u32 %v1081, 16
      %v1446 = vrot.slane %v1444, 5
      %v1447 = vsel %vm1087, %v1442, %v1446
      %v1449 = vshrl.u32 %v1061, 16
      %v1451 = vrot.slane %v1449, 4
      %v1452 = vshll.u32 %v1061, 16
      %v1454 = vrot.slane %v1452, 5
      %v1455 = vor.u32 %v1451, %v1454
      %v1456 = vrot.slane %v1455, 4
      %v1458 = vshll.u32 %v1062, 16
      %v1460 = vrot.slane %v1458, 5
      %v1461 = vsel %vm1087, %v1456, %v1460
      %v1462 = vshrl.u32 %v1062, 16
      %v1464 = vrot.slane %v1462, 4
      %v1465 = vor.u32 %v1464, %v1460
      %v1466 = vrot.slane %v1465, 4
      %v1468 = vshll.u32 %v1082, 16
      %v1470 = vrot.slane %v1468, 5
      %v1471 = vsel %vm1087, %v1466, %v1470
      %v1473 = vshrl.u32 %v1063, 16
      %v1475 = vrot.slane %v1473, 4
      %v1476 = vshll.u32 %v1063, 16
      %v1478 = vrot.slane %v1476, 5
      %v1479 = vor.u32 %v1475, %v1478
      %v1480 = vrot.slane %v1479, 4
      %v1482 = vshll.u32 %v1064, 16
      %v1484 = vrot.slane %v1482, 5
      %v1485 = vsel %vm1087, %v1480, %v1484
      %v1486 = vshrl.u32 %v1064, 16
      %v1488 = vrot.slane %v1486, 4
      %v1489 = vor.u32 %v1488, %v1484
      %v1490 = vrot.slane %v1489, 4
      %v1492 = vshll.u32 %v1083, 16
      %v1494 = vrot.slane %v1492, 5
      %v1495 = vsel %vm1087, %v1490, %v1494
      %v1497 = vshrl.u32 %v1065, 16
      %v1499 = vrot.slane %v1497, 4
      %v1500 = vshll.u32 %v1065, 16
      %v1502 = vrot.slane %v1500, 5
      %v1503 = vor.u32 %v1499, %v1502
      %v1504 = vrot.slane %v1503, 4
      %v1506 = vshll.u32 %v1066, 16
      %v1508 = vrot.slane %v1506, 5
      %v1509 = vsel %vm1087, %v1504, %v1508
      %v1510 = vshrl.u32 %v1066, 16
      %v1512 = vrot.slane %v1510, 4
      %v1513 = vor.u32 %v1512, %v1508
      %v1514 = vrot.slane %v1513, 4
      %v1516 = vshll.u32 %v1084, 16
      %v1518 = vrot.slane %v1516, 5
      %v1519 = vsel %vm1087, %v1514, %v1518
      %v1520 = vld [vmem:[#allocation2] sm:$0xe]
      %v1521 = vld [vmem:[#allocation2 + $0xc] sm:$0xe]
      %v1522 = vld [vmem:[#allocation2 + $0x18] sm:$0xe]
      %v1523 = vld [vmem:[#allocation2 + $0x24] sm:$0xe]
      %v1524 = vld [vmem:[#allocation2 + $0x30] sm:$0xe]
      %v1525 = vld [vmem:[#allocation2 + $0x3c] sm:$0xe]
      %v1526 = vld [vmem:[#allocation2 + $0x48] sm:$0xe]
      %v1527 = vld [vmem:[#allocation2 + $0x54] sm:$0xe]
      %v1528 = vld [vmem:[#allocation2 + $0x60] sm:$0xe]
      %v1529 = vld [vmem:[#allocation2 + $0x6c] sm:$0xe]
      %v1530 = vld [vmem:[#allocation2 + $0x78] sm:$0xe]
      %v1531 = vld [vmem:[#allocation2 + $0x84] sm:$0xe]
      %v1532 = vld [vmem:[#allocation2 + $0x90] sm:$0xe]
      %v1533 = vld [vmem:[#allocation2 + $0x9c] sm:$0xe]
      %v1534 = vld [vmem:[#allocation2 + $0xa8] sm:$0xe]
      %v1535 = vld [vmem:[#allocation2 + $0xb4] sm:$0xe]
      %v1536 = vld [vmem:[#allocation2 + $0xc0] sm:$0xe]
      %v1537 = vld [vmem:[#allocation2 + $0xcc] sm:$0xe]
      %vm1592 = vcmask 1042432
      %vm1593 = vcmask 1046532
      %vm1594 = vmor %vm1592, %vm1593
      %v1595 = vrot.slane %v1520, 5
      %v1596 = vrot.slane %v1595, 4
      %v1597 = vrot.slane %v1032, 5
      %v1598 = vsel %vm1594, %v1596, %v1597
      %v1599 = vrot.slane %v1597, 4
      %v1600 = vrot.slane %v1067, 5
      %v1601 = vsel %vm1594, %v1599, %v1600
      %v1602 = vrot.slane %v1521, 5
      %v1603 = vrot.slane %v1602, 4
      %v1604 = vrot.slane %v1034, 5
      %v1605 = vsel %vm1594, %v1603, %v1604
      %v1606 = vrot.slane %v1604, 4
      %v1607 = vrot.slane %v1068, 5
      %v1608 = vsel %vm1594, %v1606, %v1607
      %v1609 = vrot.slane %v1522, 5
      %v1610 = vrot.slane %v1609, 4
      %v1611 = vrot.slane %v1036, 5
      %v1612 = vsel %vm1594, %v1610, %v1611
      %v1613 = vrot.slane %v1611, 4
      %v1614 = vrot.slane %v1069, 5
      %v1615 = vsel %vm1594, %v1613, %v1614
      %v1616 = vrot.slane %v1523, 5
      %v1617 = vrot.slane %v1616, 4
      %v1618 = vrot.slane %v1038, 5
      %v1619 = vsel %vm1594, %v1617, %v1618
      %v1620 = vrot.slane %v1618, 4
      %v1621 = vrot.slane %v1070, 5
      %v1622 = vsel %vm1594, %v1620, %v1621
      %v1623 = vrot.slane %v1524, 5
      %v1624 = vrot.slane %v1623, 4
      %v1625 = vrot.slane %v1040, 5
      %v1626 = vsel %vm1594, %v1624, %v1625
      %v1627 = vrot.slane %v1625, 4
      %v1628 = vrot.slane %v1071, 5
      %v1629 = vsel %vm1594, %v1627, %v1628
      %v1630 = vrot.slane %v1525, 5
      %v1631 = vrot.slane %v1630, 4
      %v1632 = vrot.slane %v1042, 5
      %v1633 = vsel %vm1594, %v1631, %v1632
      %v1634 = vrot.slane %v1632, 4
      %v1635 = vrot.slane %v1072, 5
      %v1636 = vsel %vm1594, %v1634, %v1635
      %v1637 = vrot.slane %v1526, 5
      %v1638 = vrot.slane %v1637, 4
      %v1639 = vrot.slane %v1044, 5
      %v1640 = vsel %vm1594, %v1638, %v1639
      %v1641 = vrot.slane %v1639, 4
      %v1642 = vrot.slane %v1073, 5
      %v1643 = vsel %vm1594, %v1641, %v1642
      %v1644 = vrot.slane %v1527, 5
      %v1645 = vrot.slane %v1644, 4
      %v1646 = vrot.slane %v1046, 5
      %v1647 = vsel %vm1594, %v1645, %v1646
      %v1648 = vrot.slane %v1646, 4
      %v1649 = vrot.slane %v1074, 5
      %v1650 = vsel %vm1594, %v1648, %v1649
      %v1651 = vrot.slane %v1528, 5
      %v1652 = vrot.slane %v1651, 4
      %v1653 = vrot.slane %v1048, 5
      %v1654 = vsel %vm1594, %v1652, %v1653
      %v1655 = vrot.slane %v1653, 4
      %v1656 = vrot.slane %v1075, 5
      %v1657 = vsel %vm1594, %v1655, %v1656
      %v1658 = vrot.slane %v1529, 5
      %v1659 = vrot.slane %v1658, 4
      %v1660 = vrot.slane %v1050, 5
      %v1661 = vsel %vm1594, %v1659, %v1660
      %v1662 = vrot.slane %v1660, 4
      %v1663 = vrot.slane %v1076, 5
      %v1664 = vsel %vm1594, %v1662, %v1663
      %v1665 = vrot.slane %v1530, 5
      %v1666 = vrot.slane %v1665, 4
      %v1667 = vrot.slane %v1052, 5
      %v1668 = vsel %vm1594, %v1666, %v1667
      %v1669 = vrot.slane %v1667, 4
      %v1670 = vrot.slane %v1077, 5
      %v1671 = vsel %vm1594, %v1669, %v1670
      %v1672 = vrot.slane %v1531, 5
      %v1673 = vrot.slane %v1672, 4
      %v1674 = vrot.slane %v1054, 5
      %v1675 = vsel %vm1594, %v1673, %v1674
      %v1676 = vrot.slane %v1674, 4
      %v1677 = vrot.slane %v1078, 5
      %v1678 = vsel %vm1594, %v1676, %v1677
      %v1679 = vrot.slane %v1532, 5
      %v1680 = vrot.slane %v1679, 4
      %v1681 = vrot.slane %v1056, 5
      %v1682 = vsel %vm1594, %v1680, %v1681
      %v1683 = vrot.slane %v1681, 4
      %v1684 = vrot.slane %v1079, 5
      %v1685 = vsel %vm1594, %v1683, %v1684
      %v1686 = vrot.slane %v1533, 5
      %v1687 = vrot.slane %v1686, 4
      %v1688 = vrot.slane %v1058, 5
      %v1689 = vsel %vm1594, %v1687, %v1688
      %v1690 = vrot.slane %v1688, 4
      %v1691 = vrot.slane %v1080, 5
      %v1692 = vsel %vm1594, %v1690, %v1691
      %v1693 = vrot.slane %v1534, 5
      %v1694 = vrot.slane %v1693, 4
      %v1695 = vrot.slane %v1060, 5
      %v1696 = vsel %vm1594, %v1694, %v1695
      %v1697 = vrot.slane %v1695, 4
      %v1698 = vrot.slane %v1081, 5
      %v1699 = vsel %vm1594, %v1697, %v1698
      %v1700 = vrot.slane %v1535, 5
      %v1701 = vrot.slane %v1700, 4
      %v1702 = vrot.slane %v1062, 5
      %v1703 = vsel %vm1594, %v1701, %v1702
      %v1704 = vrot.slane %v1702, 4
      %v1705 = vrot.slane %v1082, 5
      %v1706 = vsel %vm1594, %v1704, %v1705
      %v1707 = vrot.slane %v1536, 5
      %v1708 = vrot.slane %v1707, 4
      %v1709 = vrot.slane %v1064, 5
      %v1710 = vsel %vm1594, %v1708, %v1709
      %v1711 = vrot.slane %v1709, 4
      %v1712 = vrot.slane %v1083, 5
      %v1713 = vsel %vm1594, %v1711, %v1712
      %v1714 = vrot.slane %v1537, 5
      %v1715 = vrot.slane %v1714, 4
      %v1716 = vrot.slane %v1066, 5
      %v1717 = vsel %vm1594, %v1715, %v1716
      %v1718 = vrot.slane %v1716, 4
      %v1719 = vrot.slane %v1084, 5
      %v1720 = vsel %vm1594, %v1718, %v1719
      %v1737 = vunpack.c.l.b16 %v1031
      %v1738 = vunpack.c.l.b16 %v1032
      %v1739 = vunpack.c.l.b16 %v1033
      %v1740 = vunpack.c.l.b16 %v1034
      %v1741 = vunpack.c.l.b16 %v1035
      %v1742 = vunpack.c.l.b16 %v1036
      %v1743 = vunpack.c.l.b16 %v1037
      %v1744 = vunpack.c.l.b16 %v1038
      %v1745 = vunpack.c.l.b16 %v1039
      %v1746 = vunpack.c.l.b16 %v1040
      %v1747 = vunpack.c.l.b16 %v1041
      %v1748 = vunpack.c.l.b16 %v1042
      %v1749 = vunpack.c.l.b16 %v1043
      %v1750 = vunpack.c.l.b16 %v1044
      %v1751 = vunpack.c.l.b16 %v1045
      %v1752 = vunpack.c.l.b16 %v1046
      %v1753 = vunpack.c.l.b16 %v1047
      %v1754 = vunpack.c.l.b16 %v1048
      %v1755 = vunpack.c.l.b16 %v1049
      %v1756 = vunpack.c.l.b16 %v1050
      %v1757 = vunpack.c.l.b16 %v1051
      %v1758 = vunpack.c.l.b16 %v1052
      %v1759 = vunpack.c.l.b16 %v1053
      %v1760 = vunpack.c.l.b16 %v1054
      %v1761 = vunpack.c.l.b16 %v1055
      %v1762 = vunpack.c.l.b16 %v1056
      %v1763 = vunpack.c.l.b16 %v1057
      %v1764 = vunpack.c.l.b16 %v1058
      %v1765 = vunpack.c.l.b16 %v1059
      %v1766 = vunpack.c.l.b16 %v1060
      %v1767 = vunpack.c.l.b16 %v1061
      %v1768 = vunpack.c.l.b16 %v1062
      %v1769 = vpack.c.b16 %v1738, %v1737
      %v1770 = vpack.c.b16 %v1740, %v1739
      %v1771 = vpack.c.b16 %v1742, %v1741
      %v1772 = vpack.c.b16 %v1744, %v1743
      %v1773 = vpack.c.b16 %v1746, %v1745
      %v1774 = vpack.c.b16 %v1748, %v1747
      %v1775 = vpack.c.b16 %v1750, %v1749
      %v1776 = vpack.c.b16 %v1752, %v1751
      %v1777 = vpack.c.b16 %v1754, %v1753
      %v1778 = vpack.c.b16 %v1756, %v1755
      %v1779 = vpack.c.b16 %v1758, %v1757
      %v1780 = vpack.c.b16 %v1760, %v1759
      %v1781 = vpack.c.b16 %v1762, %v1761
      %v1782 = vpack.c.b16 %v1764, %v1763
      %v1783 = vpack.c.b16 %v1766, %v1765
      %v1784 = vpack.c.b16 %v1768, %v1767
      %v1786 = vunpack.c.l.b16 %v1063
      %v1787 = vunpack.c.l.b16 %v1064
      %v1788 = vpack.c.b16 %v1787, %v1786
      %1789 = vrot.lane.b32.xlu0 %v1770, 4
      %v1790 = vpop.permute.xlu0 %1789
      %1791 = vrot.lane.b32.xlu0 %v1771, 4
      %v1792 = vpop.permute.xlu0 %1791
      %1793 = vrot.lane.b32.xlu0 %v1772, 4
      %v1794 = vpop.permute.xlu0 %1793
      %1795 = vrot.lane.b32.xlu0 %v1773, 4
      %v1796 = vpop.permute.xlu0 %1795
      %1797 = vrot.lane.b32.xlu0 %v1774, 4
      %v1798 = vpop.permute.xlu0 %1797
      %1799 = vrot.lane.b32.xlu0 %v1775, 4
      %v1800 = vpop.permute.xlu0 %1799
      %1801 = vrot.lane.b32.xlu0 %v1776, 4
      %v1802 = vpop.permute.xlu0 %1801
      %1803 = vrot.lane.b32.xlu0 %v1777, 4
      %v1804 = vpop.permute.xlu0 %1803
      %1805 = vrot.lane.b32.xlu0 %v1778, 4
      %v1806 = vpop.permute.xlu0 %1805
      %1807 = vrot.lane.b32.xlu0 %v1779, 4
      %v1808 = vpop.permute.xlu0 %1807
      %1809 = vrot.lane.b32.xlu0 %v1780, 4
      %v1810 = vpop.permute.xlu0 %1809
      %1811 = vrot.lane.b32.xlu0 %v1781, 4
      %v1812 = vpop.permute.xlu0 %1811
      %1813 = vrot.lane.b32.xlu0 %v1782, 4
      %v1814 = vpop.permute.xlu0 %1813
      %1815 = vrot.lane.b32.xlu0 %v1783, 4
      %v1816 = vpop.permute.xlu0 %1815
      %1817 = vrot.lane.b32.xlu0 %v1784, 4
      %v1818 = vpop.permute.xlu0 %1817
      %1819 = vrot.lane.b32.xlu0 %v1788, 4
      %v1820 = vpop.permute.xlu0 %1819
      %v1822 = vunpack.c.l.b16 %v1065
      %v1823 = vunpack.c.l.b16 %v1066
      %v1824 = vpack.c.b16 %v1823, %v1822
      %1825 = vrot.lane.b32.xlu0 %v1771, 8
      %v1826 = vpop.permute.xlu0 %1825
      %1827 = vrot.lane.b32.xlu0 %v1772, 8
      %v1828 = vpop.permute.xlu0 %1827
      %1829 = vrot.lane.b32.xlu0 %v1773, 8
      %v1830 = vpop.permute.xlu0 %1829
      %1831 = vrot.lane.b32.xlu0 %v1774, 8
      %v1832 = vpop.permute.xlu0 %1831
      %1833 = vrot.lane.b32.xlu0 %v1775, 8
      %v1834 = vpop.permute.xlu0 %1833
      %1835 = vrot.lane.b32.xlu0 %v1776, 8
      %v1836 = vpop.permute.xlu0 %1835
      %1837 = vrot.lane.b32.xlu0 %v1777, 8
      %v1838 = vpop.permute.xlu0 %1837
      %1839 = vrot.lane.b32.xlu0 %v1778, 8
      %v1840 = vpop.permute.xlu0 %1839
      %1841 = vrot.lane.b32.xlu0 %v1779, 8
      %v1842 = vpop.permute.xlu0 %1841
      %1843 = vrot.lane.b32.xlu0 %v1780, 8
      %v1844 = vpop.permute.xlu0 %1843
      %1845 = vrot.lane.b32.xlu0 %v1781, 8
      %v1846 = vpop.permute.xlu0 %1845
      %1847 = vrot.lane.b32.xlu0 %v1782, 8
      %v1848 = vpop.permute.xlu0 %1847
      %1849 = vrot.lane.b32.xlu0 %v1783, 8
      %v1850 = vpop.permute.xlu0 %1849
      %1851 = vrot.lane.b32.xlu0 %v1784, 8
      %v1852 = vpop.permute.xlu0 %1851
      %1853 = vrot.lane.b32.xlu0 %v1788, 8
      %v1854 = vpop.permute.xlu0 %1853
      %1855 = vrot.lane.b32.xlu0 %v1824, 8
      %v1856 = vpop.permute.xlu0 %1855
      %v1857 = vunpack.c.l.b16 %v1101
      %v1858 = vunpack.c.l.b16 %v1111
      %v1859 = vunpack.c.l.b16 %v1125
      %v1860 = vunpack.c.l.b16 %v1135
      %v1861 = vunpack.c.l.b16 %v1149
      %v1862 = vunpack.c.l.b16 %v1159
      %v1863 = vunpack.c.l.b16 %v1173
      %v1864 = vunpack.c.l.b16 %v1183
      %v1865 = vunpack.c.l.b16 %v1197
      %v1866 = vunpack.c.l.b16 %v1207
      %v1867 = vunpack.c.l.b16 %v1221
      %v1868 = vunpack.c.l.b16 %v1231
      %v1869 = vunpack.c.l.b16 %v1245
      %v1870 = vunpack.c.l.b16 %v1255
      %v1871 = vunpack.c.l.b16 %v1269
      %v1872 = vunpack.c.l.b16 %v1279
      %v1873 = vunpack.c.l.b16 %v1293
      %v1874 = vunpack.c.l.b16 %v1303
      %v1875 = vunpack.c.l.b16 %v1317
      %v1876 = vunpack.c.l.b16 %v1327
      %v1877 = vunpack.c.l.b16 %v1341
      %v1878 = vunpack.c.l.b16 %v1351
      %v1879 = vunpack.c.l.b16 %v1365
      %v1880 = vunpack.c.l.b16 %v1375
      %v1881 = vunpack.c.l.b16 %v1389
      %v1882 = vunpack.c.l.b16 %v1399
      %v1883 = vunpack.c.l.b16 %v1413
      %v1884 = vunpack.c.l.b16 %v1423
      %v1885 = vunpack.c.l.b16 %v1437
      %v1886 = vunpack.c.l.b16 %v1447
      %v1887 = vunpack.c.l.b16 %v1461
      %v1888 = vunpack.c.l.b16 %v1471
      %v1889 = vpack.c.b16 %v1858, %v1857
      %v1890 = vpack.c.b16 %v1860, %v1859
      %v1891 = vpack.c.b16 %v1862, %v1861
      %v1892 = vpack.c.b16 %v1864, %v1863
      %v1893 = vpack.c.b16 %v1866, %v1865
      %v1894 = vpack.c.b16 %v1868, %v1867
      %v1895 = vpack.c.b16 %v1870, %v1869
      %v1896 = vpack.c.b16 %v1872, %v1871
      %v1897 = vpack.c.b16 %v1874, %v1873
      %v1898 = vpack.c.b16 %v1876, %v1875
      %v1899 = vpack.c.b16 %v1878, %v1877
      %v1900 = vpack.c.b16 %v1880, %v1879
      %v1901 = vpack.c.b16 %v1882, %v1881
      %v1902 = vpack.c.b16 %v1884, %v1883
      %v1903 = vpack.c.b16 %v1886, %v1885
      %v1904 = vpack.c.b16 %v1888, %v1887
      %1905 = vrot.lane.b32.xlu0 %v1889, 12
      %v1906 = vpop.permute.xlu0 %1905
      %1907 = vrot.lane.b32.xlu0 %v1890, 12
      %v1908 = vpop.permute.xlu0 %1907
      %1909 = vrot.lane.b32.xlu0 %v1891, 12
      %v1910 = vpop.permute.xlu0 %1909
      %1911 = vrot.lane.b32.xlu0 %v1892, 12
      %v1912 = vpop.permute.xlu0 %1911
      %1913 = vrot.lane.b32.xlu0 %v1893, 12
      %v1914 = vpop.permute.xlu0 %1913
      %1915 = vrot.lane.b32.xlu0 %v1894, 12
      %v1916 = vpop.permute.xlu0 %1915
      %1917 = vrot.lane.b32.xlu0 %v1895, 12
      %v1918 = vpop.permute.xlu0 %1917
      %1919 = vrot.lane.b32.xlu0 %v1896, 12
      %v1920 = vpop.permute.xlu0 %1919
      %1921 = vrot.lane.b32.xlu0 %v1897, 12
      %v1922 = vpop.permute.xlu0 %1921
      %1923 = vrot.lane.b32.xlu0 %v1898, 12
      %v1924 = vpop.permute.xlu0 %1923
      %1925 = vrot.lane.b32.xlu0 %v1899, 12
      %v1926 = vpop.permute.xlu0 %1925
      %1927 = vrot.lane.b32.xlu0 %v1900, 12
      %v1928 = vpop.permute.xlu0 %1927
      %1929 = vrot.lane.b32.xlu0 %v1901, 12
      %v1930 = vpop.permute.xlu0 %1929
      %1931 = vrot.lane.b32.xlu0 %v1902, 12
      %v1932 = vpop.permute.xlu0 %1931
      %1933 = vrot.lane.b32.xlu0 %v1903, 12
      %v1934 = vpop.permute.xlu0 %1933
      %1935 = vrot.lane.b32.xlu0 %v1904, 12
      %v1936 = vpop.permute.xlu0 %1935
      %v1937 = vunpack.c.l.b16 %v1485
      %v1938 = vunpack.c.l.b16 %v1495
      %v1939 = vpack.c.b16 %v1938, %v1937
      %1940 = vrot.lane.b32.xlu0 %v1890, 16
      %v1941 = vpop.permute.xlu0 %1940
      %1942 = vrot.lane.b32.xlu0 %v1891, 16
      %v1943 = vpop.permute.xlu0 %1942
      %1944 = vrot.lane.b32.xlu0 %v1892, 16
      %v1945 = vpop.permute.xlu0 %1944
      %1946 = vrot.lane.b32.xlu0 %v1893, 16
      %v1947 = vpop.permute.xlu0 %1946
      %1948 = vrot.lane.b32.xlu0 %v1894, 16
      %v1949 = vpop.permute.xlu0 %1948
      %1950 = vrot.lane.b32.xlu0 %v1895, 16
      %v1951 = vpop.permute.xlu0 %1950
      %1952 = vrot.lane.b32.xlu0 %v1896, 16
      %v1953 = vpop.permute.xlu0 %1952
      %1954 = vrot.lane.b32.xlu0 %v1897, 16
      %v1955 = vpop.permute.xlu0 %1954
      %1956 = vrot.lane.b32.xlu0 %v1898, 16
      %v1957 = vpop.permute.xlu0 %1956
      %1958 = vrot.lane.b32.xlu0 %v1899, 16
      %v1959 = vpop.permute.xlu0 %1958
      %1960 = vrot.lane.b32.xlu0 %v1900, 16
      %v1961 = vpop.permute.xlu0 %1960
      %1962 = vrot.lane.b32.xlu0 %v1901, 16
      %v1963 = vpop.permute.xlu0 %1962
      %1964 = vrot.lane.b32.xlu0 %v1902, 16
      %v1965 = vpop.permute.xlu0 %1964
      %1966 = vrot.lane.b32.xlu0 %v1903, 16
      %v1967 = vpop.permute.xlu0 %1966
      %1968 = vrot.lane.b32.xlu0 %v1904, 16
      %v1969 = vpop.permute.xlu0 %1968
      %1970 = vrot.lane.b32.xlu0 %v1939, 16
      %v1971 = vpop.permute.xlu0 %1970
      %v1972 = vunpack.c.l.b16 %v1509
      %v1973 = vunpack.c.l.b16 %v1519
      %v1974 = vpack.c.b16 %v1973, %v1972
      %1975 = vrot.lane.b32.xlu0 %v1891, 20
      %v1976 = vpop.permute.xlu0 %1975
      %1977 = vrot.lane.b32.xlu0 %v1892, 20
      %v1978 = vpop.permute.xlu0 %1977
      %1979 = vrot.lane.b32.xlu0 %v1893, 20
      %v1980 = vpop.permute.xlu0 %1979
      %1981 = vrot.lane.b32.xlu0 %v1894, 20
      %v1982 = vpop.permute.xlu0 %1981
      %1983 = vrot.lane.b32.xlu0 %v1895, 20
      %v1984 = vpop.permute.xlu0 %1983
      %1985 = vrot.lane.b32.xlu0 %v1896, 20
      %v1986 = vpop.permute.xlu0 %1985
      %1987 = vrot.lane.b32.xlu0 %v1897, 20
      %v1988 = vpop.permute.xlu0 %1987
      %1989 = vrot.lane.b32.xlu0 %v1898, 20
      %v1990 = vpop.permute.xlu0 %1989
      %1991 = vrot.lane.b32.xlu0 %v1899, 20
      %v1992 = vpop.permute.xlu0 %1991
      %1993 = vrot.lane.b32.xlu0 %v1900, 20
      %v1994 = vpop.permute.xlu0 %1993
      %1995 = vrot.lane.b32.xlu0 %v1901, 20
      %v1996 = vpop.permute.xlu0 %1995
      %1997 = vrot.lane.b32.xlu0 %v1902, 20
      %v1998 = vpop.permute.xlu0 %1997
      %1999 = vrot.lane.b32.xlu0 %v1903, 20
      %v2000 = vpop.permute.xlu0 %1999
      %2001 = vrot.lane.b32.xlu0 %v1904, 20
      %v2002 = vpop.permute.xlu0 %2001
      %2003 = vrot.lane.b32.xlu0 %v1939, 20
      %v2004 = vpop.permute.xlu0 %2003
      %2005 = vrot.lane.b32.xlu0 %v1974, 20
      %v2006 = vpop.permute.xlu0 %2005
      %v2007 = vunpack.c.l.b16 %v1598
      %v2008 = vunpack.c.l.b16 %v1601
      %v2009 = vunpack.c.l.b16 %v1605
      %v2010 = vunpack.c.l.b16 %v1608
      %v2011 = vunpack.c.l.b16 %v1612
      %v2012 = vunpack.c.l.b16 %v1615
      %v2013 = vunpack.c.l.b16 %v1619
      %v2014 = vunpack.c.l.b16 %v1622
      %v2015 = vunpack.c.l.b16 %v1626
      %v2016 = vunpack.c.l.b16 %v1629
      %v2017 = vunpack.c.l.b16 %v1633
      %v2018 = vunpack.c.l.b16 %v1636
      %v2019 = vunpack.c.l.b16 %v1640
      %v2020 = vunpack.c.l.b16 %v1643
      %v2021 = vunpack.c.l.b16 %v1647
      %v2022 = vunpack.c.l.b16 %v1650
      %v2023 = vunpack.c.l.b16 %v1654
      %v2024 = vunpack.c.l.b16 %v1657
      %v2025 = vunpack.c.l.b16 %v1661
      %v2026 = vunpack.c.l.b16 %v1664
      %v2027 = vunpack.c.l.b16 %v1668
      %v2028 = vunpack.c.l.b16 %v1671
      %v2029 = vunpack.c.l.b16 %v1675
      %v2030 = vunpack.c.l.b16 %v1678
      %v2031 = vunpack.c.l.b16 %v1682
      %v2032 = vunpack.c.l.b16 %v1685
      %v2033 = vunpack.c.l.b16 %v1689
      %v2034 = vunpack.c.l.b16 %v1692
      %v2035 = vunpack.c.l.b16 %v1696
      %v2036 = vunpack.c.l.b16 %v1699
      %v2037 = vunpack.c.l.b16 %v1703
      %v2038 = vunpack.c.l.b16 %v1706
      %v2039 = vpack.c.b16 %v2008, %v2007
      %v2040 = vpack.c.b16 %v2010, %v2009
      %v2041 = vpack.c.b16 %v2012, %v2011
      %v2042 = vpack.c.b16 %v2014, %v2013
      %v2043 = vpack.c.b16 %v2016, %v2015
      %v2044 = vpack.c.b16 %v2018, %v2017
      %v2045 = vpack.c.b16 %v2020, %v2019
      %v2046 = vpack.c.b16 %v2022, %v2021
      %v2047 = vpack.c.b16 %v2024, %v2023
      %v2048 = vpack.c.b16 %v2026, %v2025
      %v2049 = vpack.c.b16 %v2028, %v2027
      %v2050 = vpack.c.b16 %v2030, %v2029
      %v2051 = vpack.c.b16 %v2032, %v2031
      %v2052 = vpack.c.b16 %v2034, %v2033
      %v2053 = vpack.c.b16 %v2036, %v2035
      %v2054 = vpack.c.b16 %v2038, %v2037
      %2055 = vrot.lane.b32.xlu0 %v2039, 24
      %v2056 = vpop.permute.xlu0 %2055
      %2057 = vrot.lane.b32.xlu0 %v2040, 24
      %v2058 = vpop.permute.xlu0 %2057
      %2059 = vrot.lane.b32.xlu0 %v2041, 24
      %v2060 = vpop.permute.xlu0 %2059
      %2061 = vrot.lane.b32.xlu0 %v2042, 24
      %v2062 = vpop.permute.xlu0 %2061
      %2063 = vrot.lane.b32.xlu0 %v2043, 24
      %v2064 = vpop.permute.xlu0 %2063
      %2065 = vrot.lane.b32.xlu0 %v2044, 24
      %v2066 = vpop.permute.xlu0 %2065
      %2067 = vrot.lane.b32.xlu0 %v2045, 24
      %v2068 = vpop.permute.xlu0 %2067
      %2069 = vrot.lane.b32.xlu0 %v2046, 24
      %v2070 = vpop.permute.xlu0 %2069
      %2071 = vrot.lane.b32.xlu0 %v2047, 24
      %v2072 = vpop.permute.xlu0 %2071
      %2073 = vrot.lane.b32.xlu0 %v2048, 24
      %v2074 = vpop.permute.xlu0 %2073
      %2075 = vrot.lane.b32.xlu0 %v2049, 24
      %v2076 = vpop.permute.xlu0 %2075
      %2077 = vrot.lane.b32.xlu0 %v2050, 24
      %v2078 = vpop.permute.xlu0 %2077
      %2079 = vrot.lane.b32.xlu0 %v2051, 24
      %v2080 = vpop.permute.xlu0 %2079
      %2081 = vrot.lane.b32.xlu0 %v2052, 24
      %v2082 = vpop.permute.xlu0 %2081
      %2083 = vrot.lane.b32.xlu0 %v2053, 24
      %v2084 = vpop.permute.xlu0 %2083
      %2085 = vrot.lane.b32.xlu0 %v2054, 24
      %v2086 = vpop.permute.xlu0 %2085
      %v2087 = vunpack.c.l.b16 %v1710
      %v2088 = vunpack.c.l.b16 %v1713
      %v2089 = vpack.c.b16 %v2088, %v2087
      %2090 = vrot.lane.b32.xlu0 %v2040, 28
      %v2091 = vpop.permute.xlu0 %2090
      %2092 = vrot.lane.b32.xlu0 %v2041, 28
      %v2093 = vpop.permute.xlu0 %2092
      %2094 = vrot.lane.b32.xlu0 %v2042, 28
      %v2095 = vpop.permute.xlu0 %2094
      %2096 = vrot.lane.b32.xlu0 %v2043, 28
      %v2097 = vpop.permute.xlu0 %2096
      %2098 = vrot.lane.b32.xlu0 %v2044, 28
      %v2099 = vpop.permute.xlu0 %2098
      %2100 = vrot.lane.b32.xlu0 %v2045, 28
      %v2101 = vpop.permute.xlu0 %2100
      %2102 = vrot.lane.b32.xlu0 %v2046, 28
      %v2103 = vpop.permute.xlu0 %2102
      %2104 = vrot.lane.b32.xlu0 %v2047, 28
      %v2105 = vpop.permute.xlu0 %2104
      %2106 = vrot.lane.b32.xlu0 %v2048, 28
      %v2107 = vpop.permute.xlu0 %2106
      %2108 = vrot.lane.b32.xlu0 %v2049, 28
      %v2109 = vpop.permute.xlu0 %2108
      %2110 = vrot.lane.b32.xlu0 %v2050, 28
      %v2111 = vpop.permute.xlu0 %2110
      %2112 = vrot.lane.b32.xlu0 %v2051, 28
      %v2113 = vpop.permute.xlu0 %2112
      %2114 = vrot.lane.b32.xlu0 %v2052, 28
      %v2115 = vpop.permute.xlu0 %2114
      %2116 = vrot.lane.b32.xlu0 %v2053, 28
      %v2117 = vpop.permute.xlu0 %2116
      %2118 = vrot.lane.b32.xlu0 %v2054, 28
      %v2119 = vpop.permute.xlu0 %2118
      %2120 = vrot.lane.b32.xlu0 %v2089, 28
      %v2121 = vpop.permute.xlu0 %2120
      %v2122 = vunpack.c.l.b16 %v1717
      %v2123 = vunpack.c.l.b16 %v1720
      %v2124 = vpack.c.b16 %v2123, %v2122
      %2125 = vrot.lane.b32.xlu0 %v2041, 32
      %v2126 = vpop.permute.xlu0 %2125
      %2127 = vrot.lane.b32.xlu0 %v2042, 32
      %v2128 = vpop.permute.xlu0 %2127
      %2129 = vrot.lane.b32.xlu0 %v2043, 32
      %v2130 = vpop.permute.xlu0 %2129
      %2131 = vrot.lane.b32.xlu0 %v2044, 32
      %v2132 = vpop.permute.xlu0 %2131
      %2133 = vrot.lane.b32.xlu0 %v2045, 32
      %v2134 = vpop.permute.xlu0 %2133
      %2135 = vrot.lane.b32.xlu0 %v2046, 32
      %v2136 = vpop.permute.xlu0 %2135
      %2137 = vrot.lane.b32.xlu0 %v2047, 32
      %v2138 = vpop.permute.xlu0 %2137
      %2139 = vrot.lane.b32.xlu0 %v2048, 32
      %v2140 = vpop.permute.xlu0 %2139
      %2141 = vrot.lane.b32.xlu0 %v2049, 32
      %v2142 = vpop.permute.xlu0 %2141
      %2143 = vrot.lane.b32.xlu0 %v2050, 32
      %v2144 = vpop.permute.xlu0 %2143
      %2145 = vrot.lane.b32.xlu0 %v2051, 32
      %v2146 = vpop.permute.xlu0 %2145
      %2147 = vrot.lane.b32.xlu0 %v2052, 32
      %v2148 = vpop.permute.xlu0 %2147
      %2149 = vrot.lane.b32.xlu0 %v2053, 32
      %v2150 = vpop.permute.xlu0 %2149
      %2151 = vrot.lane.b32.xlu0 %v2054, 32
      %v2152 = vpop.permute.xlu0 %2151
      %2153 = vrot.lane.b32.xlu0 %v2089, 32
      %v2154 = vpop.permute.xlu0 %2153
      %2155 = vrot.lane.b32.xlu0 %v2124, 32
      %v2156 = vpop.permute.xlu0 %2155
      %vm2157 = vcmask 31744
      %v2160 = vsel %vm2157, %v1769, %v1790
      %v2163 = vsel %vm2157, %v1770, %v1792
      %v2166 = vsel %vm2157, %v1771, %v1794
      %v2169 = vsel %vm2157, %v1772, %v1796
      %v2172 = vsel %vm2157, %v1773, %v1798
      %v2175 = vsel %vm2157, %v1774, %v1800
      %v2178 = vsel %vm2157, %v1775, %v1802
      %v2181 = vsel %vm2157, %v1776, %v1804
      %v2184 = vsel %vm2157, %v1777, %v1806
      %v2187 = vsel %vm2157, %v1778, %v1808
      %v2190 = vsel %vm2157, %v1779, %v1810
      %v2193 = vsel %vm2157, %v1780, %v1812
      %v2196 = vsel %vm2157, %v1781, %v1814
      %v2199 = vsel %vm2157, %v1782, %v1816
      %v2202 = vsel %vm2157, %v1783, %v1818
      %v2205 = vsel %vm2157, %v1784, %v1820
      %vm2206 = vcmask 64512
      %v2208 = vsel %vm2206, %v2160, %v1826
      %v2210 = vsel %vm2206, %v2163, %v1828
      %v2212 = vsel %vm2206, %v2166, %v1830
      %v2214 = vsel %vm2206, %v2169, %v1832
      %v2216 = vsel %vm2206, %v2172, %v1834
      %v2218 = vsel %vm2206, %v2175, %v1836
      %v2220 = vsel %vm2206, %v2178, %v1838
      %v2222 = vsel %vm2206, %v2181, %v1840
      %v2224 = vsel %vm2206, %v2184, %v1842
      %v2226 = vsel %vm2206, %v2187, %v1844
      %v2228 = vsel %vm2206, %v2190, %v1846
      %v2230 = vsel %vm2206, %v2193, %v1848
      %v2232 = vsel %vm2206, %v2196, %v1850
      %v2234 = vsel %vm2206, %v2199, %v1852
      %v2236 = vsel %vm2206, %v2202, %v1854
      %v2238 = vsel %vm2206, %v2205, %v1856
      %vm2239 = vcmask 97280
      %v2241 = vsel %vm2239, %v2208, %v1906
      %v2243 = vsel %vm2239, %v2210, %v1908
      %v2245 = vsel %vm2239, %v2212, %v1910
      %v2247 = vsel %vm2239, %v2214, %v1912
      %v2249 = vsel %vm2239, %v2216, %v1914
      %v2251 = vsel %vm2239, %v2218, %v1916
      %v2253 = vsel %vm2239, %v2220, %v1918
      %v2255 = vsel %vm2239, %v2222, %v1920
      %v2257 = vsel %vm2239, %v2224, %v1922
      %v2259 = vsel %vm2239, %v2226, %v1924
      %v2261 = vsel %vm2239, %v2228, %v1926
      %v2263 = vsel %vm2239, %v2230, %v1928
      %v2265 = vsel %vm2239, %v2232, %v1930
      %v2267 = vsel %vm2239, %v2234, %v1932
      %v2269 = vsel %vm2239, %v2236, %v1934
      %v2271 = vsel %vm2239, %v2238, %v1936
      %vm2272 = vcmask 130048
      %v2274 = vsel %vm2272, %v2241, %v1941
      %v2276 = vsel %vm2272, %v2243, %v1943
      %v2278 = vsel %vm2272, %v2245, %v1945
      %v2280 = vsel %vm2272, %v2247, %v1947
      %v2282 = vsel %vm2272, %v2249, %v1949
      %v2284 = vsel %vm2272, %v2251, %v1951
      %v2286 = vsel %vm2272, %v2253, %v1953
      %v2288 = vsel %vm2272, %v2255, %v1955
      %v2290 = vsel %vm2272, %v2257, %v1957
      %v2292 = vsel %vm2272, %v2259, %v1959
      %v2294 = vsel %vm2272, %v2261, %v1961
      %v2296 = vsel %vm2272, %v2263, %v1963
      %v2298 = vsel %vm2272, %v2265, %v1965
      %v2300 = vsel %vm2272, %v2267, %v1967
      %v2302 = vsel %vm2272, %v2269, %v1969
      %v2304 = vsel %vm2272, %v2271, %v1971
      %vm2305 = vcmask 162816
      %v2307 = vsel %vm2305, %v2274, %v1976
      %v2309 = vsel %vm2305, %v2276, %v1978
      %v2311 = vsel %vm2305, %v2278, %v1980
      %v2313 = vsel %vm2305, %v2280, %v1982
      %v2315 = vsel %vm2305, %v2282, %v1984
      %v2317 = vsel %vm2305, %v2284, %v1986
      %v2319 = vsel %vm2305, %v2286, %v1988
      %v2321 = vsel %vm2305, %v2288, %v1990
      %v2323 = vsel %vm2305, %v2290, %v1992
      %v2325 = vsel %vm2305, %v2292, %v1994
      %v2327 = vsel %vm2305, %v2294, %v1996
      %v2329 = vsel %vm2305, %v2296, %v1998
      %v2331 = vsel %vm2305, %v2298, %v2000
      %v2333 = vsel %vm2305, %v2300, %v2002
      %v2335 = vsel %vm2305, %v2302, %v2004
      %v2337 = vsel %vm2305, %v2304, %v2006
      %vm2338 = vcmask 195584
      %v2340 = vsel %vm2338, %v2307, %v2056
      %v2342 = vsel %vm2338, %v2309, %v2058
      %v2344 = vsel %vm2338, %v2311, %v2060
      %v2346 = vsel %vm2338, %v2313, %v2062
      %v2348 = vsel %vm2338, %v2315, %v2064
      %v2350 = vsel %vm2338, %v2317, %v2066
      %v2352 = vsel %vm2338, %v2319, %v2068
      %v2354 = vsel %vm2338, %v2321, %v2070
      %v2356 = vsel %vm2338, %v2323, %v2072
      %v2358 = vsel %vm2338, %v2325, %v2074
      %v2360 = vsel %vm2338, %v2327, %v2076
      %v2362 = vsel %vm2338, %v2329, %v2078
      %v2364 = vsel %vm2338, %v2331, %v2080
      %v2366 = vsel %vm2338, %v2333, %v2082
      %v2368 = vsel %vm2338, %v2335, %v2084
      %v2370 = vsel %vm2338, %v2337, %v2086
      %vm2371 = vcmask 228352
      %v2373 = vsel %vm2371, %v2340, %v2091
      %v2375 = vsel %vm2371, %v2342, %v2093
      %v2377 = vsel %vm2371, %v2344, %v2095
      %v2379 = vsel %vm2371, %v2346, %v2097
      %v2381 = vsel %vm2371, %v2348, %v2099
      %v2383 = vsel %vm2371, %v2350, %v2101
      %v2385 = vsel %vm2371, %v2352, %v2103
      %v2387 = vsel %vm2371, %v2354, %v2105
      %v2389 = vsel %vm2371, %v2356, %v2107
      %v2391 = vsel %vm2371, %v2358, %v2109
      %v2393 = vsel %vm2371, %v2360, %v2111
      %v2395 = vsel %vm2371, %v2362, %v2113
      %v2397 = vsel %vm2371, %v2364, %v2115
      %v2399 = vsel %vm2371, %v2366, %v2117
      %v2401 = vsel %vm2371, %v2368, %v2119
      %v2403 = vsel %vm2371, %v2370, %v2121
      %vm2404 = vcmask 261120
      %v2406 = vsel %vm2404, %v2373, %v2126
      %v2408 = vsel %vm2404, %v2375, %v2128
      %v2410 = vsel %vm2404, %v2377, %v2130
      %v2412 = vsel %vm2404, %v2379, %v2132
      %v2414 = vsel %vm2404, %v2381, %v2134
      %v2416 = vsel %vm2404, %v2383, %v2136
      %v2418 = vsel %vm2404, %v2385, %v2138
      %v2420 = vsel %vm2404, %v2387, %v2140
      %v2422 = vsel %vm2404, %v2389, %v2142
      %v2424 = vsel %vm2404, %v2391, %v2144
      %v2426 = vsel %vm2404, %v2393, %v2146
      %v2428 = vsel %vm2404, %v2395, %v2148
      %v2430 = vsel %vm2404, %v2397, %v2150
      %v2432 = vsel %vm2404, %v2399, %v2152
      %v2434 = vsel %vm2404, %v2401, %v2154
      %v2436 = vsel %vm2404, %v2403, %v2156
      %v2437 = vld [vmem:[%s1] sm:$0xf]
      %v2438 = vld [vmem:[%s1 + $0x4] sm:$0xf]
      %v2439 = vld [vmem:[%s1 + $0x8] sm:$0xf]
      %v2440 = vld [vmem:[%s1 + $0xc] sm:$0xf]
      %v2441 = vld [vmem:[%s1 + $0x10] sm:$0x3]
      %v2442 = vld [vmem:[%s2] sm:$0x1]
      %v2444 = vlaneseq
      %v2445 = vshrl.u32 %v2444, 7
      %v2446 = vsub.s32 0, %v2445
      %v2447 = vrot.slane %v2442, %v2446
      %v2454 = vunpack.c.l.b16 %v2437
      %v2455 = vunpack.c.l.b16 %v2438
      %v2456 = vunpack.c.l.b16 %v2439
      %v2457 = vunpack.c.l.b16 %v2440
      %v2458 = vunpack.c.l.b16 %v2441
      %v2459 = vpack.c.b16 %v2455, %v2454
      %v2460 = vpack.c.b16 %v2457, %v2456
      %v2461 = vpack.c.b16 %v2458, %v2458
      %vm2464 = vcmask 293888
      %v2465 = vsel %vm2464, %v2406, 0
      %v2467 = vsel %vm2464, %v2408, 0
      %v2469 = vsel %vm2464, %v2410, 0
      %v2471 = vsel %vm2464, %v2412, 0
      %v2473 = vsel %vm2464, %v2414, 0
      %v2475 = vsel %vm2464, %v2416, 0
      %v2477 = vsel %vm2464, %v2418, 0
      %v2479 = vsel %vm2464, %v2420, 0
      %v2481 = vsel %vm2464, %v2422, 0
      %v2483 = vsel %vm2464, %v2424, 0
      %v2485 = vsel %vm2464, %v2426, 0
      %v2487 = vsel %vm2464, %v2428, 0
      %v2489 = vsel %vm2464, %v2430, 0
      %v2491 = vsel %vm2464, %v2432, 0
      %v2493 = vsel %vm2464, %v2434, 0
      %v2495 = vsel %vm2464, %v2436, 0
      %vm2497 = vcmask 1041408
      %v2499 = vsel %vm2497, %v2461, 0
      %2501 = vmatprep.subr.bf16.mxu0 0
      %2502 = vmatpush1.bf16.msra.mxu0 %v2459
      %2503 = vmatprep.subr.bf16.mxu0 0
      %2504 = vmatpush1.bf16.msra.mxu0 %v2460
      %2505 = vmatprep.subr.bf16.mxu0 0
      %2506 = vmatpush1.bf16.msra.mxu0 %v2499
      %2507 = vmatprep.subr.bf16.mxu0 0
      %2508 = vmatpush1.bf16.msra.mxu0 0
      %2509 = vmatprep.subr.bf16.mxu0 0
      %2510 = vmatpush1.bf16.msra.mxu0 0
      %2511 = vmatprep.subr.bf16.mxu0 0
      %2512 = vmatpush1.bf16.msra.mxu0 0
      %2513 = vmatprep.subr.bf16.mxu0 0
      %2514 = vmatpush1.bf16.msra.mxu0 0
      %2515 = vmatprep.subr.bf16.mxu0 0
      %2516 = vmatpush1.bf16.msra.mxu0 0
      %2517 = vmatprep.subr.bf16.mxu0 0
      %2518 = vmatpush1.bf16.msra.mxu0 0
      %2519 = vmatprep.subr.bf16.mxu0 0
      %2520 = vmatpush1.bf16.msra.mxu0 0
      %2521 = vmatprep.subr.bf16.mxu0 0
      %2522 = vmatpush1.bf16.msra.mxu0 0
      %2523 = vmatprep.subr.bf16.mxu0 0
      %2524 = vmatpush1.bf16.msra.mxu0 0
      %2525 = vmatprep.subr.bf16.mxu0 0
      %2526 = vmatpush1.bf16.msra.mxu0 0
      %2527 = vmatprep.subr.bf16.mxu0 0
      %2528 = vmatpush1.bf16.msra.mxu0 0
      %2529 = vmatprep.subr.bf16.mxu0 0
      %2530 = vmatpush1.bf16.msra.mxu0 0
      %2531 = vmatprep.subr.bf16.mxu0 0
      %2532 = vmatpush1.bf16.msra.mxu0 0
      %2533 = vmatprep.mubr.bf16.mxu0 0
      %2534 = vmatmul.mubr.bf16.gmra.mrb[0].mxu0 %v2465
      %v2535 = vpop.f32.mrb[0].mxu0
      %v2536 = vadd.f32 %v2447, %v2535
      %v2537 = vpop.f32.mrb[0].mxu0
      %v2538 = vpop.f32.mrb[0].mxu0
      %v2539 = vadd.f32 %v2447, %v2538
      %v2540 = vpop.f32.mrb[0].mxu0
      %2541 = vmatprep.mubr.bf16.mxu0 0
      %2542 = vmatmul.mubr.bf16.gmra.mrb[0].mxu0 %v2467
      %v2543 = vpop.f32.mrb[0].mxu0
      %v2544 = vadd.f32 %v2447, %v2543
      %v2545 = vpop.f32.mrb[0].mxu0
      %v2546 = vpop.f32.mrb[0].mxu0
      %v2547 = vadd.f32 %v2447, %v2546
      %v2548 = vpop.f32.mrb[0].mxu0
      %2549 = vmatprep.mubr.bf16.mxu0 0
      %2550 = vmatmul.mubr.bf16.gmra.mrb[0].mxu0 %v2469
      %v2551 = vpop.f32.mrb[0].mxu0
      %v2552 = vadd.f32 %v2447, %v2551
      %v2553 = vpop.f32.mrb[0].mxu0
      %v2554 = vpop.f32.mrb[0].mxu0
      %v2555 = vadd.f32 %v2447, %v2554
      %v2556 = vpop.f32.mrb[0].mxu0
      %2557 = vmatprep.mubr.bf16.mxu0 0
      %2558 = vmatmul.mubr.bf16.gmra.mrb[0].mxu0 %v2471
      %v2559 = vpop.f32.mrb[0].mxu0
      %v2560 = vadd.f32 %v2447, %v2559
      %v2561 = vpop.f32.mrb[0].mxu0
      %v2562 = vpop.f32.mrb[0].mxu0
      %v2563 = vadd.f32 %v2447, %v2562
      %v2564 = vpop.f32.mrb[0].mxu0
      %2565 = vmatprep.mubr.bf16.mxu0 0
      %2566 = vmatmul.mubr.bf16.gmra.mrb[0].mxu0 %v2473
      %v2567 = vpop.f32.mrb[0].mxu0
      %v2568 = vadd.f32 %v2447, %v2567
      %v2569 = vpop.f32.mrb[0].mxu0
      %v2570 = vpop.f32.mrb[0].mxu0
      %v2571 = vadd.f32 %v2447, %v2570
      %v2572 = vpop.f32.mrb[0].mxu0
      %2573 = vmatprep.mubr.bf16.mxu0 0
      %2574 = vmatmul.mubr.bf16.gmra.mrb[0].mxu0 %v2475
      %v2575 = vpop.f32.mrb[0].mxu0
      %v2576 = vadd.f32 %v2447, %v2575
      %v2577 = vpop.f32.mrb[0].mxu0
      %v2578 = vpop.f32.mrb[0].mxu0
      %v2579 = vadd.f32 %v2447, %v2578
      %v2580 = vpop.f32.mrb[0].mxu0
      %2581 = vmatprep.mubr.bf16.mxu0 0
      %2582 = vmatmul.mubr.bf16.gmra.mrb[0].mxu0 %v2477
      %v2583 = vpop.f32.mrb[0].mxu0
      %v2584 = vadd.f32 %v2447, %v2583
      %v2585 = vpop.f32.mrb[0].mxu0
      %v2586 = vpop.f32.mrb[0].mxu0
      %v2587 = vadd.f32 %v2447, %v2586
      %v2588 = vpop.f32.mrb[0].mxu0
      %2589 = vmatprep.mubr.bf16.mxu0 0
      %2590 = vmatmul.mubr.bf16.gmra.mrb[0].mxu0 %v2479
      %v2591 = vpop.f32.mrb[0].mxu0
      %v2592 = vadd.f32 %v2447, %v2591
      %v2593 = vpop.f32.mrb[0].mxu0
      %v2594 = vpop.f32.mrb[0].mxu0
      %v2595 = vadd.f32 %v2447, %v2594
      %v2596 = vpop.f32.mrb[0].mxu0
      %2597 = vmatprep.mubr.bf16.mxu0 0
      %2598 = vmatmul.mubr.bf16.gmra.mrb[0].mxu0 %v2481
      %v2599 = vpop.f32.mrb[0].mxu0
      %v2600 = vadd.f32 %v2447, %v2599
      %v2601 = vpop.f32.mrb[0].mxu0
      %v2602 = vpop.f32.mrb[0].mxu0
      %v2603 = vadd.f32 %v2447, %v2602
      %v2604 = vpop.f32.mrb[0].mxu0
      %2605 = vmatprep.mubr.bf16.mxu0 0
      %2606 = vmatmul.mubr.bf16.gmra.mrb[0].mxu0 %v2483
      %v2607 = vpop.f32.mrb[0].mxu0
      %v2608 = vadd.f32 %v2447, %v2607
      %v2609 = vpop.f32.mrb[0].mxu0
      %v2610 = vpop.f32.mrb[0].mxu0
      %v2611 = vadd.f32 %v2447, %v2610
      %v2612 = vpop.f32.mrb[0].mxu0
      %2613 = vmatprep.mubr.bf16.mxu0 0
      %2614 = vmatmul.mubr.bf16.gmra.mrb[0].mxu0 %v2485
      %v2615 = vpop.f32.mrb[0].mxu0
      %v2616 = vadd.f32 %v2447, %v2615
      %v2617 = vpop.f32.mrb[0].mxu0
      %v2618 = vpop.f32.mrb[0].mxu0
      %v2619 = vadd.f32 %v2447, %v2618
      %v2620 = vpop.f32.mrb[0].mxu0
      %2621 = vmatprep.mubr.bf16.mxu0 0
      %2622 = vmatmul.mubr.bf16.gmra.mrb[0].mxu0 %v2487
      %v2623 = vpop.f32.mrb[0].mxu0
      %v2624 = vadd.f32 %v2447, %v2623
      %v2625 = vpop.f32.mrb[0].mxu0
      %v2626 = vpop.f32.mrb[0].mxu0
      %v2627 = vadd.f32 %v2447, %v2626
      %v2628 = vpop.f32.mrb[0].mxu0
      %2629 = vmatprep.mubr.bf16.mxu0 0
      %2630 = vmatmul.mubr.bf16.gmra.mrb[0].mxu0 %v2489
      %v2631 = vpop.f32.mrb[0].mxu0
      %v2632 = vadd.f32 %v2447, %v2631
      %v2633 = vpop.f32.mrb[0].mxu0
      %v2634 = vpop.f32.mrb[0].mxu0
      %v2635 = vadd.f32 %v2447, %v2634
      %v2636 = vpop.f32.mrb[0].mxu0
      %2637 = vmatprep.mubr.bf16.mxu0 0
      %2638 = vmatmul.mubr.bf16.gmra.mrb[0].mxu0 %v2491
      %v2639 = vpop.f32.mrb[0].mxu0
      %v2640 = vadd.f32 %v2447, %v2639
      %v2641 = vpop.f32.mrb[0].mxu0
      %v2642 = vpop.f32.mrb[0].mxu0
      %v2643 = vadd.f32 %v2447, %v2642
      %v2644 = vpop.f32.mrb[0].mxu0
      %2645 = vmatprep.mubr.bf16.mxu0 0
      %2646 = vmatmul.mubr.bf16.gmra.mrb[0].mxu0 %v2493
      %v2647 = vpop.f32.mrb[0].mxu0
      %v2648 = vadd.f32 %v2447, %v2647
      %v2649 = vpop.f32.mrb[0].mxu0
      %v2650 = vpop.f32.mrb[0].mxu0
      %v2651 = vadd.f32 %v2447, %v2650
      %v2652 = vpop.f32.mrb[0].mxu0
      %2653 = vmatprep.mubr.bf16.mxu0 0
      %2654 = vmatmul.mubr.bf16.gmra.mrb[0].mxu0 %v2495
      %v2655 = vpop.f32.mrb[0].mxu0
      %v2656 = vadd.f32 %v2447, %v2655
      %v2657 = vpop.f32.mrb[0].mxu0
      %v2658 = vpop.f32.mrb[0].mxu0
      %v2659 = vadd.f32 %v2447, %v2658
      %v2660 = vpop.f32.mrb[0].mxu0
      %2661 = vdwg.mxu0
      %v2662 = vmax.f32 %v2536, 0.0
      %v2663 = vmax.f32 %v2539, 0.0
      %v2664 = vmax.f32 %v2544, 0.0
      %v2665 = vmax.f32 %v2547, 0.0
      %v2666 = vmax.f32 %v2552, 0.0
      %v2667 = vmax.f32 %v2555, 0.0
      %v2668 = vmax.f32 %v2560, 0.0
      %v2669 = vmax.f32 %v2563, 0.0
      %v2670 = vmax.f32 %v2568, 0.0
      %v2671 = vmax.f32 %v2571, 0.0
      %v2672 = vmax.f32 %v2576, 0.0
      %v2673 = vmax.f32 %v2579, 0.0
      %v2674 = vmax.f32 %v2584, 0.0
      %v2675 = vmax.f32 %v2587, 0.0
      %v2676 = vmax.f32 %v2592, 0.0
      %v2677 = vmax.f32 %v2595, 0.0
      %v2678 = vmax.f32 %v2600, 0.0
      %v2679 = vmax.f32 %v2603, 0.0
      %v2680 = vmax.f32 %v2608, 0.0
      %v2681 = vmax.f32 %v2611, 0.0
      %v2682 = vmax.f32 %v2616, 0.0
      %v2683 = vmax.f32 %v2619, 0.0
      %v2684 = vmax.f32 %v2624, 0.0
      %v2685 = vmax.f32 %v2627, 0.0
      %v2686 = vmax.f32 %v2632, 0.0
      %v2687 = vmax.f32 %v2635, 0.0
      %v2688 = vmax.f32 %v2640, 0.0
      %v2689 = vmax.f32 %v2643, 0.0
      %v2690 = vmax.f32 %v2648, 0.0
      %v2691 = vmax.f32 %v2651, 0.0
      %v2692 = vmax.f32 %v2656, 0.0
      %v2693 = vmax.f32 %v2659, 0.0
      %v2694 = vpack.c.bf16 %v2663, %v2662
      %v2695 = vpack.c.bf16 %v2665, %v2664
      %v2696 = vpack.c.bf16 %v2667, %v2666
      %v2697 = vpack.c.bf16 %v2669, %v2668
      %v2698 = vpack.c.bf16 %v2671, %v2670
      %v2699 = vpack.c.bf16 %v2673, %v2672
      %v2700 = vpack.c.bf16 %v2675, %v2674
      %v2701 = vpack.c.bf16 %v2677, %v2676
      %v2702 = vpack.c.bf16 %v2679, %v2678
      %v2703 = vpack.c.bf16 %v2681, %v2680
      %v2704 = vpack.c.bf16 %v2683, %v2682
      %v2705 = vpack.c.bf16 %v2685, %v2684
      %v2706 = vpack.c.bf16 %v2687, %v2686
      %v2707 = vpack.c.bf16 %v2689, %v2688
      %v2708 = vpack.c.bf16 %v2691, %v2690
      %v2709 = vpack.c.bf16 %v2693, %v2692
      %v2726 = vunpack.c.l.b16 %v2694
      %v2727 = vunpack.c.h.b16 %v2694
      %v2728 = vunpack.c.l.b16 %v2695
      %v2729 = vunpack.c.h.b16 %v2695
      %v2730 = vunpack.c.l.b16 %v2696
      %v2731 = vunpack.c.h.b16 %v2696
      %v2732 = vunpack.c.l.b16 %v2697
      %v2733 = vunpack.c.h.b16 %v2697
      %v2734 = vunpack.c.l.b16 %v2698
      %v2735 = vunpack.c.h.b16 %v2698
      %v2736 = vunpack.c.l.b16 %v2699
      %v2737 = vunpack.c.h.b16 %v2699
      %v2738 = vunpack.c.l.b16 %v2700
      %v2739 = vunpack.c.h.b16 %v2700
      %v2740 = vunpack.c.l.b16 %v2701
      %v2741 = vunpack.c.h.b16 %v2701
      %v2742 = vunpack.c.l.b16 %v2702
      %v2743 = vunpack.c.h.b16 %v2702
      %v2744 = vunpack.c.l.b16 %v2703
      %v2745 = vunpack.c.h.b16 %v2703
      %v2746 = vunpack.c.l.b16 %v2704
      %v2747 = vunpack.c.h.b16 %v2704
      %v2748 = vunpack.c.l.b16 %v2705
      %v2749 = vunpack.c.h.b16 %v2705
      %v2750 = vunpack.c.l.b16 %v2706
      %v2751 = vunpack.c.h.b16 %v2706
      %v2752 = vunpack.c.l.b16 %v2707
      %v2753 = vunpack.c.h.b16 %v2707
      %v2754 = vunpack.c.l.b16 %v2708
      %v2755 = vunpack.c.h.b16 %v2708
      %v2756 = vunpack.c.l.b16 %v2709
      %v2757 = vunpack.c.h.b16 %v2709
      %v2758 = vpack.c.b16 %v2726, %v2726
      %v2759 = vpack.c.b16 %v2727, %v2727
      %v2760 = vpack.c.b16 %v2728, %v2728
      %v2761 = vpack.c.b16 %v2729, %v2729
      %v2762 = vpack.c.b16 %v2730, %v2730
      %v2763 = vpack.c.b16 %v2731, %v2731
      %v2764 = vpack.c.b16 %v2732, %v2732
      %v2765 = vpack.c.b16 %v2733, %v2733
      %v2766 = vpack.c.b16 %v2734, %v2734
      %v2767 = vpack.c.b16 %v2735, %v2735
      %v2768 = vpack.c.b16 %v2736, %v2736
      %v2769 = vpack.c.b16 %v2737, %v2737
      %v2770 = vpack.c.b16 %v2738, %v2738
      %v2771 = vpack.c.b16 %v2739, %v2739
      %v2772 = vpack.c.b16 %v2740, %v2740
      %v2773 = vpack.c.b16 %v2741, %v2741
      %v2774 = vpack.c.b16 %v2742, %v2742
      %v2775 = vpack.c.b16 %v2743, %v2743
      %v2776 = vpack.c.b16 %v2744, %v2744
      %v2777 = vpack.c.b16 %v2745, %v2745
      %v2778 = vpack.c.b16 %v2746, %v2746
      %v2779 = vpack.c.b16 %v2747, %v2747
      %v2780 = vpack.c.b16 %v2748, %v2748
      %v2781 = vpack.c.b16 %v2749, %v2749
      %v2782 = vpack.c.b16 %v2750, %v2750
      %v2783 = vpack.c.b16 %v2751, %v2751
      %v2784 = vpack.c.b16 %v2752, %v2752
      %v2785 = vpack.c.b16 %v2753, %v2753
      %v2786 = vpack.c.b16 %v2754, %v2754
      %v2787 = vpack.c.b16 %v2755, %v2755
      %v2788 = vpack.c.b16 %v2756, %v2756
      %v2789 = vpack.c.b16 %v2757, %v2757
      %v2791 = vshrl.u32 %v2758, 16
      %v2793 = vrot.slane %v2791, 7
      %v2794 = vshll.u32 %v2758, 16
      %v2796 = vor.u32 %v2793, %v2794
      %v2797 = vrot.slane %v2793, 4
      %v2799 = vshrl.u32 %v2759, 16
      %v2801 = vrot.slane %v2799, 7
      %v2802 = vshll.u32 %v2759, 16
      %v2804 = vor.u32 %v2801, %v2802
      %v2805 = vsel %vm595, %v2797, %v2804
      %v2806 = vrot.slane %v2801, 4
      %v2808 = vshrl.u32 %v2760, 16
      %v2810 = vrot.slane %v2808, 7
      %v2811 = vshll.u32 %v2760, 16
      %v2813 = vor.u32 %v2810, %v2811
      %v2814 = vrot.slane %v2810, 4
      %v2816 = vshrl.u32 %v2761, 16
      %v2818 = vrot.slane %v2816, 7
      %v2819 = vshll.u32 %v2761, 16
      %v2821 = vor.u32 %v2818, %v2819
      %v2822 = vsel %vm595, %v2814, %v2821
      %v2823 = vrot.slane %v2818, 4
      %v2825 = vshrl.u32 %v2762, 16
      %v2827 = vrot.slane %v2825, 7
      %v2828 = vshll.u32 %v2762, 16
      %v2830 = vor.u32 %v2827, %v2828
      %v2831 = vrot.slane %v2827, 4
      %v2833 = vshrl.u32 %v2763, 16
      %v2835 = vrot.slane %v2833, 7
      %v2836 = vshll.u32 %v2763, 16
      %v2838 = vor.u32 %v2835, %v2836
      %v2839 = vsel %vm595, %v2831, %v2838
      %v2840 = vrot.slane %v2835, 4
      %v2842 = vshrl.u32 %v2764, 16
      %v2844 = vrot.slane %v2842, 7
      %v2845 = vshll.u32 %v2764, 16
      %v2847 = vor.u32 %v2844, %v2845
      %v2848 = vrot.slane %v2844, 4
      %v2850 = vshrl.u32 %v2765, 16
      %v2852 = vrot.slane %v2850, 7
      %v2853 = vshll.u32 %v2765, 16
      %v2855 = vor.u32 %v2852, %v2853
      %v2856 = vsel %vm595, %v2848, %v2855
      %v2857 = vrot.slane %v2852, 4
      %v2859 = vshrl.u32 %v2766, 16
      %v2861 = vrot.slane %v2859, 7
      %v2862 = vshll.u32 %v2766, 16
      %v2864 = vor.u32 %v2861, %v2862
      %v2865 = vrot.slane %v2861, 4
      %v2867 = vshrl.u32 %v2767, 16
      %v2869 = vrot.slane %v2867, 7
      %v2870 = vshll.u32 %v2767, 16
      %v2872 = vor.u32 %v2869, %v2870
      %v2873 = vsel %vm595, %v2865, %v2872
      %v2874 = vrot.slane %v2869, 4
      %v2876 = vshrl.u32 %v2768, 16
      %v2878 = vrot.slane %v2876, 7
      %v2879 = vshll.u32 %v2768, 16
      %v2881 = vor.u32 %v2878, %v2879
      %v2882 = vrot.slane %v2878, 4
      %v2884 = vshrl.u32 %v2769, 16
      %v2886 = vrot.slane %v2884, 7
      %v2887 = vshll.u32 %v2769, 16
      %v2889 = vor.u32 %v2886, %v2887
      %v2890 = vsel %vm595, %v2882, %v2889
      %v2891 = vrot.slane %v2886, 4
      %v2893 = vshrl.u32 %v2770, 16
      %v2895 = vrot.slane %v2893, 7
      %v2896 = vshll.u32 %v2770, 16
      %v2898 = vor.u32 %v2895, %v2896
      %v2899 = vrot.slane %v2895, 4
      %v2901 = vshrl.u32 %v2771, 16
      %v2903 = vrot.slane %v2901, 7
      %v2904 = vshll.u32 %v2771, 16
      %v2906 = vor.u32 %v2903, %v2904
      %v2907 = vsel %vm595, %v2899, %v2906
      %v2908 = vrot.slane %v2903, 4
      %v2910 = vshrl.u32 %v2772, 16
      %v2912 = vrot.slane %v2910, 7
      %v2913 = vshll.u32 %v2772, 16
      %v2915 = vor.u32 %v2912, %v2913
      %v2916 = vrot.slane %v2912, 4
      %v2918 = vshrl.u32 %v2773, 16
      %v2920 = vrot.slane %v2918, 7
      %v2921 = vshll.u32 %v2773, 16
      %v2923 = vor.u32 %v2920, %v2921
      %v2924 = vsel %vm595, %v2916, %v2923
      %v2925 = vrot.slane %v2920, 4
      %v2927 = vshrl.u32 %v2774, 16
      %v2929 = vrot.slane %v2927, 7
      %v2930 = vshll.u32 %v2774, 16
      %v2932 = vor.u32 %v2929, %v2930
      %v2933 = vrot.slane %v2929, 4
      %v2935 = vshrl.u32 %v2775, 16
      %v2937 = vrot.slane %v2935, 7
      %v2938 = vshll.u32 %v2775, 16
      %v2940 = vor.u32 %v2937, %v2938
      %v2941 = vsel %vm595, %v2933, %v2940
      %v2942 = vrot.slane %v2937, 4
      %v2944 = vshrl.u32 %v2776, 16
      %v2946 = vrot.slane %v2944, 7
      %v2947 = vshll.u32 %v2776, 16
      %v2949 = vor.u32 %v2946, %v2947
      %v2950 = vrot.slane %v2946, 4
      %v2952 = vshrl.u32 %v2777, 16
      %v2954 = vrot.slane %v2952, 7
      %v2955 = vshll.u32 %v2777, 16
      %v2957 = vor.u32 %v2954, %v2955
      %v2958 = vsel %vm595, %v2950, %v2957
      %v2959 = vrot.slane %v2954, 4
      %v2961 = vshrl.u32 %v2778, 16
      %v2963 = vrot.slane %v2961, 7
      %v2964 = vshll.u32 %v2778, 16
      %v2966 = vor.u32 %v2963, %v2964
      %v2967 = vrot.slane %v2963, 4
      %v2969 = vshrl.u32 %v2779, 16
      %v2971 = vrot.slane %v2969, 7
      %v2972 = vshll.u32 %v2779, 16
      %v2974 = vor.u32 %v2971, %v2972
      %v2975 = vsel %vm595, %v2967, %v2974
      %v2976 = vrot.slane %v2971, 4
      %v2978 = vshrl.u32 %v2780, 16
      %v2980 = vrot.slane %v2978, 7
      %v2981 = vshll.u32 %v2780, 16
      %v2983 = vor.u32 %v2980, %v2981
      %v2984 = vrot.slane %v2980, 4
      %v2986 = vshrl.u32 %v2781, 16
      %v2988 = vrot.slane %v2986, 7
      %v2989 = vshll.u32 %v2781, 16
      %v2991 = vor.u32 %v2988, %v2989
      %v2992 = vsel %vm595, %v2984, %v2991
      %v2993 = vrot.slane %v2988, 4
      %v2995 = vshrl.u32 %v2782, 16
      %v2997 = vrot.slane %v2995, 7
      %v2998 = vshll.u32 %v2782, 16
      %v3000 = vor.u32 %v2997, %v2998
      %v3001 = vrot.slane %v2997, 4
      %v3003 = vshrl.u32 %v2783, 16
      %v3005 = vrot.slane %v3003, 7
      %v3006 = vshll.u32 %v2783, 16
      %v3008 = vor.u32 %v3005, %v3006
      %v3009 = vsel %vm595, %v3001, %v3008
      %v3010 = vrot.slane %v3005, 4
      %v3012 = vshrl.u32 %v2784, 16
      %v3014 = vrot.slane %v3012, 7
      %v3015 = vshll.u32 %v2784, 16
      %v3017 = vor.u32 %v3014, %v3015
      %v3018 = vrot.slane %v3014, 4
      %v3020 = vshrl.u32 %v2785, 16
      %v3022 = vrot.slane %v3020, 7
      %v3023 = vshll.u32 %v2785, 16
      %v3025 = vor.u32 %v3022, %v3023
      %v3026 = vsel %vm595, %v3018, %v3025
      %v3027 = vrot.slane %v3022, 4
      %v3029 = vshrl.u32 %v2786, 16
      %v3031 = vrot.slane %v3029, 7
      %v3032 = vshll.u32 %v2786, 16
      %v3034 = vor.u32 %v3031, %v3032
      %v3035 = vrot.slane %v3031, 4
      %v3037 = vshrl.u32 %v2787, 16
      %v3039 = vrot.slane %v3037, 7
      %v3040 = vshll.u32 %v2787, 16
      %v3042 = vor.u32 %v3039, %v3040
      %v3043 = vsel %vm595, %v3035, %v3042
      %v3044 = vrot.slane %v3039, 4
      %v3046 = vshrl.u32 %v2788, 16
      %v3048 = vrot.slane %v3046, 7
      %v3049 = vshll.u32 %v2788, 16
      %v3051 = vor.u32 %v3048, %v3049
      %v3052 = vrot.slane %v3048, 4
      %v3054 = vshrl.u32 %v2789, 16
      %v3056 = vrot.slane %v3054, 7
      %v3057 = vshll.u32 %v2789, 16
      %v3059 = vor.u32 %v3056, %v3057
      %v3060 = vsel %vm595, %v3052, %v3059
      %v3061 = vrot.slane %v3056, 4
      %s3110 = scalar_lea.vmem [#allocation3], 12
      %vm3111 = vcmask 1043456
      %vm3112 = vmand %vm3111, %vm292
      %v3113 = vld [vmem:[%s3110] sm:$0xf]
      %v3114 = vsel %vm3112, %v2796, %v3113
      %3115 = vst [vmem:[%s3110] sm:$0xf] %v3114
      %3116 = vst [vmem:[%s3110 + $0x4] sm:$0xf] %v2805
      %v3117 = vld [vmem:[%s3110 + $0x8] sm:$0x1]
      %v3118 = vsel %vm356, %v2806, %v3117
      %3119 = vst [vmem:[%s3110 + $0x8] sm:$0x1] %v3118
      %v3120 = vld [vmem:[%s3110 + $0xc] sm:$0xf]
      %v3121 = vsel %vm3112, %v2813, %v3120
      %3122 = vst [vmem:[%s3110 + $0xc] sm:$0xf] %v3121
      %3123 = vst [vmem:[%s3110 + $0x10] sm:$0xf] %v2822
      %v3124 = vld [vmem:[%s3110 + $0x14] sm:$0x1]
      %v3125 = vsel %vm356, %v2823, %v3124
      %3126 = vst [vmem:[%s3110 + $0x14] sm:$0x1] %v3125
      %v3127 = vld [vmem:[%s3110 + $0x18] sm:$0xf]
      %v3128 = vsel %vm3112, %v2830, %v3127
      %3129 = vst [vmem:[%s3110 + $0x18] sm:$0xf] %v3128
      %3130 = vst [vmem:[%s3110 + $0x1c] sm:$0xf] %v2839
      %v3131 = vld [vmem:[%s3110 + $0x20] sm:$0x1]
      %v3132 = vsel %vm356, %v2840, %v3131
      %3133 = vst [vmem:[%s3110 + $0x20] sm:$0x1] %v3132
      %v3134 = vld [vmem:[%s3110 + $0x24] sm:$0xf]
      %v3135 = vsel %vm3112, %v2847, %v3134
      %3136 = vst [vmem:[%s3110 + $0x24] sm:$0xf] %v3135
      %3137 = vst [vmem:[%s3110 + $0x28] sm:$0xf] %v2856
      %v3138 = vld [vmem:[%s3110 + $0x2c] sm:$0x1]
      %v3139 = vsel %vm356, %v2857, %v3138
      %3140 = vst [vmem:[%s3110 + $0x2c] sm:$0x1] %v3139
      %v3141 = vld [vmem:[%s3110 + $0x30] sm:$0xf]
      %v3142 = vsel %vm3112, %v2864, %v3141
      %3143 = vst [vmem:[%s3110 + $0x30] sm:$0xf] %v3142
      %3144 = vst [vmem:[%s3110 + $0x34] sm:$0xf] %v2873
      %v3145 = vld [vmem:[%s3110 + $0x38] sm:$0x1]
      %v3146 = vsel %vm356, %v2874, %v3145
      %3147 = vst [vmem:[%s3110 + $0x38] sm:$0x1] %v3146
      %v3148 = vld [vmem:[%s3110 + $0x3c] sm:$0xf]
      %v3149 = vsel %vm3112, %v2881, %v3148
      %3150 = vst [vmem:[%s3110 + $0x3c] sm:$0xf] %v3149
      %3151 = vst [vmem:[%s3110 + $0x40] sm:$0xf] %v2890
      %v3152 = vld [vmem:[%s3110 + $0x44] sm:$0x1]
      %v3153 = vsel %vm356, %v2891, %v3152
      %3154 = vst [vmem:[%s3110 + $0x44] sm:$0x1] %v3153
      %v3155 = vld [vmem:[%s3110 + $0x48] sm:$0xf]
      %v3156 = vsel %vm3112, %v2898, %v3155
      %3157 = vst [vmem:[%s3110 + $0x48] sm:$0xf] %v3156
      %3158 = vst [vmem:[%s3110 + $0x4c] sm:$0xf] %v2907
      %v3159 = vld [vmem:[%s3110 + $0x50] sm:$0x1]
      %v3160 = vsel %vm356, %v2908, %v3159
      %3161 = vst [vmem:[%s3110 + $0x50] sm:$0x1] %v3160
      %v3162 = vld [vmem:[%s3110 + $0x54] sm:$0xf]
      %v3163 = vsel %vm3112, %v2915, %v3162
      %3164 = vst [vmem:[%s3110 + $0x54] sm:$0xf] %v3163
      %3165 = vst [vmem:[%s3110 + $0x58] sm:$0xf] %v2924
      %v3166 = vld [vmem:[%s3110 + $0x5c] sm:$0x1]
      %v3167 = vsel %vm356, %v2925, %v3166
      %3168 = vst [vmem:[%s3110 + $0x5c] sm:$0x1] %v3167
      %v3169 = vld [vmem:[%s3110 + $0x60] sm:$0xf]
      %v3170 = vsel %vm3112, %v2932, %v3169
      %3171 = vst [vmem:[%s3110 + $0x60] sm:$0xf] %v3170
      %3172 = vst [vmem:[%s3110 + $0x64] sm:$0xf] %v2941
      %v3173 = vld [vmem:[%s3110 + $0x68] sm:$0x1]
      %v3174 = vsel %vm356, %v2942, %v3173
      %3175 = vst [vmem:[%s3110 + $0x68] sm:$0x1] %v3174
      %v3176 = vld [vmem:[%s3110 + $0x6c] sm:$0xf]
      %v3177 = vsel %vm3112, %v2949, %v3176
      %3178 = vst [vmem:[%s3110 + $0x6c] sm:$0xf] %v3177
      %3179 = vst [vmem:[%s3110 + $0x70] sm:$0xf] %v2958
      %v3180 = vld [vmem:[%s3110 + $0x74] sm:$0x1]
      %v3181 = vsel %vm356, %v2959, %v3180
      %3182 = vst [vmem:[%s3110 + $0x74] sm:$0x1] %v3181
      %v3183 = vld [vmem:[%s3110 + $0x78] sm:$0xf]
      %v3184 = vsel %vm3112, %v2966, %v3183
      %3185 = vst [vmem:[%s3110 + $0x78] sm:$0xf] %v3184
      %3186 = vst [vmem:[%s3110 + $0x7c] sm:$0xf] %v2975
      %v3187 = vld [vmem:[%s3110 + $0x80] sm:$0x1]
      %v3188 = vsel %vm356, %v2976, %v3187
      %3189 = vst [vmem:[%s3110 + $0x80] sm:$0x1] %v3188
      %v3190 = vld [vmem:[%s3110 + $0x84] sm:$0xf]
      %v3191 = vsel %vm3112, %v2983, %v3190
      %3192 = vst [vmem:[%s3110 + $0x84] sm:$0xf] %v3191
      %3193 = vst [vmem:[%s3110 + $0x88] sm:$0xf] %v2992
      %v3194 = vld [vmem:[%s3110 + $0x8c] sm:$0x1]
      %v3195 = vsel %vm356, %v2993, %v3194
      %3196 = vst [vmem:[%s3110 + $0x8c] sm:$0x1] %v3195
      %v3197 = vld [vmem:[%s3110 + $0x90] sm:$0xf]
      %v3198 = vsel %vm3112, %v3000, %v3197
      %3199 = vst [vmem:[%s3110 + $0x90] sm:$0xf] %v3198
      %3200 = vst [vmem:[%s3110 + $0x94] sm:$0xf] %v3009
      %v3201 = vld [vmem:[%s3110 + $0x98] sm:$0x1]
      %v3202 = vsel %vm356, %v3010, %v3201
      %3203 = vst [vmem:[%s3110 + $0x98] sm:$0x1] %v3202
      %v3204 = vld [vmem:[%s3110 + $0x9c] sm:$0xf]
      %v3205 = vsel %vm3112, %v3017, %v3204
      %3206 = vst [vmem:[%s3110 + $0x9c] sm:$0xf] %v3205
      %3207 = vst [vmem:[%s3110 + $0xa0] sm:$0xf] %v3026
      %v3208 = vld [vmem:[%s3110 + $0xa4] sm:$0x1]
      %v3209 = vsel %vm356, %v3027, %v3208
      %3210 = vst [vmem:[%s3110 + $0xa4] sm:$0x1] %v3209
      %v3211 = vld [vmem:[%s3110 + $0xa8] sm:$0xf]
      %v3212 = vsel %vm3112, %v3034, %v3211
      %3213 = vst [vmem:[%s3110 + $0xa8] sm:$0xf] %v3212
      %3214 = vst [vmem:[%s3110 + $0xac] sm:$0xf] %v3043
      %v3215 = vld [vmem:[%s3110 + $0xb0] sm:$0x1]
      %v3216 = vsel %vm356, %v3044, %v3215
      %3217 = vst [vmem:[%s3110 + $0xb0] sm:$0x1] %v3216
      %v3218 = vld [vmem:[%s3110 + $0xb4] sm:$0xf]
      %v3219 = vsel %vm3112, %v3051, %v3218
      %3220 = vst [vmem:[%s3110 + $0xb4] sm:$0xf] %v3219
      %3221 = vst [vmem:[%s3110 + $0xb8] sm:$0xf] %v3060
      %v3222 = vld [vmem:[%s3110 + $0xbc] sm:$0x1]
      %v3223 = vsel %vm356, %v3061, %v3222
      %3224 = vst [vmem:[%s3110 + $0xbc] sm:$0x1] %v3223
      %v3225 = vld [vmem:[#allocation3] sm:$0xf]
      %v3226 = vld [vmem:[#allocation3 + $0x4] sm:$0xf]
      %v3227 = vld [vmem:[#allocation3 + $0xc] sm:$0xf]
      %v3228 = vld [vmem:[#allocation3 + $0x10] sm:$0xf]
      %v3229 = vld [vmem:[#allocation3 + $0x18] sm:$0xf]
      %v3230 = vld [vmem:[#allocation3 + $0x1c] sm:$0xf]
      %v3231 = vld [vmem:[#allocation3 + $0x24] sm:$0xf]
      %v3232 = vld [vmem:[#allocation3 + $0x28] sm:$0xf]
      %v3233 = vld [vmem:[#allocation3 + $0x30] sm:$0xf]
      %v3234 = vld [vmem:[#allocation3 + $0x34] sm:$0xf]
      %v3235 = vld [vmem:[#allocation3 + $0x3c] sm:$0xf]
      %v3236 = vld [vmem:[#allocation3 + $0x40] sm:$0xf]
      %v3237 = vld [vmem:[#allocation3 + $0x48] sm:$0xf]
      %v3238 = vld [vmem:[#allocation3 + $0x4c] sm:$0xf]
      %v3239 = vld [vmem:[#allocation3 + $0x54] sm:$0xf]
      %v3240 = vld [vmem:[#allocation3 + $0x58] sm:$0xf]
      %v3241 = vld [vmem:[#allocation3 + $0x60] sm:$0xf]
      %v3242 = vld [vmem:[#allocation3 + $0x64] sm:$0xf]
      %v3243 = vld [vmem:[#allocation3 + $0x6c] sm:$0xf]
      %v3244 = vld [vmem:[#allocation3 + $0x70] sm:$0xf]
      %v3245 = vld [vmem:[#allocation3 + $0x78] sm:$0xf]
      %v3246 = vld [vmem:[#allocation3 + $0x7c] sm:$0xf]
      %v3247 = vld [vmem:[#allocation3 + $0x84] sm:$0xf]
      %v3248 = vld [vmem:[#allocation3 + $0x88] sm:$0xf]
      %v3249 = vld [vmem:[#allocation3 + $0x90] sm:$0xf]
      %v3250 = vld [vmem:[#allocation3 + $0x94] sm:$0xf]
      %v3251 = vld [vmem:[#allocation3 + $0x9c] sm:$0xf]
      %v3252 = vld [vmem:[#allocation3 + $0xa0] sm:$0xf]
      %v3253 = vld [vmem:[#allocation3 + $0xa8] sm:$0xf]
      %v3254 = vld [vmem:[#allocation3 + $0xac] sm:$0xf]
      %v3255 = vld [vmem:[#allocation3 + $0xb4] sm:$0xf]
      %v3256 = vld [vmem:[#allocation3 + $0xb8] sm:$0xf]
      %v3257 = vld [vmem:[#allocation3 + $0xc0] sm:$0xf]
      %v3258 = vld [vmem:[#allocation3 + $0xc4] sm:$0xf]
      %v3259 = vld [vmem:[#allocation3 + $0xcc] sm:$0xf]
      %v3260 = vld [vmem:[#allocation3 + $0xd0] sm:$0xf]
      %v3261 = vld [vmem:[#allocation3 + $0x8] sm:$0x1]
      %v3262 = vld [vmem:[#allocation3 + $0x14] sm:$0x1]
      %v3263 = vld [vmem:[#allocation3 + $0x20] sm:$0x1]
      %v3264 = vld [vmem:[#allocation3 + $0x2c] sm:$0x1]
      %v3265 = vld [vmem:[#allocation3 + $0x38] sm:$0x1]
      %v3266 = vld [vmem:[#allocation3 + $0x44] sm:$0x1]
      %v3267 = vld [vmem:[#allocation3 + $0x50] sm:$0x1]
      %v3268 = vld [vmem:[#allocation3 + $0x5c] sm:$0x1]
      %v3269 = vld [vmem:[#allocation3 + $0x68] sm:$0x1]
      %v3270 = vld [vmem:[#allocation3 + $0x74] sm:$0x1]
      %v3271 = vld [vmem:[#allocation3 + $0x80] sm:$0x1]
      %v3272 = vld [vmem:[#allocation3 + $0x8c] sm:$0x1]
      %v3273 = vld [vmem:[#allocation3 + $0x98] sm:$0x1]
      %v3274 = vld [vmem:[#allocation3 + $0xa4] sm:$0x1]
      %v3275 = vld [vmem:[#allocation3 + $0xb0] sm:$0x1]
      %v3276 = vld [vmem:[#allocation3 + $0xbc] sm:$0x1]
      %v3277 = vld [vmem:[#allocation3 + $0xc8] sm:$0x1]
      %v3278 = vld [vmem:[#allocation3 + $0xd4] sm:$0x1]
      %v3280 = vshrl.u32 %v3225, 16
      %v3282 = vrot.slane %v3280, 4
      %v3283 = vshll.u32 %v3225, 16
      %v3285 = vrot.slane %v3283, 5
      %v3286 = vor.u32 %v3282, %v3285
      %v3287 = vrot.slane %v3286, 4
      %v3289 = vshll.u32 %v3226, 16
      %v3291 = vrot.slane %v3289, 5
      %v3292 = vsel %vm1087, %v3287, %v3291
      %v3293 = vshrl.u32 %v3226, 16
      %v3295 = vrot.slane %v3293, 4
      %v3296 = vor.u32 %v3295, %v3291
      %v3297 = vrot.slane %v3296, 4
      %v3299 = vshll.u32 %v3261, 16
      %v3301 = vrot.slane %v3299, 5
      %v3302 = vsel %vm1087, %v3297, %v3301
      %v3304 = vshrl.u32 %v3227, 16
      %v3306 = vrot.slane %v3304, 4
      %v3307 = vshll.u32 %v3227, 16
      %v3309 = vrot.slane %v3307, 5
      %v3310 = vor.u32 %v3306, %v3309
      %v3311 = vrot.slane %v3310, 4
      %v3313 = vshll.u32 %v3228, 16
      %v3315 = vrot.slane %v3313, 5
      %v3316 = vsel %vm1087, %v3311, %v3315
      %v3317 = vshrl.u32 %v3228, 16
      %v3319 = vrot.slane %v3317, 4
      %v3320 = vor.u32 %v3319, %v3315
      %v3321 = vrot.slane %v3320, 4
      %v3323 = vshll.u32 %v3262, 16
      %v3325 = vrot.slane %v3323, 5
      %v3326 = vsel %vm1087, %v3321, %v3325
      %v3328 = vshrl.u32 %v3229, 16
      %v3330 = vrot.slane %v3328, 4
      %v3331 = vshll.u32 %v3229, 16
      %v3333 = vrot.slane %v3331, 5
      %v3334 = vor.u32 %v3330, %v3333
      %v3335 = vrot.slane %v3334, 4
      %v3337 = vshll.u32 %v3230, 16
      %v3339 = vrot.slane %v3337, 5
      %v3340 = vsel %vm1087, %v3335, %v3339
      %v3341 = vshrl.u32 %v3230, 16
      %v3343 = vrot.slane %v3341, 4
      %v3344 = vor.u32 %v3343, %v3339
      %v3345 = vrot.slane %v3344, 4
      %v3347 = vshll.u32 %v3263, 16
      %v3349 = vrot.slane %v3347, 5
      %v3350 = vsel %vm1087, %v3345, %v3349
      %v3352 = vshrl.u32 %v3231, 16
      %v3354 = vrot.slane %v3352, 4
      %v3355 = vshll.u32 %v3231, 16
      %v3357 = vrot.slane %v3355, 5
      %v3358 = vor.u32 %v3354, %v3357
      %v3359 = vrot.slane %v3358, 4
      %v3361 = vshll.u32 %v3232, 16
      %v3363 = vrot.slane %v3361, 5
      %v3364 = vsel %vm1087, %v3359, %v3363
      %v3365 = vshrl.u32 %v3232, 16
      %v3367 = vrot.slane %v3365, 4
      %v3368 = vor.u32 %v3367, %v3363
      %v3369 = vrot.slane %v3368, 4
      %v3371 = vshll.u32 %v3264, 16
      %v3373 = vrot.slane %v3371, 5
      %v3374 = vsel %vm1087, %v3369, %v3373
      %v3376 = vshrl.u32 %v3233, 16
      %v3378 = vrot.slane %v3376, 4
      %v3379 = vshll.u32 %v3233, 16
      %v3381 = vrot.slane %v3379, 5
      %v3382 = vor.u32 %v3378, %v3381
      %v3383 = vrot.slane %v3382, 4
      %v3385 = vshll.u32 %v3234, 16
      %v3387 = vrot.slane %v3385, 5
      %v3388 = vsel %vm1087, %v3383, %v3387
      %v3389 = vshrl.u32 %v3234, 16
      %v3391 = vrot.slane %v3389, 4
      %v3392 = vor.u32 %v3391, %v3387
      %v3393 = vrot.slane %v3392, 4
      %v3395 = vshll.u32 %v3265, 16
      %v3397 = vrot.slane %v3395, 5
      %v3398 = vsel %vm1087, %v3393, %v3397
      %v3400 = vshrl.u32 %v3235, 16
      %v3402 = vrot.slane %v3400, 4
      %v3403 = vshll.u32 %v3235, 16
      %v3405 = vrot.slane %v3403, 5
      %v3406 = vor.u32 %v3402, %v3405
      %v3407 = vrot.slane %v3406, 4
      %v3409 = vshll.u32 %v3236, 16
      %v3411 = vrot.slane %v3409, 5
      %v3412 = vsel %vm1087, %v3407, %v3411
      %v3413 = vshrl.u32 %v3236, 16
      %v3415 = vrot.slane %v3413, 4
      %v3416 = vor.u32 %v3415, %v3411
      %v3417 = vrot.slane %v3416, 4
      %v3419 = vshll.u32 %v3266, 16
      %v3421 = vrot.slane %v3419, 5
      %v3422 = vsel %vm1087, %v3417, %v3421
      %v3424 = vshrl.u32 %v3237, 16
      %v3426 = vrot.slane %v3424, 4
      %v3427 = vshll.u32 %v3237, 16
      %v3429 = vrot.slane %v3427, 5
      %v3430 = vor.u32 %v3426, %v3429
      %v3431 = vrot.slane %v3430, 4
      %v3433 = vshll.u32 %v3238, 16
      %v3435 = vrot.slane %v3433, 5
      %v3436 = vsel %vm1087, %v3431, %v3435
      %v3437 = vshrl.u32 %v3238, 16
      %v3439 = vrot.slane %v3437, 4
      %v3440 = vor.u32 %v3439, %v3435
      %v3441 = vrot.slane %v3440, 4
      %v3443 = vshll.u32 %v3267, 16
      %v3445 = vrot.slane %v3443, 5
      %v3446 = vsel %vm1087, %v3441, %v3445
      %v3448 = vshrl.u32 %v3239, 16
      %v3450 = vrot.slane %v3448, 4
      %v3451 = vshll.u32 %v3239, 16
      %v3453 = vrot.slane %v3451, 5
      %v3454 = vor.u32 %v3450, %v3453
      %v3455 = vrot.slane %v3454, 4
      %v3457 = vshll.u32 %v3240, 16
      %v3459 = vrot.slane %v3457, 5
      %v3460 = vsel %vm1087, %v3455, %v3459
      %v3461 = vshrl.u32 %v3240, 16
      %v3463 = vrot.slane %v3461, 4
      %v3464 = vor.u32 %v3463, %v3459
      %v3465 = vrot.slane %v3464, 4
      %v3467 = vshll.u32 %v3268, 16
      %v3469 = vrot.slane %v3467, 5
      %v3470 = vsel %vm1087, %v3465, %v3469
      %v3472 = vshrl.u32 %v3241, 16
      %v3474 = vrot.slane %v3472, 4
      %v3475 = vshll.u32 %v3241, 16
      %v3477 = vrot.slane %v3475, 5
      %v3478 = vor.u32 %v3474, %v3477
      %v3479 = vrot.slane %v3478, 4
      %v3481 = vshll.u32 %v3242, 16
      %v3483 = vrot.slane %v3481, 5
      %v3484 = vsel %vm1087, %v3479, %v3483
      %v3485 = vshrl.u32 %v3242, 16
      %v3487 = vrot.slane %v3485, 4
      %v3488 = vor.u32 %v3487, %v3483
      %v3489 = vrot.slane %v3488, 4
      %v3491 = vshll.u32 %v3269, 16
      %v3493 = vrot.slane %v3491, 5
      %v3494 = vsel %vm1087, %v3489, %v3493
      %v3496 = vshrl.u32 %v3243, 16
      %v3498 = vrot.slane %v3496, 4
      %v3499 = vshll.u32 %v3243, 16
      %v3501 = vrot.slane %v3499, 5
      %v3502 = vor.u32 %v3498, %v3501
      %v3503 = vrot.slane %v3502, 4
      %v3505 = vshll.u32 %v3244, 16
      %v3507 = vrot.slane %v3505, 5
      %v3508 = vsel %vm1087, %v3503, %v3507
      %v3509 = vshrl.u32 %v3244, 16
      %v3511 = vrot.slane %v3509, 4
      %v3512 = vor.u32 %v3511, %v3507
      %v3513 = vrot.slane %v3512, 4
      %v3515 = vshll.u32 %v3270, 16
      %v3517 = vrot.slane %v3515, 5
      %v3518 = vsel %vm1087, %v3513, %v3517
      %v3520 = vshrl.u32 %v3245, 16
      %v3522 = vrot.slane %v3520, 4
      %v3523 = vshll.u32 %v3245, 16
      %v3525 = vrot.slane %v3523, 5
      %v3526 = vor.u32 %v3522, %v3525
      %v3527 = vrot.slane %v3526, 4
      %v3529 = vshll.u32 %v3246, 16
      %v3531 = vrot.slane %v3529, 5
      %v3532 = vsel %vm1087, %v3527, %v3531
      %v3533 = vshrl.u32 %v3246, 16
      %v3535 = vrot.slane %v3533, 4
      %v3536 = vor.u32 %v3535, %v3531
      %v3537 = vrot.slane %v3536, 4
      %v3539 = vshll.u32 %v3271, 16
      %v3541 = vrot.slane %v3539, 5
      %v3542 = vsel %vm1087, %v3537, %v3541
      %v3544 = vshrl.u32 %v3247, 16
      %v3546 = vrot.slane %v3544, 4
      %v3547 = vshll.u32 %v3247, 16
      %v3549 = vrot.slane %v3547, 5
      %v3550 = vor.u32 %v3546, %v3549
      %v3551 = vrot.slane %v3550, 4
      %v3553 = vshll.u32 %v3248, 16
      %v3555 = vrot.slane %v3553, 5
      %v3556 = vsel %vm1087, %v3551, %v3555
      %v3557 = vshrl.u32 %v3248, 16
      %v3559 = vrot.slane %v3557, 4
      %v3560 = vor.u32 %v3559, %v3555
      %v3561 = vrot.slane %v3560, 4
      %v3563 = vshll.u32 %v3272, 16
      %v3565 = vrot.slane %v3563, 5
      %v3566 = vsel %vm1087, %v3561, %v3565
      %v3568 = vshrl.u32 %v3249, 16
      %v3570 = vrot.slane %v3568, 4
      %v3571 = vshll.u32 %v3249, 16
      %v3573 = vrot.slane %v3571, 5
      %v3574 = vor.u32 %v3570, %v3573
      %v3575 = vrot.slane %v3574, 4
      %v3577 = vshll.u32 %v3250, 16
      %v3579 = vrot.slane %v3577, 5
      %v3580 = vsel %vm1087, %v3575, %v3579
      %v3581 = vshrl.u32 %v3250, 16
      %v3583 = vrot.slane %v3581, 4
      %v3584 = vor.u32 %v3583, %v3579
      %v3585 = vrot.slane %v3584, 4
      %v3587 = vshll.u32 %v3273, 16
      %v3589 = vrot.slane %v3587, 5
      %v3590 = vsel %vm1087, %v3585, %v3589
      %v3592 = vshrl.u32 %v3251, 16
      %v3594 = vrot.slane %v3592, 4
      %v3595 = vshll.u32 %v3251, 16
      %v3597 = vrot.slane %v3595, 5
      %v3598 = vor.u32 %v3594, %v3597
      %v3599 = vrot.slane %v3598, 4
      %v3601 = vshll.u32 %v3252, 16
      %v3603 = vrot.slane %v3601, 5
      %v3604 = vsel %vm1087, %v3599, %v3603
      %v3605 = vshrl.u32 %v3252, 16
      %v3607 = vrot.slane %v3605, 4
      %v3608 = vor.u32 %v3607, %v3603
      %v3609 = vrot.slane %v3608, 4
      %v3611 = vshll.u32 %v3274, 16
      %v3613 = vrot.slane %v3611, 5
      %v3614 = vsel %vm1087, %v3609, %v3613
      %v3616 = vshrl.u32 %v3253, 16
      %v3618 = vrot.slane %v3616, 4
      %v3619 = vshll.u32 %v3253, 16
      %v3621 = vrot.slane %v3619, 5
      %v3622 = vor.u32 %v3618, %v3621
      %v3623 = vrot.slane %v3622, 4
      %v3625 = vshll.u32 %v3254, 16
      %v3627 = vrot.slane %v3625, 5
      %v3628 = vsel %vm1087, %v3623, %v3627
      %v3629 = vshrl.u32 %v3254, 16
      %v3631 = vrot.slane %v3629, 4
      %v3632 = vor.u32 %v3631, %v3627
      %v3633 = vrot.slane %v3632, 4
      %v3635 = vshll.u32 %v3275, 16
      %v3637 = vrot.slane %v3635, 5
      %v3638 = vsel %vm1087, %v3633, %v3637
      %v3640 = vshrl.u32 %v3255, 16
      %v3642 = vrot.slane %v3640, 4
      %v3643 = vshll.u32 %v3255, 16
      %v3645 = vrot.slane %v3643, 5
      %v3646 = vor.u32 %v3642, %v3645
      %v3647 = vrot.slane %v3646, 4
      %v3649 = vshll.u32 %v3256, 16
      %v3651 = vrot.slane %v3649, 5
      %v3652 = vsel %vm1087, %v3647, %v3651
      %v3653 = vshrl.u32 %v3256, 16
      %v3655 = vrot.slane %v3653, 4
      %v3656 = vor.u32 %v3655, %v3651
      %v3657 = vrot.slane %v3656, 4
      %v3659 = vshll.u32 %v3276, 16
      %v3661 = vrot.slane %v3659, 5
      %v3662 = vsel %vm1087, %v3657, %v3661
      %v3664 = vshrl.u32 %v3257, 16
      %v3666 = vrot.slane %v3664, 4
      %v3667 = vshll.u32 %v3257, 16
      %v3669 = vrot.slane %v3667, 5
      %v3670 = vor.u32 %v3666, %v3669
      %v3671 = vrot.slane %v3670, 4
      %v3673 = vshll.u32 %v3258, 16
      %v3675 = vrot.slane %v3673, 5
      %v3676 = vsel %vm1087, %v3671, %v3675
      %v3677 = vshrl.u32 %v3258, 16
      %v3679 = vrot.slane %v3677, 4
      %v3680 = vor.u32 %v3679, %v3675
      %v3681 = vrot.slane %v3680, 4
      %v3683 = vshll.u32 %v3277, 16
      %v3685 = vrot.slane %v3683, 5
      %v3686 = vsel %vm1087, %v3681, %v3685
      %v3688 = vshrl.u32 %v3259, 16
      %v3690 = vrot.slane %v3688, 4
      %v3691 = vshll.u32 %v3259, 16
      %v3693 = vrot.slane %v3691, 5
      %v3694 = vor.u32 %v3690, %v3693
      %v3695 = vrot.slane %v3694, 4
      %v3697 = vshll.u32 %v3260, 16
      %v3699 = vrot.slane %v3697, 5
      %v3700 = vsel %vm1087, %v3695, %v3699
      %v3701 = vshrl.u32 %v3260, 16
      %v3703 = vrot.slane %v3701, 4
      %v3704 = vor.u32 %v3703, %v3699
      %v3705 = vrot.slane %v3704, 4
      %v3707 = vshll.u32 %v3278, 16
      %v3709 = vrot.slane %v3707, 5
      %v3710 = vsel %vm1087, %v3705, %v3709
      %v3711 = vld [vmem:[#allocation3] sm:$0xe]
      %v3712 = vld [vmem:[#allocation3 + $0xc] sm:$0xe]
      %v3713 = vld [vmem:[#allocation3 + $0x18] sm:$0xe]
      %v3714 = vld [vmem:[#allocation3 + $0x24] sm:$0xe]
      %v3715 = vld [vmem:[#allocation3 + $0x30] sm:$0xe]
      %v3716 = vld [vmem:[#allocation3 + $0x3c] sm:$0xe]
      %v3717 = vld [vmem:[#allocation3 + $0x48] sm:$0xe]
      %v3718 = vld [vmem:[#allocation3 + $0x54] sm:$0xe]
      %v3719 = vld [vmem:[#allocation3 + $0x60] sm:$0xe]
      %v3720 = vld [vmem:[#allocation3 + $0x6c] sm:$0xe]
      %v3721 = vld [vmem:[#allocation3 + $0x78] sm:$0xe]
      %v3722 = vld [vmem:[#allocation3 + $0x84] sm:$0xe]
      %v3723 = vld [vmem:[#allocation3 + $0x90] sm:$0xe]
      %v3724 = vld [vmem:[#allocation3 + $0x9c] sm:$0xe]
      %v3725 = vld [vmem:[#allocation3 + $0xa8] sm:$0xe]
      %v3726 = vld [vmem:[#allocation3 + $0xb4] sm:$0xe]
      %v3727 = vld [vmem:[#allocation3 + $0xc0] sm:$0xe]
      %v3728 = vld [vmem:[#allocation3 + $0xcc] sm:$0xe]
      %v3783 = vrot.slane %v3711, 5
      %v3784 = vrot.slane %v3783, 4
      %v3785 = vrot.slane %v3226, 5
      %v3786 = vsel %vm1594, %v3784, %v3785
      %v3787 = vrot.slane %v3785, 4
      %v3788 = vrot.slane %v3261, 5
      %v3789 = vsel %vm1594, %v3787, %v3788
      %v3790 = vrot.slane %v3712, 5
      %v3791 = vrot.slane %v3790, 4
      %v3792 = vrot.slane %v3228, 5
      %v3793 = vsel %vm1594, %v3791, %v3792
      %v3794 = vrot.slane %v3792, 4
      %v3795 = vrot.slane %v3262, 5
      %v3796 = vsel %vm1594, %v3794, %v3795
      %v3797 = vrot.slane %v3713, 5
      %v3798 = vrot.slane %v3797, 4
      %v3799 = vrot.slane %v3230, 5
      %v3800 = vsel %vm1594, %v3798, %v3799
      %v3801 = vrot.slane %v3799, 4
      %v3802 = vrot.slane %v3263, 5
      %v3803 = vsel %vm1594, %v3801, %v3802
      %v3804 = vrot.slane %v3714, 5
      %v3805 = vrot.slane %v3804, 4
      %v3806 = vrot.slane %v3232, 5
      %v3807 = vsel %vm1594, %v3805, %v3806
      %v3808 = vrot.slane %v3806, 4
      %v3809 = vrot.slane %v3264, 5
      %v3810 = vsel %vm1594, %v3808, %v3809
      %v3811 = vrot.slane %v3715, 5
      %v3812 = vrot.slane %v3811, 4
      %v3813 = vrot.slane %v3234, 5
      %v3814 = vsel %vm1594, %v3812, %v3813
      %v3815 = vrot.slane %v3813, 4
      %v3816 = vrot.slane %v3265, 5
      %v3817 = vsel %vm1594, %v3815, %v3816
      %v3818 = vrot.slane %v3716, 5
      %v3819 = vrot.slane %v3818, 4
      %v3820 = vrot.slane %v3236, 5
      %v3821 = vsel %vm1594, %v3819, %v3820
      %v3822 = vrot.slane %v3820, 4
      %v3823 = vrot.slane %v3266, 5
      %v3824 = vsel %vm1594, %v3822, %v3823
      %v3825 = vrot.slane %v3717, 5
      %v3826 = vrot.slane %v3825, 4
      %v3827 = vrot.slane %v3238, 5
      %v3828 = vsel %vm1594, %v3826, %v3827
      %v3829 = vrot.slane %v3827, 4
      %v3830 = vrot.slane %v3267, 5
      %v3831 = vsel %vm1594, %v3829, %v3830
      %v3832 = vrot.slane %v3718, 5
      %v3833 = vrot.slane %v3832, 4
      %v3834 = vrot.slane %v3240, 5
      %v3835 = vsel %vm1594, %v3833, %v3834
      %v3836 = vrot.slane %v3834, 4
      %v3837 = vrot.slane %v3268, 5
      %v3838 = vsel %vm1594, %v3836, %v3837
      %v3839 = vrot.slane %v3719, 5
      %v3840 = vrot.slane %v3839, 4
      %v3841 = vrot.slane %v3242, 5
      %v3842 = vsel %vm1594, %v3840, %v3841
      %v3843 = vrot.slane %v3841, 4
      %v3844 = vrot.slane %v3269, 5
      %v3845 = vsel %vm1594, %v3843, %v3844
      %v3846 = vrot.slane %v3720, 5
      %v3847 = vrot.slane %v3846, 4
      %v3848 = vrot.slane %v3244, 5
      %v3849 = vsel %vm1594, %v3847, %v3848
      %v3850 = vrot.slane %v3848, 4
      %v3851 = vrot.slane %v3270, 5
      %v3852 = vsel %vm1594, %v3850, %v3851
      %v3853 = vrot.slane %v3721, 5
      %v3854 = vrot.slane %v3853, 4
      %v3855 = vrot.slane %v3246, 5
      %v3856 = vsel %vm1594, %v3854, %v3855
      %v3857 = vrot.slane %v3855, 4
      %v3858 = vrot.slane %v3271, 5
      %v3859 = vsel %vm1594, %v3857, %v3858
      %v3860 = vrot.slane %v3722, 5
      %v3861 = vrot.slane %v3860, 4
      %v3862 = vrot.slane %v3248, 5
      %v3863 = vsel %vm1594, %v3861, %v3862
      %v3864 = vrot.slane %v3862, 4
      %v3865 = vrot.slane %v3272, 5
      %v3866 = vsel %vm1594, %v3864, %v3865
      %v3867 = vrot.slane %v3723, 5
      %v3868 = vrot.slane %v3867, 4
      %v3869 = vrot.slane %v3250, 5
      %v3870 = vsel %vm1594, %v3868, %v3869
      %v3871 = vrot.slane %v3869, 4
      %v3872 = vrot.slane %v3273, 5
      %v3873 = vsel %vm1594, %v3871, %v3872
      %v3874 = vrot.slane %v3724, 5
      %v3875 = vrot.slane %v3874, 4
      %v3876 = vrot.slane %v3252, 5
      %v3877 = vsel %vm1594, %v3875, %v3876
      %v3878 = vrot.slane %v3876, 4
      %v3879 = vrot.slane %v3274, 5
      %v3880 = vsel %vm1594, %v3878, %v3879
      %v3881 = vrot.slane %v3725, 5
      %v3882 = vrot.slane %v3881, 4
      %v3883 = vrot.slane %v3254, 5
      %v3884 = vsel %vm1594, %v3882, %v3883
      %v3885 = vrot.slane %v3883, 4
      %v3886 = vrot.slane %v3275, 5
      %v3887 = vsel %vm1594, %v3885, %v3886
      %v3888 = vrot.slane %v3726, 5
      %v3889 = vrot.slane %v3888, 4
      %v3890 = vrot.slane %v3256, 5
      %v3891 = vsel %vm1594, %v3889, %v3890
      %v3892 = vrot.slane %v3890, 4
      %v3893 = vrot.slane %v3276, 5
      %v3894 = vsel %vm1594, %v3892, %v3893
      %v3895 = vrot.slane %v3727, 5
      %v3896 = vrot.slane %v3895, 4
      %v3897 = vrot.slane %v3258, 5
      %v3898 = vsel %vm1594, %v3896, %v3897
      %v3899 = vrot.slane %v3897, 4
      %v3900 = vrot.slane %v3277, 5
      %v3901 = vsel %vm1594, %v3899, %v3900
      %v3902 = vrot.slane %v3728, 5
      %v3903 = vrot.slane %v3902, 4
      %v3904 = vrot.slane %v3260, 5
      %v3905 = vsel %vm1594, %v3903, %v3904
      %v3906 = vrot.slane %v3904, 4
      %v3907 = vrot.slane %v3278, 5
      %v3908 = vsel %vm1594, %v3906, %v3907
      %v3909 = vld [vmem:[%s3] sm:$0xf]
      %v3910 = vld [vmem:[%s3 + $0x4] sm:$0xf]
      %v3911 = vld [vmem:[%s3 + $0x8] sm:$0xf]
      %v3912 = vld [vmem:[%s3 + $0xc] sm:$0xf]
      %v3913 = vld [vmem:[%s3 + $0x10] sm:$0xf]
      %v3914 = vld [vmem:[%s3 + $0x14] sm:$0xf]
      %v3915 = vld [vmem:[%s3 + $0x18] sm:$0xf]
      %v3916 = vld [vmem:[%s3 + $0x1c] sm:$0xf]
      %v3917 = vld [vmem:[%s3 + $0x20] sm:$0xf]
      %v3918 = vld [vmem:[%s3 + $0x24] sm:$0xf]
      %v3919 = vld [vmem:[%s3 + $0x28] sm:$0xf]
      %v3920 = vld [vmem:[%s3 + $0x2c] sm:$0xf]
      %v3921 = vld [vmem:[%s3 + $0x30] sm:$0xf]
      %v3922 = vld [vmem:[%s3 + $0x34] sm:$0xf]
      %v3923 = vld [vmem:[%s3 + $0x38] sm:$0xf]
      %v3924 = vld [vmem:[%s3 + $0x3c] sm:$0xf]
      %s3925 = scalar_lea.vmem %s3, 64
      %v3926 = vld [vmem:[%s3925] sm:$0xf]
      %v3927 = vld [vmem:[%s3925 + $0x4] sm:$0xf]
      %v3928 = vld [vmem:[%s3925 + $0x8] sm:$0xf]
      %v3929 = vld [vmem:[%s3925 + $0xc] sm:$0xf]
      %v3930 = vld [vmem:[%s3925 + $0x10] sm:$0xf]
      %v3931 = vld [vmem:[%s3925 + $0x14] sm:$0xf]
      %v3932 = vld [vmem:[%s3925 + $0x18] sm:$0xf]
      %v3933 = vld [vmem:[%s3925 + $0x1c] sm:$0xf]
      %v3934 = vld [vmem:[%s3925 + $0x20] sm:$0xf]
      %v3935 = vld [vmem:[%s3925 + $0x24] sm:$0xf]
      %v3936 = vld [vmem:[%s3925 + $0x28] sm:$0xf]
      %v3937 = vld [vmem:[%s3925 + $0x2c] sm:$0xf]
      %v3938 = vld [vmem:[%s3925 + $0x30] sm:$0xf]
      %v3939 = vld [vmem:[%s3925 + $0x34] sm:$0xf]
      %v3940 = vld [vmem:[%s3925 + $0x38] sm:$0xf]
      %v3941 = vld [vmem:[%s3925 + $0x3c] sm:$0xf]
      %v3958 = vunpack.c.l.b16 %v3227
      %v3959 = vunpack.c.l.b16 %v3228
      %v3960 = vunpack.c.l.b16 %v3229
      %v3961 = vunpack.c.l.b16 %v3230
      %v3962 = vunpack.c.l.b16 %v3231
      %v3963 = vunpack.c.l.b16 %v3232
      %v3964 = vunpack.c.l.b16 %v3233
      %v3965 = vunpack.c.l.b16 %v3234
      %v3966 = vunpack.c.l.b16 %v3235
      %v3967 = vunpack.c.l.b16 %v3236
      %v3968 = vunpack.c.l.b16 %v3237
      %v3969 = vunpack.c.l.b16 %v3238
      %v3970 = vunpack.c.l.b16 %v3239
      %v3971 = vunpack.c.l.b16 %v3240
      %v3972 = vunpack.c.l.b16 %v3241
      %v3973 = vunpack.c.l.b16 %v3242
      %v3974 = vunpack.c.l.b16 %v3243
      %v3975 = vunpack.c.l.b16 %v3244
      %v3976 = vunpack.c.l.b16 %v3245
      %v3977 = vunpack.c.l.b16 %v3246
      %v3978 = vunpack.c.l.b16 %v3247
      %v3979 = vunpack.c.l.b16 %v3248
      %v3980 = vunpack.c.l.b16 %v3249
      %v3981 = vunpack.c.l.b16 %v3250
      %v3982 = vunpack.c.l.b16 %v3251
      %v3983 = vunpack.c.l.b16 %v3252
      %v3984 = vunpack.c.l.b16 %v3253
      %v3985 = vunpack.c.l.b16 %v3254
      %v3986 = vunpack.c.l.b16 %v3255
      %v3987 = vunpack.c.l.b16 %v3256
      %v3988 = vunpack.c.l.b16 %v3257
      %v3989 = vunpack.c.l.b16 %v3258
      %v3990 = vpack.c.b16 %v3959, %v3958
      %v3991 = vpack.c.b16 %v3961, %v3960
      %v3992 = vpack.c.b16 %v3963, %v3962
      %v3993 = vpack.c.b16 %v3965, %v3964
      %v3994 = vpack.c.b16 %v3967, %v3966
      %v3995 = vpack.c.b16 %v3969, %v3968
      %v3996 = vpack.c.b16 %v3971, %v3970
      %v3997 = vpack.c.b16 %v3973, %v3972
      %v3998 = vpack.c.b16 %v3975, %v3974
      %v3999 = vpack.c.b16 %v3977, %v3976
      %v4000 = vpack.c.b16 %v3979, %v3978
      %v4001 = vpack.c.b16 %v3981, %v3980
      %v4002 = vpack.c.b16 %v3983, %v3982
      %v4003 = vpack.c.b16 %v3985, %v3984
      %v4004 = vpack.c.b16 %v3987, %v3986
      %v4005 = vpack.c.b16 %v3989, %v3988
      %v4038 = vunpack.c.l.b16 %v3926
      %v4039 = vunpack.c.l.b16 %v3927
      %v4040 = vunpack.c.l.b16 %v3928
      %v4041 = vunpack.c.l.b16 %v3929
      %v4042 = vunpack.c.l.b16 %v3930
      %v4043 = vunpack.c.l.b16 %v3931
      %v4044 = vunpack.c.l.b16 %v3932
      %v4045 = vunpack.c.l.b16 %v3933
      %v4046 = vunpack.c.l.b16 %v3934
      %v4047 = vunpack.c.l.b16 %v3935
      %v4048 = vunpack.c.l.b16 %v3936
      %v4049 = vunpack.c.l.b16 %v3937
      %v4050 = vunpack.c.l.b16 %v3938
      %v4051 = vunpack.c.l.b16 %v3939
      %v4052 = vunpack.c.l.b16 %v3940
      %v4053 = vunpack.c.l.b16 %v3941
      %v4054 = vpack.c.b16 %v4039, %v4038
      %v4055 = vpack.c.b16 %v4041, %v4040
      %v4056 = vpack.c.b16 %v4043, %v4042
      %v4057 = vpack.c.b16 %v4045, %v4044
      %v4058 = vpack.c.b16 %v4047, %v4046
      %v4059 = vpack.c.b16 %v4049, %v4048
      %v4060 = vpack.c.b16 %v4051, %v4050
      %v4061 = vpack.c.b16 %v4053, %v4052
      %4070 = vmatprep.subr.bf16.mxu0 0
      %4071 = vmatpush1.bf16.msra.mxu0 %v4054
      %4072 = vmatprep.subr.bf16.mxu0 0
      %4073 = vmatpush1.bf16.msra.mxu0 %v4055
      %4074 = vmatprep.subr.bf16.mxu0 0
      %4075 = vmatpush1.bf16.msra.mxu0 %v4056
      %4076 = vmatprep.subr.bf16.mxu0 0
      %4077 = vmatpush1.bf16.msra.mxu0 %v4057
      %4078 = vmatprep.subr.bf16.mxu0 0
      %4079 = vmatpush1.bf16.msra.mxu0 %v4058
      %4080 = vmatprep.subr.bf16.mxu0 0
      %4081 = vmatpush1.bf16.msra.mxu0 %v4059
      %4082 = vmatprep.subr.bf16.mxu0 0
      %4083 = vmatpush1.bf16.msra.mxu0 %v4060
      %4084 = vmatprep.subr.bf16.mxu0 0
      %4085 = vmatpush1.bf16.msra.mxu0 %v4061
      %4086 = vmatprep.subr.bf16.mxu0 0
      %4087 = vmatpush1.bf16.msra.mxu0 0
      %4088 = vmatprep.subr.bf16.mxu0 0
      %4089 = vmatpush1.bf16.msra.mxu0 0
      %4090 = vmatprep.subr.bf16.mxu0 0
      %4091 = vmatpush1.bf16.msra.mxu0 0
      %4092 = vmatprep.subr.bf16.mxu0 0
      %4093 = vmatpush1.bf16.msra.mxu0 0
      %4094 = vmatprep.subr.bf16.mxu0 0
      %4095 = vmatpush1.bf16.msra.mxu0 0
      %4096 = vmatprep.subr.bf16.mxu0 0
      %4097 = vmatpush1.bf16.msra.mxu0 0
      %4098 = vmatprep.subr.bf16.mxu0 0
      %4099 = vmatpush1.bf16.msra.mxu0 0
      %4100 = vmatprep.subr.bf16.mxu0 0
      %4101 = vmatpush1.bf16.msra.mxu0 0
      %4102 = vmatprep.mubr.bf16.mxu0 0
      %4103 = vmatmul.mubr.bf16.gmra.mrb[0].mxu0 %v3990
      %v4104 = vpop.f32.mrb[0].mxu0
      %v4105 = vadd.f32 0.0, %v4104
      %v4106 = vpop.f32.mrb[0].mxu0
      %v4107 = vpop.f32.mrb[0].mxu0
      %v4108 = vadd.f32 0.0, %v4107
      %v4109 = vpop.f32.mrb[0].mxu0
      %4110 = vmatprep.mubr.bf16.mxu0 0
      %4111 = vmatmul.mubr.bf16.gmra.mrb[0].mxu0 %v3991
      %v4112 = vpop.f32.mrb[0].mxu0
      %v4113 = vadd.f32 0.0, %v4112
      %v4114 = vpop.f32.mrb[0].mxu0
      %v4115 = vpop.f32.mrb[0].mxu0
      %v4116 = vadd.f32 0.0, %v4115
      %v4117 = vpop.f32.mrb[0].mxu0
      %4118 = vmatprep.mubr.bf16.mxu0 0
      %4119 = vmatmul.mubr.bf16.gmra.mrb[0].mxu0 %v3992
      %v4120 = vpop.f32.mrb[0].mxu0
      %v4121 = vadd.f32 0.0, %v4120
      %v4122 = vpop.f32.mrb[0].mxu0
      %v4123 = vpop.f32.mrb[0].mxu0
      %v4124 = vadd.f32 0.0, %v4123
      %v4125 = vpop.f32.mrb[0].mxu0
      %4126 = vmatprep.mubr.bf16.mxu0 0
      %4127 = vmatmul.mubr.bf16.gmra.mrb[0].mxu0 %v3993
      %v4128 = vpop.f32.mrb[0].mxu0
      %v4129 = vadd.f32 0.0, %v4128
      %v4130 = vpop.f32.mrb[0].mxu0
      %v4131 = vpop.f32.mrb[0].mxu0
      %v4132 = vadd.f32 0.0, %v4131
      %v4133 = vpop.f32.mrb[0].mxu0
      %4134 = vmatprep.mubr.bf16.mxu0 0
      %4135 = vmatmul.mubr.bf16.gmra.mrb[0].mxu0 %v3994
      %v4136 = vpop.f32.mrb[0].mxu0
      %v4137 = vadd.f32 0.0, %v4136
      %v4138 = vpop.f32.mrb[0].mxu0
      %v4139 = vpop.f32.mrb[0].mxu0
      %v4140 = vadd.f32 0.0, %v4139
      %v4141 = vpop.f32.mrb[0].mxu0
      %4142 = vmatprep.mubr.bf16.mxu0 0
      %4143 = vmatmul.mubr.bf16.gmra.mrb[0].mxu0 %v3995
      %v4144 = vpop.f32.mrb[0].mxu0
      %v4145 = vadd.f32 0.0, %v4144
      %v4146 = vpop.f32.mrb[0].mxu0
      %v4147 = vpop.f32.mrb[0].mxu0
      %v4148 = vadd.f32 0.0, %v4147
      %v4149 = vpop.f32.mrb[0].mxu0
      %4150 = vmatprep.mubr.bf16.mxu0 0
      %4151 = vmatmul.mubr.bf16.gmra.mrb[0].mxu0 %v3996
      %v4152 = vpop.f32.mrb[0].mxu0
      %v4153 = vadd.f32 0.0, %v4152
      %v4154 = vpop.f32.mrb[0].mxu0
      %v4155 = vpop.f32.mrb[0].mxu0
      %v4156 = vadd.f32 0.0, %v4155
      %v4157 = vpop.f32.mrb[0].mxu0
      %4158 = vmatprep.mubr.bf16.mxu0 0
      %4159 = vmatmul.mubr.bf16.gmra.mrb[0].mxu0 %v3997
      %v4160 = vpop.f32.mrb[0].mxu0
      %v4161 = vadd.f32 0.0, %v4160
      %v4162 = vpop.f32.mrb[0].mxu0
      %v4163 = vpop.f32.mrb[0].mxu0
      %v4164 = vadd.f32 0.0, %v4163
      %v4165 = vpop.f32.mrb[0].mxu0
      %4166 = vmatprep.mubr.bf16.mxu0 0
      %4167 = vmatmul.mubr.bf16.gmra.mrb[0].mxu0 %v3998
      %v4168 = vpop.f32.mrb[0].mxu0
      %v4169 = vadd.f32 0.0, %v4168
      %v4170 = vpop.f32.mrb[0].mxu0
      %v4171 = vpop.f32.mrb[0].mxu0
      %v4172 = vadd.f32 0.0, %v4171
      %v4173 = vpop.f32.mrb[0].mxu0
      %4174 = vmatprep.mubr.bf16.mxu0 0
      %4175 = vmatmul.mubr.bf16.gmra.mrb[0].mxu0 %v3999
      %v4176 = vpop.f32.mrb[0].mxu0
      %v4177 = vadd.f32 0.0, %v4176
      %v4178 = vpop.f32.mrb[0].mxu0
      %v4179 = vpop.f32.mrb[0].mxu0
      %v4180 = vadd.f32 0.0, %v4179
      %v4181 = vpop.f32.mrb[0].mxu0
      %4182 = vmatprep.mubr.bf16.mxu0 0
      %4183 = vmatmul.mubr.bf16.gmra.mrb[0].mxu0 %v4000
      %v4184 = vpop.f32.mrb[0].mxu0
      %v4185 = vadd.f32 0.0, %v4184
      %v4186 = vpop.f32.mrb[0].mxu0
      %v4187 = vpop.f32.mrb[0].mxu0
      %v4188 = vadd.f32 0.0, %v4187
      %v4189 = vpop.f32.mrb[0].mxu0
      %4190 = vmatprep.mubr.bf16.mxu0 0
      %4191 = vmatmul.mubr.bf16.gmra.mrb[0].mxu0 %v4001
      %v4192 = vpop.f32.mrb[0].mxu0
      %v4193 = vadd.f32 0.0, %v4192
      %v4194 = vpop.f32.mrb[0].mxu0
      %v4195 = vpop.f32.mrb[0].mxu0
      %v4196 = vadd.f32 0.0, %v4195
      %v4197 = vpop.f32.mrb[0].mxu0
      %4198 = vmatprep.mubr.bf16.mxu0 0
      %4199 = vmatmul.mubr.bf16.gmra.mrb[0].mxu0 %v4002
      %v4200 = vpop.f32.mrb[0].mxu0
      %v4201 = vadd.f32 0.0, %v4200
      %v4202 = vpop.f32.mrb[0].mxu0
      %v4203 = vpop.f32.mrb[0].mxu0
      %v4204 = vadd.f32 0.0, %v4203
      %v4205 = vpop.f32.mrb[0].mxu0
      %4206 = vmatprep.mubr.bf16.mxu0 0
      %4207 = vmatmul.mubr.bf16.gmra.mrb[0].mxu0 %v4003
      %v4208 = vpop.f32.mrb[0].mxu0
      %v4209 = vadd.f32 0.0, %v4208
      %v4210 = vpop.f32.mrb[0].mxu0
      %v4211 = vpop.f32.mrb[0].mxu0
      %v4212 = vadd.f32 0.0, %v4211
      %v4213 = vpop.f32.mrb[0].mxu0
      %4214 = vmatprep.mubr.bf16.mxu0 0
      %4215 = vmatmul.mubr.bf16.gmra.mrb[0].mxu0 %v4004
      %v4216 = vpop.f32.mrb[0].mxu0
      %v4217 = vadd.f32 0.0, %v4216
      %v4218 = vpop.f32.mrb[0].mxu0
      %v4219 = vpop.f32.mrb[0].mxu0
      %v4220 = vadd.f32 0.0, %v4219
      %v4221 = vpop.f32.mrb[0].mxu0
      %4222 = vmatprep.mubr.bf16.mxu0 0
      %4223 = vmatmul.mubr.bf16.gmra.mrb[0].mxu0 %v4005
      %v4224 = vpop.f32.mrb[0].mxu0
      %v4225 = vadd.f32 0.0, %v4224
      %v4226 = vpop.f32.mrb[0].mxu0
      %v4227 = vpop.f32.mrb[0].mxu0
      %v4228 = vadd.f32 0.0, %v4227
      %v4229 = vpop.f32.mrb[0].mxu0
      %4230 = vdwg.mxu0
      %v4232 = vunpack.c.l.b16 %v3225
      %v4233 = vunpack.c.l.b16 %v3226
      %v4234 = vpack.c.b16 %v4233, %v4232
      %v4252 = vunpack.c.l.b16 %v3909
      %v4253 = vunpack.c.l.b16 %v3910
      %v4254 = vunpack.c.l.b16 %v3911
      %v4255 = vunpack.c.l.b16 %v3912
      %v4256 = vunpack.c.l.b16 %v3913
      %v4257 = vunpack.c.l.b16 %v3914
      %v4258 = vunpack.c.l.b16 %v3915
      %v4259 = vunpack.c.l.b16 %v3916
      %v4260 = vunpack.c.l.b16 %v3917
      %v4261 = vunpack.c.l.b16 %v3918
      %v4262 = vunpack.c.l.b16 %v3919
      %v4263 = vunpack.c.l.b16 %v3920
      %v4264 = vunpack.c.l.b16 %v3921
      %v4265 = vunpack.c.l.b16 %v3922
      %v4266 = vunpack.c.l.b16 %v3923
      %v4267 = vunpack.c.l.b16 %v3924
      %v4268 = vpack.c.b16 %v4253, %v4252
      %v4269 = vpack.c.b16 %v4255, %v4254
      %v4270 = vpack.c.b16 %v4257, %v4256
      %v4271 = vpack.c.b16 %v4259, %v4258
      %v4272 = vpack.c.b16 %v4261, %v4260
      %v4273 = vpack.c.b16 %v4263, %v4262
      %v4274 = vpack.c.b16 %v4265, %v4264
      %v4275 = vpack.c.b16 %v4267, %v4266
      %4284 = vmatprep.subr.bf16.mxu0 0
      %4285 = vmatpush1.bf16.msra.mxu0 %v4268
      %4286 = vmatprep.subr.bf16.mxu0 0
      %4287 = vmatpush1.bf16.msra.mxu0 %v4269
      %4288 = vmatprep.subr.bf16.mxu0 0
      %4289 = vmatpush1.bf16.msra.mxu0 %v4270
      %4290 = vmatprep.subr.bf16.mxu0 0
      %4291 = vmatpush1.bf16.msra.mxu0 %v4271
      %4292 = vmatprep.subr.bf16.mxu0 0
      %4293 = vmatpush1.bf16.msra.mxu0 %v4272
      %4294 = vmatprep.subr.bf16.mxu0 0
      %4295 = vmatpush1.bf16.msra.mxu0 %v4273
      %4296 = vmatprep.subr.bf16.mxu0 0
      %4297 = vmatpush1.bf16.msra.mxu0 %v4274
      %4298 = vmatprep.subr.bf16.mxu0 0
      %4299 = vmatpush1.bf16.msra.mxu0 %v4275
      %4300 = vmatprep.subr.bf16.mxu0 0
      %4301 = vmatpush1.bf16.msra.mxu0 0
      %4302 = vmatprep.subr.bf16.mxu0 0
      %4303 = vmatpush1.bf16.msra.mxu0 0
      %4304 = vmatprep.subr.bf16.mxu0 0
      %4305 = vmatpush1.bf16.msra.mxu0 0
      %4306 = vmatprep.subr.bf16.mxu0 0
      %4307 = vmatpush1.bf16.msra.mxu0 0
      %4308 = vmatprep.subr.bf16.mxu0 0
      %4309 = vmatpush1.bf16.msra.mxu0 0
      %4310 = vmatprep.subr.bf16.mxu0 0
      %4311 = vmatpush1.bf16.msra.mxu0 0
      %4312 = vmatprep.subr.bf16.mxu0 0
      %4313 = vmatpush1.bf16.msra.mxu0 0
      %4314 = vmatprep.subr.bf16.mxu0 0
      %4315 = vmatpush1.bf16.msra.mxu0 0
      %4316 = vmatprep.mubr.bf16.mxu0 0
      %4317 = vmatmul.mubr.bf16.gmra.mrb[0].mxu0 %v4234
      %v4318 = vpop.f32.mrb[0].mxu0
      %v4319 = vadd.f32 %v4105, %v4318
      %v4320 = vpop.f32.mrb[0].mxu0
      %v4321 = vpop.f32.mrb[0].mxu0
      %v4322 = vadd.f32 %v4108, %v4321
      %v4323 = vpop.f32.mrb[0].mxu0
      %4324 = vmatprep.mubr.bf16.mxu0 0
      %4325 = vmatmul.mubr.bf16.gmra.mrb[0].mxu0 %v3990
      %v4326 = vpop.f32.mrb[0].mxu0
      %v4327 = vadd.f32 %v4113, %v4326
      %v4328 = vpop.f32.mrb[0].mxu0
      %v4329 = vpop.f32.mrb[0].mxu0
      %v4330 = vadd.f32 %v4116, %v4329
      %v4331 = vpop.f32.mrb[0].mxu0
      %4332 = vmatprep.mubr.bf16.mxu0 0
      %4333 = vmatmul.mubr.bf16.gmra.mrb[0].mxu0 %v3991
      %v4334 = vpop.f32.mrb[0].mxu0
      %v4335 = vadd.f32 %v4121, %v4334
      %v4336 = vpop.f32.mrb[0].mxu0
      %v4337 = vpop.f32.mrb[0].mxu0
      %v4338 = vadd.f32 %v4124, %v4337
      %v4339 = vpop.f32.mrb[0].mxu0
      %4340 = vmatprep.mubr.bf16.mxu0 0
      %4341 = vmatmul.mubr.bf16.gmra.mrb[0].mxu0 %v3992
      %v4342 = vpop.f32.mrb[0].mxu0
      %v4343 = vadd.f32 %v4129, %v4342
      %v4344 = vpop.f32.mrb[0].mxu0
      %v4345 = vpop.f32.mrb[0].mxu0
      %v4346 = vadd.f32 %v4132, %v4345
      %v4347 = vpop.f32.mrb[0].mxu0
      %4348 = vmatprep.mubr.bf16.mxu0 0
      %4349 = vmatmul.mubr.bf16.gmra.mrb[0].mxu0 %v3993
      %v4350 = vpop.f32.mrb[0].mxu0
      %v4351 = vadd.f32 %v4137, %v4350
      %v4352 = vpop.f32.mrb[0].mxu0
      %v4353 = vpop.f32.mrb[0].mxu0
      %v4354 = vadd.f32 %v4140, %v4353
      %v4355 = vpop.f32.mrb[0].mxu0
      %4356 = vmatprep.mubr.bf16.mxu0 0
      %4357 = vmatmul.mubr.bf16.gmra.mrb[0].mxu0 %v3994
      %v4358 = vpop.f32.mrb[0].mxu0
      %v4359 = vadd.f32 %v4145, %v4358
      %v4360 = vpop.f32.mrb[0].mxu0
      %v4361 = vpop.f32.mrb[0].mxu0
      %v4362 = vadd.f32 %v4148, %v4361
      %v4363 = vpop.f32.mrb[0].mxu0
      %4364 = vmatprep.mubr.bf16.mxu0 0
      %4365 = vmatmul.mubr.bf16.gmra.mrb[0].mxu0 %v3995
      %v4366 = vpop.f32.mrb[0].mxu0
      %v4367 = vadd.f32 %v4153, %v4366
      %v4368 = vpop.f32.mrb[0].mxu0
      %v4369 = vpop.f32.mrb[0].mxu0
      %v4370 = vadd.f32 %v4156, %v4369
      %v4371 = vpop.f32.mrb[0].mxu0
      %4372 = vmatprep.mubr.bf16.mxu0 0
      %4373 = vmatmul.mubr.bf16.gmra.mrb[0].mxu0 %v3996
      %v4374 = vpop.f32.mrb[0].mxu0
      %v4375 = vadd.f32 %v4161, %v4374
      %v4376 = vpop.f32.mrb[0].mxu0
      %v4377 = vpop.f32.mrb[0].mxu0
      %v4378 = vadd.f32 %v4164, %v4377
      %v4379 = vpop.f32.mrb[0].mxu0
      %4380 = vmatprep.mubr.bf16.mxu0 0
      %4381 = vmatmul.mubr.bf16.gmra.mrb[0].mxu0 %v3997
      %v4382 = vpop.f32.mrb[0].mxu0
      %v4383 = vadd.f32 %v4169, %v4382
      %v4384 = vpop.f32.mrb[0].mxu0
      %v4385 = vpop.f32.mrb[0].mxu0
      %v4386 = vadd.f32 %v4172, %v4385
      %v4387 = vpop.f32.mrb[0].mxu0
      %4388 = vmatprep.mubr.bf16.mxu0 0
      %4389 = vmatmul.mubr.bf16.gmra.mrb[0].mxu0 %v3998
      %v4390 = vpop.f32.mrb[0].mxu0
      %v4391 = vadd.f32 %v4177, %v4390
      %v4392 = vpop.f32.mrb[0].mxu0
      %v4393 = vpop.f32.mrb[0].mxu0
      %v4394 = vadd.f32 %v4180, %v4393
      %v4395 = vpop.f32.mrb[0].mxu0
      %4396 = vmatprep.mubr.bf16.mxu0 0
      %4397 = vmatmul.mubr.bf16.gmra.mrb[0].mxu0 %v3999
      %v4398 = vpop.f32.mrb[0].mxu0
      %v4399 = vadd.f32 %v4185, %v4398
      %v4400 = vpop.f32.mrb[0].mxu0
      %v4401 = vpop.f32.mrb[0].mxu0
      %v4402 = vadd.f32 %v4188, %v4401
      %v4403 = vpop.f32.mrb[0].mxu0
      %4404 = vmatprep.mubr.bf16.mxu0 0
      %4405 = vmatmul.mubr.bf16.gmra.mrb[0].mxu0 %v4000
      %v4406 = vpop.f32.mrb[0].mxu0
      %v4407 = vadd.f32 %v4193, %v4406
      %v4408 = vpop.f32.mrb[0].mxu0
      %v4409 = vpop.f32.mrb[0].mxu0
      %v4410 = vadd.f32 %v4196, %v4409
      %v4411 = vpop.f32.mrb[0].mxu0
      %4412 = vmatprep.mubr.bf16.mxu0 0
      %4413 = vmatmul.mubr.bf16.gmra.mrb[0].mxu0 %v4001
      %v4414 = vpop.f32.mrb[0].mxu0
      %v4415 = vadd.f32 %v4201, %v4414
      %v4416 = vpop.f32.mrb[0].mxu0
      %v4417 = vpop.f32.mrb[0].mxu0
      %v4418 = vadd.f32 %v4204, %v4417
      %v4419 = vpop.f32.mrb[0].mxu0
      %4420 = vmatprep.mubr.bf16.mxu0 0
      %4421 = vmatmul.mubr.bf16.gmra.mrb[0].mxu0 %v4002
      %v4422 = vpop.f32.mrb[0].mxu0
      %v4423 = vadd.f32 %v4209, %v4422
      %v4424 = vpop.f32.mrb[0].mxu0
      %v4425 = vpop.f32.mrb[0].mxu0
      %v4426 = vadd.f32 %v4212, %v4425
      %v4427 = vpop.f32.mrb[0].mxu0
      %4428 = vmatprep.mubr.bf16.mxu0 0
      %4429 = vmatmul.mubr.bf16.gmra.mrb[0].mxu0 %v4003
      %v4430 = vpop.f32.mrb[0].mxu0
      %v4431 = vadd.f32 %v4217, %v4430
      %v4432 = vpop.f32.mrb[0].mxu0
      %v4433 = vpop.f32.mrb[0].mxu0
      %v4434 = vadd.f32 %v4220, %v4433
      %v4435 = vpop.f32.mrb[0].mxu0
      %4436 = vmatprep.mubr.bf16.mxu0 0
      %4437 = vmatmul.mubr.bf16.gmra.mrb[0].mxu0 %v4004
      %v4438 = vpop.f32.mrb[0].mxu0
      %v4439 = vadd.f32 %v4225, %v4438
      %v4440 = vpop.f32.mrb[0].mxu0
      %v4441 = vpop.f32.mrb[0].mxu0
      %v4442 = vadd.f32 %v4228, %v4441
      %v4443 = vpop.f32.mrb[0].mxu0
      %4444 = vdwg.mxu0
      %s4445 = scalar_lea.vmem %s3, 128
      %v4446 = vld [vmem:[%s4445] sm:$0xf]
      %v4447 = vld [vmem:[%s4445 + $0x4] sm:$0xf]
      %v4448 = vld [vmem:[%s4445 + $0x8] sm:$0xf]
      %v4449 = vld [vmem:[%s4445 + $0xc] sm:$0xf]
      %v4450 = vld [vmem:[%s4445 + $0x10] sm:$0xf]
      %v4451 = vld [vmem:[%s4445 + $0x14] sm:$0xf]
      %v4452 = vld [vmem:[%s4445 + $0x18] sm:$0xf]
      %v4453 = vld [vmem:[%s4445 + $0x1c] sm:$0xf]
      %v4454 = vld [vmem:[%s4445 + $0x20] sm:$0xf]
      %v4455 = vld [vmem:[%s4445 + $0x24] sm:$0xf]
      %v4456 = vld [vmem:[%s4445 + $0x28] sm:$0xf]
      %v4457 = vld [vmem:[%s4445 + $0x2c] sm:$0xf]
      %v4458 = vld [vmem:[%s4445 + $0x30] sm:$0xf]
      %v4459 = vld [vmem:[%s4445 + $0x34] sm:$0xf]
      %v4460 = vld [vmem:[%s4445 + $0x38] sm:$0xf]
      %v4461 = vld [vmem:[%s4445 + $0x3c] sm:$0xf]
      %v4463 = vunpack.c.l.b16 %v3259
      %v4464 = vunpack.c.l.b16 %v3260
      %v4465 = vpack.c.b16 %v4464, %v4463
      %v4483 = vunpack.c.l.b16 %v4446
      %v4484 = vunpack.c.l.b16 %v4447
      %v4485 = vunpack.c.l.b16 %v4448
      %v4486 = vunpack.c.l.b16 %v4449
      %v4487 = vunpack.c.l.b16 %v4450
      %v4488 = vunpack.c.l.b16 %v4451
      %v4489 = vunpack.c.l.b16 %v4452
      %v4490 = vunpack.c.l.b16 %v4453
      %v4491 = vunpack.c.l.b16 %v4454
      %v4492 = vunpack.c.l.b16 %v4455
      %v4493 = vunpack.c.l.b16 %v4456
      %v4494 = vunpack.c.l.b16 %v4457
      %v4495 = vunpack.c.l.b16 %v4458
      %v4496 = vunpack.c.l.b16 %v4459
      %v4497 = vunpack.c.l.b16 %v4460
      %v4498 = vunpack.c.l.b16 %v4461
      %v4499 = vpack.c.b16 %v4484, %v4483
      %v4500 = vpack.c.b16 %v4486, %v4485
      %v4501 = vpack.c.b16 %v4488, %v4487
      %v4502 = vpack.c.b16 %v4490, %v4489
      %v4503 = vpack.c.b16 %v4492, %v4491
      %v4504 = vpack.c.b16 %v4494, %v4493
      %v4505 = vpack.c.b16 %v4496, %v4495
      %v4506 = vpack.c.b16 %v4498, %v4497
      %4515 = vmatprep.subr.bf16.mxu0 0
      %4516 = vmatpush1.bf16.msra.mxu0 %v4499
      %4517 = vmatprep.subr.bf16.mxu0 0
      %4518 = vmatpush1.bf16.msra.mxu0 %v4500
      %4519 = vmatprep.subr.bf16.mxu0 0
      %4520 = vmatpush1.bf16.msra.mxu0 %v4501
      %4521 = vmatprep.subr.bf16.mxu0 0
      %4522 = vmatpush1.bf16.msra.mxu0 %v4502
      %4523 = vmatprep.subr.bf16.mxu0 0
      %4524 = vmatpush1.bf16.msra.mxu0 %v4503
      %4525 = vmatprep.subr.bf16.mxu0 0
      %4526 = vmatpush1.bf16.msra.mxu0 %v4504
      %4527 = vmatprep.subr.bf16.mxu0 0
      %4528 = vmatpush1.bf16.msra.mxu0 %v4505
      %4529 = vmatprep.subr.bf16.mxu0 0
      %4530 = vmatpush1.bf16.msra.mxu0 %v4506
      %4531 = vmatprep.subr.bf16.mxu0 0
      %4532 = vmatpush1.bf16.msra.mxu0 0
      %4533 = vmatprep.subr.bf16.mxu0 0
      %4534 = vmatpush1.bf16.msra.mxu0 0
      %4535 = vmatprep.subr.bf16.mxu0 0
      %4536 = vmatpush1.bf16.msra.mxu0 0
      %4537 = vmatprep.subr.bf16.mxu0 0
      %4538 = vmatpush1.bf16.msra.mxu0 0
      %4539 = vmatprep.subr.bf16.mxu0 0
      %4540 = vmatpush1.bf16.msra.mxu0 0
      %4541 = vmatprep.subr.bf16.mxu0 0
      %4542 = vmatpush1.bf16.msra.mxu0 0
      %4543 = vmatprep.subr.bf16.mxu0 0
      %4544 = vmatpush1.bf16.msra.mxu0 0
      %4545 = vmatprep.subr.bf16.mxu0 0
      %4546 = vmatpush1.bf16.msra.mxu0 0
      %4547 = vmatprep.mubr.bf16.mxu0 0
      %4548 = vmatmul.mubr.bf16.gmra.mrb[0].mxu0 %v3991
      %v4549 = vpop.f32.mrb[0].mxu0
      %v4550 = vadd.f32 0.0, %v4549
      %v4551 = vpop.f32.mrb[0].mxu0
      %v4552 = vpop.f32.mrb[0].mxu0
      %v4553 = vadd.f32 0.0, %v4552
      %v4554 = vpop.f32.mrb[0].mxu0
      %4555 = vmatprep.mubr.bf16.mxu0 0
      %4556 = vmatmul.mubr.bf16.gmra.mrb[0].mxu0 %v3992
      %v4557 = vpop.f32.mrb[0].mxu0
      %v4558 = vadd.f32 0.0, %v4557
      %v4559 = vpop.f32.mrb[0].mxu0
      %v4560 = vpop.f32.mrb[0].mxu0
      %v4561 = vadd.f32 0.0, %v4560
      %v4562 = vpop.f32.mrb[0].mxu0
      %4563 = vmatprep.mubr.bf16.mxu0 0
      %4564 = vmatmul.mubr.bf16.gmra.mrb[0].mxu0 %v3993
      %v4565 = vpop.f32.mrb[0].mxu0
      %v4566 = vadd.f32 0.0, %v4565
      %v4567 = vpop.f32.mrb[0].mxu0
      %v4568 = vpop.f32.mrb[0].mxu0
      %v4569 = vadd.f32 0.0, %v4568
      %v4570 = vpop.f32.mrb[0].mxu0
      %4571 = vmatprep.mubr.bf16.mxu0 0
      %4572 = vmatmul.mubr.bf16.gmra.mrb[0].mxu0 %v3994
      %v4573 = vpop.f32.mrb[0].mxu0
      %v4574 = vadd.f32 0.0, %v4573
      %v4575 = vpop.f32.mrb[0].mxu0
      %v4576 = vpop.f32.mrb[0].mxu0
      %v4577 = vadd.f32 0.0, %v4576
      %v4578 = vpop.f32.mrb[0].mxu0
      %4579 = vmatprep.mubr.bf16.mxu0 0
      %4580 = vmatmul.mubr.bf16.gmra.mrb[0].mxu0 %v3995
      %v4581 = vpop.f32.mrb[0].mxu0
      %v4582 = vadd.f32 0.0, %v4581
      %v4583 = vpop.f32.mrb[0].mxu0
      %v4584 = vpop.f32.mrb[0].mxu0
      %v4585 = vadd.f32 0.0, %v4584
      %v4586 = vpop.f32.mrb[0].mxu0
      %4587 = vmatprep.mubr.bf16.mxu0 0
      %4588 = vmatmul.mubr.bf16.gmra.mrb[0].mxu0 %v3996
      %v4589 = vpop.f32.mrb[0].mxu0
      %v4590 = vadd.f32 0.0, %v4589
      %v4591 = vpop.f32.mrb[0].mxu0
      %v4592 = vpop.f32.mrb[0].mxu0
      %v4593 = vadd.f32 0.0, %v4592
      %v4594 = vpop.f32.mrb[0].mxu0
      %4595 = vmatprep.mubr.bf16.mxu0 0
      %4596 = vmatmul.mubr.bf16.gmra.mrb[0].mxu0 %v3997
      %v4597 = vpop.f32.mrb[0].mxu0
      %v4598 = vadd.f32 0.0, %v4597
      %v4599 = vpop.f32.mrb[0].mxu0
      %v4600 = vpop.f32.mrb[0].mxu0
      %v4601 = vadd.f32 0.0, %v4600
      %v4602 = vpop.f32.mrb[0].mxu0
      %4603 = vmatprep.mubr.bf16.mxu0 0
      %4604 = vmatmul.mubr.bf16.gmra.mrb[0].mxu0 %v3998
      %v4605 = vpop.f32.mrb[0].mxu0
      %v4606 = vadd.f32 0.0, %v4605
      %v4607 = vpop.f32.mrb[0].mxu0
      %v4608 = vpop.f32.mrb[0].mxu0
      %v4609 = vadd.f32 0.0, %v4608
      %v4610 = vpop.f32.mrb[0].mxu0
      %4611 = vmatprep.mubr.bf16.mxu0 0
      %4612 = vmatmul.mubr.bf16.gmra.mrb[0].mxu0 %v3999
      %v4613 = vpop.f32.mrb[0].mxu0
      %v4614 = vadd.f32 0.0, %v4613
      %v4615 = vpop.f32.mrb[0].mxu0
      %v4616 = vpop.f32.mrb[0].mxu0
      %v4617 = vadd.f32 0.0, %v4616
      %v4618 = vpop.f32.mrb[0].mxu0
      %4619 = vmatprep.mubr.bf16.mxu0 0
      %4620 = vmatmul.mubr.bf16.gmra.mrb[0].mxu0 %v4000
      %v4621 = vpop.f32.mrb[0].mxu0
      %v4622 = vadd.f32 0.0, %v4621
      %v4623 = vpop.f32.mrb[0].mxu0
      %v4624 = vpop.f32.mrb[0].mxu0
      %v4625 = vadd.f32 0.0, %v4624
      %v4626 = vpop.f32.mrb[0].mxu0
      %4627 = vmatprep.mubr.bf16.mxu0 0
      %4628 = vmatmul.mubr.bf16.gmra.mrb[0].mxu0 %v4001
      %v4629 = vpop.f32.mrb[0].mxu0
      %v4630 = vadd.f32 0.0, %v4629
      %v4631 = vpop.f32.mrb[0].mxu0
      %v4632 = vpop.f32.mrb[0].mxu0
      %v4633 = vadd.f32 0.0, %v4632
      %v4634 = vpop.f32.mrb[0].mxu0
      %4635 = vmatprep.mubr.bf16.mxu0 0
      %4636 = vmatmul.mubr.bf16.gmra.mrb[0].mxu0 %v4002
      %v4637 = vpop.f32.mrb[0].mxu0
      %v4638 = vadd.f32 0.0, %v4637
      %v4639 = vpop.f32.mrb[0].mxu0
      %v4640 = vpop.f32.mrb[0].mxu0
      %v4641 = vadd.f32 0.0, %v4640
      %v4642 = vpop.f32.mrb[0].mxu0
      %4643 = vmatprep.mubr.bf16.mxu0 0
      %4644 = vmatmul.mubr.bf16.gmra.mrb[0].mxu0 %v4003
      %v4645 = vpop.f32.mrb[0].mxu0
      %v4646 = vadd.f32 0.0, %v4645
      %v4647 = vpop.f32.mrb[0].mxu0
      %v4648 = vpop.f32.mrb[0].mxu0
      %v4649 = vadd.f32 0.0, %v4648
      %v4650 = vpop.f32.mrb[0].mxu0
      %4651 = vmatprep.mubr.bf16.mxu0 0
      %4652 = vmatmul.mubr.bf16.gmra.mrb[0].mxu0 %v4004
      %v4653 = vpop.f32.mrb[0].mxu0
      %v4654 = vadd.f32 0.0, %v4653
      %v4655 = vpop.f32.mrb[0].mxu0
      %v4656 = vpop.f32.mrb[0].mxu0
      %v4657 = vadd.f32 0.0, %v4656
      %v4658 = vpop.f32.mrb[0].mxu0
      %4659 = vmatprep.mubr.bf16.mxu0 0
      %4660 = vmatmul.mubr.bf16.gmra.mrb[0].mxu0 %v4005
      %v4661 = vpop.f32.mrb[0].mxu0
      %v4662 = vadd.f32 0.0, %v4661
      %v4663 = vpop.f32.mrb[0].mxu0
      %v4664 = vpop.f32.mrb[0].mxu0
      %v4665 = vadd.f32 0.0, %v4664
      %v4666 = vpop.f32.mrb[0].mxu0
      %4667 = vmatprep.mubr.bf16.mxu0 0
      %4668 = vmatmul.mubr.bf16.gmra.mrb[0].mxu0 %v4465
      %v4669 = vpop.f32.mrb[0].mxu0
      %v4670 = vadd.f32 0.0, %v4669
      %v4671 = vpop.f32.mrb[0].mxu0
      %v4672 = vpop.f32.mrb[0].mxu0
      %v4673 = vadd.f32 0.0, %v4672
      %v4674 = vpop.f32.mrb[0].mxu0
      %4675 = vdwg.mxu0
      %v4676 = vadd.f32 %v4319, %v4550
      %v4677 = vadd.f32 %v4322, %v4553
      %v4678 = vadd.f32 %v4327, %v4558
      %v4679 = vadd.f32 %v4330, %v4561
      %v4680 = vadd.f32 %v4335, %v4566
      %v4681 = vadd.f32 %v4338, %v4569
      %v4682 = vadd.f32 %v4343, %v4574
      %v4683 = vadd.f32 %v4346, %v4577
      %v4684 = vadd.f32 %v4351, %v4582
      %v4685 = vadd.f32 %v4354, %v4585
      %v4686 = vadd.f32 %v4359, %v4590
      %v4687 = vadd.f32 %v4362, %v4593
      %v4688 = vadd.f32 %v4367, %v4598
      %v4689 = vadd.f32 %v4370, %v4601
      %v4690 = vadd.f32 %v4375, %v4606
      %v4691 = vadd.f32 %v4378, %v4609
      %v4692 = vadd.f32 %v4383, %v4614
      %v4693 = vadd.f32 %v4386, %v4617
      %v4694 = vadd.f32 %v4391, %v4622
      %v4695 = vadd.f32 %v4394, %v4625
      %v4696 = vadd.f32 %v4399, %v4630
      %v4697 = vadd.f32 %v4402, %v4633
      %v4698 = vadd.f32 %v4407, %v4638
      %v4699 = vadd.f32 %v4410, %v4641
      %v4700 = vadd.f32 %v4415, %v4646
      %v4701 = vadd.f32 %v4418, %v4649
      %v4702 = vadd.f32 %v4423, %v4654
      %v4703 = vadd.f32 %v4426, %v4657
      %v4704 = vadd.f32 %v4431, %v4662
      %v4705 = vadd.f32 %v4434, %v4665
      %v4706 = vadd.f32 %v4439, %v4670
      %v4707 = vadd.f32 %v4442, %v4673
      %s4708 = scalar_lea.vmem %s3, 192
      %v4709 = vld [vmem:[%s4708] sm:$0xf]
      %v4710 = vld [vmem:[%s4708 + $0x4] sm:$0xf]
      %v4711 = vld [vmem:[%s4708 + $0x8] sm:$0xf]
      %v4712 = vld [vmem:[%s4708 + $0xc] sm:$0xf]
      %v4713 = vld [vmem:[%s4708 + $0x10] sm:$0xf]
      %v4714 = vld [vmem:[%s4708 + $0x14] sm:$0xf]
      %v4715 = vld [vmem:[%s4708 + $0x18] sm:$0xf]
      %v4716 = vld [vmem:[%s4708 + $0x1c] sm:$0xf]
      %v4717 = vld [vmem:[%s4708 + $0x20] sm:$0xf]
      %v4718 = vld [vmem:[%s4708 + $0x24] sm:$0xf]
      %v4719 = vld [vmem:[%s4708 + $0x28] sm:$0xf]
      %v4720 = vld [vmem:[%s4708 + $0x2c] sm:$0xf]
      %v4721 = vld [vmem:[%s4708 + $0x30] sm:$0xf]
      %v4722 = vld [vmem:[%s4708 + $0x34] sm:$0xf]
      %v4723 = vld [vmem:[%s4708 + $0x38] sm:$0xf]
      %v4724 = vld [vmem:[%s4708 + $0x3c] sm:$0xf]
      %v4725 = vunpack.c.l.b16 %v3292
      %v4726 = vunpack.c.l.b16 %v3302
      %v4727 = vunpack.c.l.b16 %v3316
      %v4728 = vunpack.c.l.b16 %v3326
      %v4729 = vunpack.c.l.b16 %v3340
      %v4730 = vunpack.c.l.b16 %v3350
      %v4731 = vunpack.c.l.b16 %v3364
      %v4732 = vunpack.c.l.b16 %v3374
      %v4733 = vunpack.c.l.b16 %v3388
      %v4734 = vunpack.c.l.b16 %v3398
      %v4735 = vunpack.c.l.b16 %v3412
      %v4736 = vunpack.c.l.b16 %v3422
      %v4737 = vunpack.c.l.b16 %v3436
      %v4738 = vunpack.c.l.b16 %v3446
      %v4739 = vunpack.c.l.b16 %v3460
      %v4740 = vunpack.c.l.b16 %v3470
      %v4741 = vunpack.c.l.b16 %v3484
      %v4742 = vunpack.c.l.b16 %v3494
      %v4743 = vunpack.c.l.b16 %v3508
      %v4744 = vunpack.c.l.b16 %v3518
      %v4745 = vunpack.c.l.b16 %v3532
      %v4746 = vunpack.c.l.b16 %v3542
      %v4747 = vunpack.c.l.b16 %v3556
      %v4748 = vunpack.c.l.b16 %v3566
      %v4749 = vunpack.c.l.b16 %v3580
      %v4750 = vunpack.c.l.b16 %v3590
      %v4751 = vunpack.c.l.b16 %v3604
      %v4752 = vunpack.c.l.b16 %v3614
      %v4753 = vunpack.c.l.b16 %v3628
      %v4754 = vunpack.c.l.b16 %v3638
      %v4755 = vunpack.c.l.b16 %v3652
      %v4756 = vunpack.c.l.b16 %v3662
      %v4757 = vpack.c.b16 %v4726, %v4725
      %v4758 = vpack.c.b16 %v4728, %v4727
      %v4759 = vpack.c.b16 %v4730, %v4729
      %v4760 = vpack.c.b16 %v4732, %v4731
      %v4761 = vpack.c.b16 %v4734, %v4733
      %v4762 = vpack.c.b16 %v4736, %v4735
      %v4763 = vpack.c.b16 %v4738, %v4737
      %v4764 = vpack.c.b16 %v4740, %v4739
      %v4765 = vpack.c.b16 %v4742, %v4741
      %v4766 = vpack.c.b16 %v4744, %v4743
      %v4767 = vpack.c.b16 %v4746, %v4745
      %v4768 = vpack.c.b16 %v4748, %v4747
      %v4769 = vpack.c.b16 %v4750, %v4749
      %v4770 = vpack.c.b16 %v4752, %v4751
      %v4771 = vpack.c.b16 %v4754, %v4753
      %v4772 = vpack.c.b16 %v4756, %v4755
      %v4805 = vunpack.c.l.b16 %v4709
      %v4806 = vunpack.c.l.b16 %v4710
      %v4807 = vunpack.c.l.b16 %v4711
      %v4808 = vunpack.c.l.b16 %v4712
      %v4809 = vunpack.c.l.b16 %v4713
      %v4810 = vunpack.c.l.b16 %v4714
      %v4811 = vunpack.c.l.b16 %v4715
      %v4812 = vunpack.c.l.b16 %v4716
      %v4813 = vunpack.c.l.b16 %v4717
      %v4814 = vunpack.c.l.b16 %v4718
      %v4815 = vunpack.c.l.b16 %v4719
      %v4816 = vunpack.c.l.b16 %v4720
      %v4817 = vunpack.c.l.b16 %v4721
      %v4818 = vunpack.c.l.b16 %v4722
      %v4819 = vunpack.c.l.b16 %v4723
      %v4820 = vunpack.c.l.b16 %v4724
      %v4821 = vpack.c.b16 %v4806, %v4805
      %v4822 = vpack.c.b16 %v4808, %v4807
      %v4823 = vpack.c.b16 %v4810, %v4809
      %v4824 = vpack.c.b16 %v4812, %v4811
      %v4825 = vpack.c.b16 %v4814, %v4813
      %v4826 = vpack.c.b16 %v4816, %v4815
      %v4827 = vpack.c.b16 %v4818, %v4817
      %v4828 = vpack.c.b16 %v4820, %v4819
      %4837 = vmatprep.subr.bf16.mxu0 0
      %4838 = vmatpush1.bf16.msra.mxu0 %v4821
      %4839 = vmatprep.subr.bf16.mxu0 0
      %4840 = vmatpush1.bf16.msra.mxu0 %v4822
      %4841 = vmatprep.subr.bf16.mxu0 0
      %4842 = vmatpush1.bf16.msra.mxu0 %v4823
      %4843 = vmatprep.subr.bf16.mxu0 0
      %4844 = vmatpush1.bf16.msra.mxu0 %v4824
      %4845 = vmatprep.subr.bf16.mxu0 0
      %4846 = vmatpush1.bf16.msra.mxu0 %v4825
      %4847 = vmatprep.subr.bf16.mxu0 0
      %4848 = vmatpush1.bf16.msra.mxu0 %v4826
      %4849 = vmatprep.subr.bf16.mxu0 0
      %4850 = vmatpush1.bf16.msra.mxu0 %v4827
      %4851 = vmatprep.subr.bf16.mxu0 0
      %4852 = vmatpush1.bf16.msra.mxu0 %v4828
      %4853 = vmatprep.subr.bf16.mxu0 0
      %4854 = vmatpush1.bf16.msra.mxu0 0
      %4855 = vmatprep.subr.bf16.mxu0 0
      %4856 = vmatpush1.bf16.msra.mxu0 0
      %4857 = vmatprep.subr.bf16.mxu0 0
      %4858 = vmatpush1.bf16.msra.mxu0 0
      %4859 = vmatprep.subr.bf16.mxu0 0
      %4860 = vmatpush1.bf16.msra.mxu0 0
      %4861 = vmatprep.subr.bf16.mxu0 0
      %4862 = vmatpush1.bf16.msra.mxu0 0
      %4863 = vmatprep.subr.bf16.mxu0 0
      %4864 = vmatpush1.bf16.msra.mxu0 0
      %4865 = vmatprep.subr.bf16.mxu0 0
      %4866 = vmatpush1.bf16.msra.mxu0 0
      %4867 = vmatprep.subr.bf16.mxu0 0
      %4868 = vmatpush1.bf16.msra.mxu0 0
      %4869 = vmatprep.mubr.bf16.mxu0 0
      %4870 = vmatmul.mubr.bf16.gmra.mrb[0].mxu0 %v4757
      %v4871 = vpop.f32.mrb[0].mxu0
      %v4872 = vadd.f32 0.0, %v4871
      %v4873 = vpop.f32.mrb[0].mxu0
      %v4874 = vpop.f32.mrb[0].mxu0
      %v4875 = vadd.f32 0.0, %v4874
      %v4876 = vpop.f32.mrb[0].mxu0
      %4877 = vmatprep.mubr.bf16.mxu0 0
      %4878 = vmatmul.mubr.bf16.gmra.mrb[0].mxu0 %v4758
      %v4879 = vpop.f32.mrb[0].mxu0
      %v4880 = vadd.f32 0.0, %v4879
      %v4881 = vpop.f32.mrb[0].mxu0
      %v4882 = vpop.f32.mrb[0].mxu0
      %v4883 = vadd.f32 0.0, %v4882
      %v4884 = vpop.f32.mrb[0].mxu0
      %4885 = vmatprep.mubr.bf16.mxu0 0
      %4886 = vmatmul.mubr.bf16.gmra.mrb[0].mxu0 %v4759
      %v4887 = vpop.f32.mrb[0].mxu0
      %v4888 = vadd.f32 0.0, %v4887
      %v4889 = vpop.f32.mrb[0].mxu0
      %v4890 = vpop.f32.mrb[0].mxu0
      %v4891 = vadd.f32 0.0, %v4890
      %v4892 = vpop.f32.mrb[0].mxu0
      %4893 = vmatprep.mubr.bf16.mxu0 0
      %4894 = vmatmul.mubr.bf16.gmra.mrb[0].mxu0 %v4760
      %v4895 = vpop.f32.mrb[0].mxu0
      %v4896 = vadd.f32 0.0, %v4895
      %v4897 = vpop.f32.mrb[0].mxu0
      %v4898 = vpop.f32.mrb[0].mxu0
      %v4899 = vadd.f32 0.0, %v4898
      %v4900 = vpop.f32.mrb[0].mxu0
      %4901 = vmatprep.mubr.bf16.mxu0 0
      %4902 = vmatmul.mubr.bf16.gmra.mrb[0].mxu0 %v4761
      %v4903 = vpop.f32.mrb[0].mxu0
      %v4904 = vadd.f32 0.0, %v4903
      %v4905 = vpop.f32.mrb[0].mxu0
      %v4906 = vpop.f32.mrb[0].mxu0
      %v4907 = vadd.f32 0.0, %v4906
      %v4908 = vpop.f32.mrb[0].mxu0
      %4909 = vmatprep.mubr.bf16.mxu0 0
      %4910 = vmatmul.mubr.bf16.gmra.mrb[0].mxu0 %v4762
      %v4911 = vpop.f32.mrb[0].mxu0
      %v4912 = vadd.f32 0.0, %v4911
      %v4913 = vpop.f32.mrb[0].mxu0
      %v4914 = vpop.f32.mrb[0].mxu0
      %v4915 = vadd.f32 0.0, %v4914
      %v4916 = vpop.f32.mrb[0].mxu0
      %4917 = vmatprep.mubr.bf16.mxu0 0
      %4918 = vmatmul.mubr.bf16.gmra.mrb[0].mxu0 %v4763
      %v4919 = vpop.f32.mrb[0].mxu0
      %v4920 = vadd.f32 0.0, %v4919
      %v4921 = vpop.f32.mrb[0].mxu0
      %v4922 = vpop.f32.mrb[0].mxu0
      %v4923 = vadd.f32 0.0, %v4922
      %v4924 = vpop.f32.mrb[0].mxu0
      %4925 = vmatprep.mubr.bf16.mxu0 0
      %4926 = vmatmul.mubr.bf16.gmra.mrb[0].mxu0 %v4764
      %v4927 = vpop.f32.mrb[0].mxu0
      %v4928 = vadd.f32 0.0, %v4927
      %v4929 = vpop.f32.mrb[0].mxu0
      %v4930 = vpop.f32.mrb[0].mxu0
      %v4931 = vadd.f32 0.0, %v4930
      %v4932 = vpop.f32.mrb[0].mxu0
      %4933 = vmatprep.mubr.bf16.mxu0 0
      %4934 = vmatmul.mubr.bf16.gmra.mrb[0].mxu0 %v4765
      %v4935 = vpop.f32.mrb[0].mxu0
      %v4936 = vadd.f32 0.0, %v4935
      %v4937 = vpop.f32.mrb[0].mxu0
      %v4938 = vpop.f32.mrb[0].mxu0
      %v4939 = vadd.f32 0.0, %v4938
      %v4940 = vpop.f32.mrb[0].mxu0
      %4941 = vmatprep.mubr.bf16.mxu0 0
      %4942 = vmatmul.mubr.bf16.gmra.mrb[0].mxu0 %v4766
      %v4943 = vpop.f32.mrb[0].mxu0
      %v4944 = vadd.f32 0.0, %v4943
      %v4945 = vpop.f32.mrb[0].mxu0
      %v4946 = vpop.f32.mrb[0].mxu0
      %v4947 = vadd.f32 0.0, %v4946
      %v4948 = vpop.f32.mrb[0].mxu0
      %4949 = vmatprep.mubr.bf16.mxu0 0
      %4950 = vmatmul.mubr.bf16.gmra.mrb[0].mxu0 %v4767
      %v4951 = vpop.f32.mrb[0].mxu0
      %v4952 = vadd.f32 0.0, %v4951
      %v4953 = vpop.f32.mrb[0].mxu0
      %v4954 = vpop.f32.mrb[0].mxu0
      %v4955 = vadd.f32 0.0, %v4954
      %v4956 = vpop.f32.mrb[0].mxu0
      %4957 = vmatprep.mubr.bf16.mxu0 0
      %4958 = vmatmul.mubr.bf16.gmra.mrb[0].mxu0 %v4768
      %v4959 = vpop.f32.mrb[0].mxu0
      %v4960 = vadd.f32 0.0, %v4959
      %v4961 = vpop.f32.mrb[0].mxu0
      %v4962 = vpop.f32.mrb[0].mxu0
      %v4963 = vadd.f32 0.0, %v4962
      %v4964 = vpop.f32.mrb[0].mxu0
      %4965 = vmatprep.mubr.bf16.mxu0 0
      %4966 = vmatmul.mubr.bf16.gmra.mrb[0].mxu0 %v4769
      %v4967 = vpop.f32.mrb[0].mxu0
      %v4968 = vadd.f32 0.0, %v4967
      %v4969 = vpop.f32.mrb[0].mxu0
      %v4970 = vpop.f32.mrb[0].mxu0
      %v4971 = vadd.f32 0.0, %v4970
      %v4972 = vpop.f32.mrb[0].mxu0
      %4973 = vmatprep.mubr.bf16.mxu0 0
      %4974 = vmatmul.mubr.bf16.gmra.mrb[0].mxu0 %v4770
      %v4975 = vpop.f32.mrb[0].mxu0
      %v4976 = vadd.f32 0.0, %v4975
      %v4977 = vpop.f32.mrb[0].mxu0
      %v4978 = vpop.f32.mrb[0].mxu0
      %v4979 = vadd.f32 0.0, %v4978
      %v4980 = vpop.f32.mrb[0].mxu0
      %4981 = vmatprep.mubr.bf16.mxu0 0
      %4982 = vmatmul.mubr.bf16.gmra.mrb[0].mxu0 %v4771
      %v4983 = vpop.f32.mrb[0].mxu0
      %v4984 = vadd.f32 0.0, %v4983
      %v4985 = vpop.f32.mrb[0].mxu0
      %v4986 = vpop.f32.mrb[0].mxu0
      %v4987 = vadd.f32 0.0, %v4986
      %v4988 = vpop.f32.mrb[0].mxu0
      %4989 = vmatprep.mubr.bf16.mxu0 0
      %4990 = vmatmul.mubr.bf16.gmra.mrb[0].mxu0 %v4772
      %v4991 = vpop.f32.mrb[0].mxu0
      %v4992 = vadd.f32 0.0, %v4991
      %v4993 = vpop.f32.mrb[0].mxu0
      %v4994 = vpop.f32.mrb[0].mxu0
      %v4995 = vadd.f32 0.0, %v4994
      %v4996 = vpop.f32.mrb[0].mxu0
      %4997 = vdwg.mxu0
      %v4998 = vadd.f32 %v4676, %v4872
      %v4999 = vadd.f32 %v4677, %v4875
      %v5000 = vadd.f32 %v4678, %v4880
      %v5001 = vadd.f32 %v4679, %v4883
      %v5002 = vadd.f32 %v4680, %v4888
      %v5003 = vadd.f32 %v4681, %v4891
      %v5004 = vadd.f32 %v4682, %v4896
      %v5005 = vadd.f32 %v4683, %v4899
      %v5006 = vadd.f32 %v4684, %v4904
      %v5007 = vadd.f32 %v4685, %v4907
      %v5008 = vadd.f32 %v4686, %v4912
      %v5009 = vadd.f32 %v4687, %v4915
      %v5010 = vadd.f32 %v4688, %v4920
      %v5011 = vadd.f32 %v4689, %v4923
      %v5012 = vadd.f32 %v4690, %v4928
      %v5013 = vadd.f32 %v4691, %v4931
      %v5014 = vadd.f32 %v4692, %v4936
      %v5015 = vadd.f32 %v4693, %v4939
      %v5016 = vadd.f32 %v4694, %v4944
      %v5017 = vadd.f32 %v4695, %v4947
      %v5018 = vadd.f32 %v4696, %v4952
      %v5019 = vadd.f32 %v4697, %v4955
      %v5020 = vadd.f32 %v4698, %v4960
      %v5021 = vadd.f32 %v4699, %v4963
      %v5022 = vadd.f32 %v4700, %v4968
      %v5023 = vadd.f32 %v4701, %v4971
      %v5024 = vadd.f32 %v4702, %v4976
      %v5025 = vadd.f32 %v4703, %v4979
      %v5026 = vadd.f32 %v4704, %v4984
      %v5027 = vadd.f32 %v4705, %v4987
      %v5028 = vadd.f32 %v4706, %v4992
      %v5029 = vadd.f32 %v4707, %v4995
      %s5030 = scalar_lea.vmem %s3, 256
      %v5031 = vld [vmem:[%s5030] sm:$0xf]
      %v5032 = vld [vmem:[%s5030 + $0x4] sm:$0xf]
      %v5033 = vld [vmem:[%s5030 + $0x8] sm:$0xf]
      %v5034 = vld [vmem:[%s5030 + $0xc] sm:$0xf]
      %v5035 = vld [vmem:[%s5030 + $0x10] sm:$0xf]
      %v5036 = vld [vmem:[%s5030 + $0x14] sm:$0xf]
      %v5037 = vld [vmem:[%s5030 + $0x18] sm:$0xf]
      %v5038 = vld [vmem:[%s5030 + $0x1c] sm:$0xf]
      %v5039 = vld [vmem:[%s5030 + $0x20] sm:$0xf]
      %v5040 = vld [vmem:[%s5030 + $0x24] sm:$0xf]
      %v5041 = vld [vmem:[%s5030 + $0x28] sm:$0xf]
      %v5042 = vld [vmem:[%s5030 + $0x2c] sm:$0xf]
      %v5043 = vld [vmem:[%s5030 + $0x30] sm:$0xf]
      %v5044 = vld [vmem:[%s5030 + $0x34] sm:$0xf]
      %v5045 = vld [vmem:[%s5030 + $0x38] sm:$0xf]
      %v5046 = vld [vmem:[%s5030 + $0x3c] sm:$0xf]
      %v5047 = vunpack.c.l.b16 %v3676
      %v5048 = vunpack.c.l.b16 %v3686
      %v5049 = vpack.c.b16 %v5048, %v5047
      %v5067 = vunpack.c.l.b16 %v5031
      %v5068 = vunpack.c.l.b16 %v5032
      %v5069 = vunpack.c.l.b16 %v5033
      %v5070 = vunpack.c.l.b16 %v5034
      %v5071 = vunpack.c.l.b16 %v5035
      %v5072 = vunpack.c.l.b16 %v5036
      %v5073 = vunpack.c.l.b16 %v5037
      %v5074 = vunpack.c.l.b16 %v5038
      %v5075 = vunpack.c.l.b16 %v5039
      %v5076 = vunpack.c.l.b16 %v5040
      %v5077 = vunpack.c.l.b16 %v5041
      %v5078 = vunpack.c.l.b16 %v5042
      %v5079 = vunpack.c.l.b16 %v5043
      %v5080 = vunpack.c.l.b16 %v5044
      %v5081 = vunpack.c.l.b16 %v5045
      %v5082 = vunpack.c.l.b16 %v5046
      %v5083 = vpack.c.b16 %v5068, %v5067
      %v5084 = vpack.c.b16 %v5070, %v5069
      %v5085 = vpack.c.b16 %v5072, %v5071
      %v5086 = vpack.c.b16 %v5074, %v5073
      %v5087 = vpack.c.b16 %v5076, %v5075
      %v5088 = vpack.c.b16 %v5078, %v5077
      %v5089 = vpack.c.b16 %v5080, %v5079
      %v5090 = vpack.c.b16 %v5082, %v5081
      %5099 = vmatprep.subr.bf16.mxu0 0
      %5100 = vmatpush1.bf16.msra.mxu0 %v5083
      %5101 = vmatprep.subr.bf16.mxu0 0
      %5102 = vmatpush1.bf16.msra.mxu0 %v5084
      %5103 = vmatprep.subr.bf16.mxu0 0
      %5104 = vmatpush1.bf16.msra.mxu0 %v5085
      %5105 = vmatprep.subr.bf16.mxu0 0
      %5106 = vmatpush1.bf16.msra.mxu0 %v5086
      %5107 = vmatprep.subr.bf16.mxu0 0
      %5108 = vmatpush1.bf16.msra.mxu0 %v5087
      %5109 = vmatprep.subr.bf16.mxu0 0
      %5110 = vmatpush1.bf16.msra.mxu0 %v5088
      %5111 = vmatprep.subr.bf16.mxu0 0
      %5112 = vmatpush1.bf16.msra.mxu0 %v5089
      %5113 = vmatprep.subr.bf16.mxu0 0
      %5114 = vmatpush1.bf16.msra.mxu0 %v5090
      %5115 = vmatprep.subr.bf16.mxu0 0
      %5116 = vmatpush1.bf16.msra.mxu0 0
      %5117 = vmatprep.subr.bf16.mxu0 0
      %5118 = vmatpush1.bf16.msra.mxu0 0
      %5119 = vmatprep.subr.bf16.mxu0 0
      %5120 = vmatpush1.bf16.msra.mxu0 0
      %5121 = vmatprep.subr.bf16.mxu0 0
      %5122 = vmatpush1.bf16.msra.mxu0 0
      %5123 = vmatprep.subr.bf16.mxu0 0
      %5124 = vmatpush1.bf16.msra.mxu0 0
      %5125 = vmatprep.subr.bf16.mxu0 0
      %5126 = vmatpush1.bf16.msra.mxu0 0
      %5127 = vmatprep.subr.bf16.mxu0 0
      %5128 = vmatpush1.bf16.msra.mxu0 0
      %5129 = vmatprep.subr.bf16.mxu0 0
      %5130 = vmatpush1.bf16.msra.mxu0 0
      %5131 = vmatprep.mubr.bf16.mxu0 0
      %5132 = vmatmul.mubr.bf16.gmra.mrb[0].mxu0 %v4758
      %v5133 = vpop.f32.mrb[0].mxu0
      %v5134 = vadd.f32 0.0, %v5133
      %v5135 = vpop.f32.mrb[0].mxu0
      %v5136 = vpop.f32.mrb[0].mxu0
      %v5137 = vadd.f32 0.0, %v5136
      %v5138 = vpop.f32.mrb[0].mxu0
      %5139 = vmatprep.mubr.bf16.mxu0 0
      %5140 = vmatmul.mubr.bf16.gmra.mrb[0].mxu0 %v4759
      %v5141 = vpop.f32.mrb[0].mxu0
      %v5142 = vadd.f32 0.0, %v5141
      %v5143 = vpop.f32.mrb[0].mxu0
      %v5144 = vpop.f32.mrb[0].mxu0
      %v5145 = vadd.f32 0.0, %v5144
      %v5146 = vpop.f32.mrb[0].mxu0
      %5147 = vmatprep.mubr.bf16.mxu0 0
      %5148 = vmatmul.mubr.bf16.gmra.mrb[0].mxu0 %v4760
      %v5149 = vpop.f32.mrb[0].mxu0
      %v5150 = vadd.f32 0.0, %v5149
      %v5151 = vpop.f32.mrb[0].mxu0
      %v5152 = vpop.f32.mrb[0].mxu0
      %v5153 = vadd.f32 0.0, %v5152
      %v5154 = vpop.f32.mrb[0].mxu0
      %5155 = vmatprep.mubr.bf16.mxu0 0
      %5156 = vmatmul.mubr.bf16.gmra.mrb[0].mxu0 %v4761
      %v5157 = vpop.f32.mrb[0].mxu0
      %v5158 = vadd.f32 0.0, %v5157
      %v5159 = vpop.f32.mrb[0].mxu0
      %v5160 = vpop.f32.mrb[0].mxu0
      %v5161 = vadd.f32 0.0, %v5160
      %v5162 = vpop.f32.mrb[0].mxu0
      %5163 = vmatprep.mubr.bf16.mxu0 0
      %5164 = vmatmul.mubr.bf16.gmra.mrb[0].mxu0 %v4762
      %v5165 = vpop.f32.mrb[0].mxu0
      %v5166 = vadd.f32 0.0, %v5165
      %v5167 = vpop.f32.mrb[0].mxu0
      %v5168 = vpop.f32.mrb[0].mxu0
      %v5169 = vadd.f32 0.0, %v5168
      %v5170 = vpop.f32.mrb[0].mxu0
      %5171 = vmatprep.mubr.bf16.mxu0 0
      %5172 = vmatmul.mubr.bf16.gmra.mrb[0].mxu0 %v4763
      %v5173 = vpop.f32.mrb[0].mxu0
      %v5174 = vadd.f32 0.0, %v5173
      %v5175 = vpop.f32.mrb[0].mxu0
      %v5176 = vpop.f32.mrb[0].mxu0
      %v5177 = vadd.f32 0.0, %v5176
      %v5178 = vpop.f32.mrb[0].mxu0
      %5179 = vmatprep.mubr.bf16.mxu0 0
      %5180 = vmatmul.mubr.bf16.gmra.mrb[0].mxu0 %v4764
      %v5181 = vpop.f32.mrb[0].mxu0
      %v5182 = vadd.f32 0.0, %v5181
      %v5183 = vpop.f32.mrb[0].mxu0
      %v5184 = vpop.f32.mrb[0].mxu0
      %v5185 = vadd.f32 0.0, %v5184
      %v5186 = vpop.f32.mrb[0].mxu0
      %5187 = vmatprep.mubr.bf16.mxu0 0
      %5188 = vmatmul.mubr.bf16.gmra.mrb[0].mxu0 %v4765
      %v5189 = vpop.f32.mrb[0].mxu0
      %v5190 = vadd.f32 0.0, %v5189
      %v5191 = vpop.f32.mrb[0].mxu0
      %v5192 = vpop.f32.mrb[0].mxu0
      %v5193 = vadd.f32 0.0, %v5192
      %v5194 = vpop.f32.mrb[0].mxu0
      %5195 = vmatprep.mubr.bf16.mxu0 0
      %5196 = vmatmul.mubr.bf16.gmra.mrb[0].mxu0 %v4766
      %v5197 = vpop.f32.mrb[0].mxu0
      %v5198 = vadd.f32 0.0, %v5197
      %v5199 = vpop.f32.mrb[0].mxu0
      %v5200 = vpop.f32.mrb[0].mxu0
      %v5201 = vadd.f32 0.0, %v5200
      %v5202 = vpop.f32.mrb[0].mxu0
      %5203 = vmatprep.mubr.bf16.mxu0 0
      %5204 = vmatmul.mubr.bf16.gmra.mrb[0].mxu0 %v4767
      %v5205 = vpop.f32.mrb[0].mxu0
      %v5206 = vadd.f32 0.0, %v5205
      %v5207 = vpop.f32.mrb[0].mxu0
      %v5208 = vpop.f32.mrb[0].mxu0
      %v5209 = vadd.f32 0.0, %v5208
      %v5210 = vpop.f32.mrb[0].mxu0
      %5211 = vmatprep.mubr.bf16.mxu0 0
      %5212 = vmatmul.mubr.bf16.gmra.mrb[0].mxu0 %v4768
      %v5213 = vpop.f32.mrb[0].mxu0
      %v5214 = vadd.f32 0.0, %v5213
      %v5215 = vpop.f32.mrb[0].mxu0
      %v5216 = vpop.f32.mrb[0].mxu0
      %v5217 = vadd.f32 0.0, %v5216
      %v5218 = vpop.f32.mrb[0].mxu0
      %5219 = vmatprep.mubr.bf16.mxu0 0
      %5220 = vmatmul.mubr.bf16.gmra.mrb[0].mxu0 %v4769
      %v5221 = vpop.f32.mrb[0].mxu0
      %v5222 = vadd.f32 0.0, %v5221
      %v5223 = vpop.f32.mrb[0].mxu0
      %v5224 = vpop.f32.mrb[0].mxu0
      %v5225 = vadd.f32 0.0, %v5224
      %v5226 = vpop.f32.mrb[0].mxu0
      %5227 = vmatprep.mubr.bf16.mxu0 0
      %5228 = vmatmul.mubr.bf16.gmra.mrb[0].mxu0 %v4770
      %v5229 = vpop.f32.mrb[0].mxu0
      %v5230 = vadd.f32 0.0, %v5229
      %v5231 = vpop.f32.mrb[0].mxu0
      %v5232 = vpop.f32.mrb[0].mxu0
      %v5233 = vadd.f32 0.0, %v5232
      %v5234 = vpop.f32.mrb[0].mxu0
      %5235 = vmatprep.mubr.bf16.mxu0 0
      %5236 = vmatmul.mubr.bf16.gmra.mrb[0].mxu0 %v4771
      %v5237 = vpop.f32.mrb[0].mxu0
      %v5238 = vadd.f32 0.0, %v5237
      %v5239 = vpop.f32.mrb[0].mxu0
      %v5240 = vpop.f32.mrb[0].mxu0
      %v5241 = vadd.f32 0.0, %v5240
      %v5242 = vpop.f32.mrb[0].mxu0
      %5243 = vmatprep.mubr.bf16.mxu0 0
      %5244 = vmatmul.mubr.bf16.gmra.mrb[0].mxu0 %v4772
      %v5245 = vpop.f32.mrb[0].mxu0
      %v5246 = vadd.f32 0.0, %v5245
      %v5247 = vpop.f32.mrb[0].mxu0
      %v5248 = vpop.f32.mrb[0].mxu0
      %v5249 = vadd.f32 0.0, %v5248
      %v5250 = vpop.f32.mrb[0].mxu0
      %5251 = vmatprep.mubr.bf16.mxu0 0
      %5252 = vmatmul.mubr.bf16.gmra.mrb[0].mxu0 %v5049
      %v5253 = vpop.f32.mrb[0].mxu0
      %v5254 = vadd.f32 0.0, %v5253
      %v5255 = vpop.f32.mrb[0].mxu0
      %v5256 = vpop.f32.mrb[0].mxu0
      %v5257 = vadd.f32 0.0, %v5256
      %v5258 = vpop.f32.mrb[0].mxu0
      %5259 = vdwg.mxu0
      %v5260 = vadd.f32 %v4998, %v5134
      %v5261 = vadd.f32 %v4999, %v5137
      %v5262 = vadd.f32 %v5000, %v5142
      %v5263 = vadd.f32 %v5001, %v5145
      %v5264 = vadd.f32 %v5002, %v5150
      %v5265 = vadd.f32 %v5003, %v5153
      %v5266 = vadd.f32 %v5004, %v5158
      %v5267 = vadd.f32 %v5005, %v5161
      %v5268 = vadd.f32 %v5006, %v5166
      %v5269 = vadd.f32 %v5007, %v5169
      %v5270 = vadd.f32 %v5008, %v5174
      %v5271 = vadd.f32 %v5009, %v5177
      %v5272 = vadd.f32 %v5010, %v5182
      %v5273 = vadd.f32 %v5011, %v5185
      %v5274 = vadd.f32 %v5012, %v5190
      %v5275 = vadd.f32 %v5013, %v5193
      %v5276 = vadd.f32 %v5014, %v5198
      %v5277 = vadd.f32 %v5015, %v5201
      %v5278 = vadd.f32 %v5016, %v5206
      %v5279 = vadd.f32 %v5017, %v5209
      %v5280 = vadd.f32 %v5018, %v5214
      %v5281 = vadd.f32 %v5019, %v5217
      %v5282 = vadd.f32 %v5020, %v5222
      %v5283 = vadd.f32 %v5021, %v5225
      %v5284 = vadd.f32 %v5022, %v5230
      %v5285 = vadd.f32 %v5023, %v5233
      %v5286 = vadd.f32 %v5024, %v5238
      %v5287 = vadd.f32 %v5025, %v5241
      %v5288 = vadd.f32 %v5026, %v5246
      %v5289 = vadd.f32 %v5027, %v5249
      %v5290 = vadd.f32 %v5028, %v5254
      %v5291 = vadd.f32 %v5029, %v5257
      %s5292 = scalar_lea.vmem %s3, 320
      %v5293 = vld [vmem:[%s5292] sm:$0xf]
      %v5294 = vld [vmem:[%s5292 + $0x4] sm:$0xf]
      %v5295 = vld [vmem:[%s5292 + $0x8] sm:$0xf]
      %v5296 = vld [vmem:[%s5292 + $0xc] sm:$0xf]
      %v5297 = vld [vmem:[%s5292 + $0x10] sm:$0xf]
      %v5298 = vld [vmem:[%s5292 + $0x14] sm:$0xf]
      %v5299 = vld [vmem:[%s5292 + $0x18] sm:$0xf]
      %v5300 = vld [vmem:[%s5292 + $0x1c] sm:$0xf]
      %v5301 = vld [vmem:[%s5292 + $0x20] sm:$0xf]
      %v5302 = vld [vmem:[%s5292 + $0x24] sm:$0xf]
      %v5303 = vld [vmem:[%s5292 + $0x28] sm:$0xf]
      %v5304 = vld [vmem:[%s5292 + $0x2c] sm:$0xf]
      %v5305 = vld [vmem:[%s5292 + $0x30] sm:$0xf]
      %v5306 = vld [vmem:[%s5292 + $0x34] sm:$0xf]
      %v5307 = vld [vmem:[%s5292 + $0x38] sm:$0xf]
      %v5308 = vld [vmem:[%s5292 + $0x3c] sm:$0xf]
      %v5309 = vunpack.c.l.b16 %v3700
      %v5310 = vunpack.c.l.b16 %v3710
      %v5311 = vpack.c.b16 %v5310, %v5309
      %v5329 = vunpack.c.l.b16 %v5293
      %v5330 = vunpack.c.l.b16 %v5294
      %v5331 = vunpack.c.l.b16 %v5295
      %v5332 = vunpack.c.l.b16 %v5296
      %v5333 = vunpack.c.l.b16 %v5297
      %v5334 = vunpack.c.l.b16 %v5298
      %v5335 = vunpack.c.l.b16 %v5299
      %v5336 = vunpack.c.l.b16 %v5300
      %v5337 = vunpack.c.l.b16 %v5301
      %v5338 = vunpack.c.l.b16 %v5302
      %v5339 = vunpack.c.l.b16 %v5303
      %v5340 = vunpack.c.l.b16 %v5304
      %v5341 = vunpack.c.l.b16 %v5305
      %v5342 = vunpack.c.l.b16 %v5306
      %v5343 = vunpack.c.l.b16 %v5307
      %v5344 = vunpack.c.l.b16 %v5308
      %v5345 = vpack.c.b16 %v5330, %v5329
      %v5346 = vpack.c.b16 %v5332, %v5331
      %v5347 = vpack.c.b16 %v5334, %v5333
      %v5348 = vpack.c.b16 %v5336, %v5335
      %v5349 = vpack.c.b16 %v5338, %v5337
      %v5350 = vpack.c.b16 %v5340, %v5339
      %v5351 = vpack.c.b16 %v5342, %v5341
      %v5352 = vpack.c.b16 %v5344, %v5343
      %5361 = vmatprep.subr.bf16.mxu0 0
      %5362 = vmatpush1.bf16.msra.mxu0 %v5345
      %5363 = vmatprep.subr.bf16.mxu0 0
      %5364 = vmatpush1.bf16.msra.mxu0 %v5346
      %5365 = vmatprep.subr.bf16.mxu0 0
      %5366 = vmatpush1.bf16.msra.mxu0 %v5347
      %5367 = vmatprep.subr.bf16.mxu0 0
      %5368 = vmatpush1.bf16.msra.mxu0 %v5348
      %5369 = vmatprep.subr.bf16.mxu0 0
      %5370 = vmatpush1.bf16.msra.mxu0 %v5349
      %5371 = vmatprep.subr.bf16.mxu0 0
      %5372 = vmatpush1.bf16.msra.mxu0 %v5350
      %5373 = vmatprep.subr.bf16.mxu0 0
      %5374 = vmatpush1.bf16.msra.mxu0 %v5351
      %5375 = vmatprep.subr.bf16.mxu0 0
      %5376 = vmatpush1.bf16.msra.mxu0 %v5352
      %5377 = vmatprep.subr.bf16.mxu0 0
      %5378 = vmatpush1.bf16.msra.mxu0 0
      %5379 = vmatprep.subr.bf16.mxu0 0
      %5380 = vmatpush1.bf16.msra.mxu0 0
      %5381 = vmatprep.subr.bf16.mxu0 0
      %5382 = vmatpush1.bf16.msra.mxu0 0
      %5383 = vmatprep.subr.bf16.mxu0 0
      %5384 = vmatpush1.bf16.msra.mxu0 0
      %5385 = vmatprep.subr.bf16.mxu0 0
      %5386 = vmatpush1.bf16.msra.mxu0 0
      %5387 = vmatprep.subr.bf16.mxu0 0
      %5388 = vmatpush1.bf16.msra.mxu0 0
      %5389 = vmatprep.subr.bf16.mxu0 0
      %5390 = vmatpush1.bf16.msra.mxu0 0
      %5391 = vmatprep.subr.bf16.mxu0 0
      %5392 = vmatpush1.bf16.msra.mxu0 0
      %5393 = vmatprep.mubr.bf16.mxu0 0
      %5394 = vmatmul.mubr.bf16.gmra.mrb[0].mxu0 %v4759
      %v5395 = vpop.f32.mrb[0].mxu0
      %v5396 = vadd.f32 0.0, %v5395
      %v5397 = vpop.f32.mrb[0].mxu0
      %v5398 = vpop.f32.mrb[0].mxu0
      %v5399 = vadd.f32 0.0, %v5398
      %v5400 = vpop.f32.mrb[0].mxu0
      %5401 = vmatprep.mubr.bf16.mxu0 0
      %5402 = vmatmul.mubr.bf16.gmra.mrb[0].mxu0 %v4760
      %v5403 = vpop.f32.mrb[0].mxu0
      %v5404 = vadd.f32 0.0, %v5403
      %v5405 = vpop.f32.mrb[0].mxu0
      %v5406 = vpop.f32.mrb[0].mxu0
      %v5407 = vadd.f32 0.0, %v5406
      %v5408 = vpop.f32.mrb[0].mxu0
      %5409 = vmatprep.mubr.bf16.mxu0 0
      %5410 = vmatmul.mubr.bf16.gmra.mrb[0].mxu0 %v4761
      %v5411 = vpop.f32.mrb[0].mxu0
      %v5412 = vadd.f32 0.0, %v5411
      %v5413 = vpop.f32.mrb[0].mxu0
      %v5414 = vpop.f32.mrb[0].mxu0
      %v5415 = vadd.f32 0.0, %v5414
      %v5416 = vpop.f32.mrb[0].mxu0
      %5417 = vmatprep.mubr.bf16.mxu0 0
      %5418 = vmatmul.mubr.bf16.gmra.mrb[0].mxu0 %v4762
      %v5419 = vpop.f32.mrb[0].mxu0
      %v5420 = vadd.f32 0.0, %v5419
      %v5421 = vpop.f32.mrb[0].mxu0
      %v5422 = vpop.f32.mrb[0].mxu0
      %v5423 = vadd.f32 0.0, %v5422
      %v5424 = vpop.f32.mrb[0].mxu0
      %5425 = vmatprep.mubr.bf16.mxu0 0
      %5426 = vmatmul.mubr.bf16.gmra.mrb[0].mxu0 %v4763
      %v5427 = vpop.f32.mrb[0].mxu0
      %v5428 = vadd.f32 0.0, %v5427
      %v5429 = vpop.f32.mrb[0].mxu0
      %v5430 = vpop.f32.mrb[0].mxu0
      %v5431 = vadd.f32 0.0, %v5430
      %v5432 = vpop.f32.mrb[0].mxu0
      %5433 = vmatprep.mubr.bf16.mxu0 0
      %5434 = vmatmul.mubr.bf16.gmra.mrb[0].mxu0 %v4764
      %v5435 = vpop.f32.mrb[0].mxu0
      %v5436 = vadd.f32 0.0, %v5435
      %v5437 = vpop.f32.mrb[0].mxu0
      %v5438 = vpop.f32.mrb[0].mxu0
      %v5439 = vadd.f32 0.0, %v5438
      %v5440 = vpop.f32.mrb[0].mxu0
      %5441 = vmatprep.mubr.bf16.mxu0 0
      %5442 = vmatmul.mubr.bf16.gmra.mrb[0].mxu0 %v4765
      %v5443 = vpop.f32.mrb[0].mxu0
      %v5444 = vadd.f32 0.0, %v5443
      %v5445 = vpop.f32.mrb[0].mxu0
      %v5446 = vpop.f32.mrb[0].mxu0
      %v5447 = vadd.f32 0.0, %v5446
      %v5448 = vpop.f32.mrb[0].mxu0
      %5449 = vmatprep.mubr.bf16.mxu0 0
      %5450 = vmatmul.mubr.bf16.gmra.mrb[0].mxu0 %v4766
      %v5451 = vpop.f32.mrb[0].mxu0
      %v5452 = vadd.f32 0.0, %v5451
      %v5453 = vpop.f32.mrb[0].mxu0
      %v5454 = vpop.f32.mrb[0].mxu0
      %v5455 = vadd.f32 0.0, %v5454
      %v5456 = vpop.f32.mrb[0].mxu0
      %5457 = vmatprep.mubr.bf16.mxu0 0
      %5458 = vmatmul.mubr.bf16.gmra.mrb[0].mxu0 %v4767
      %v5459 = vpop.f32.mrb[0].mxu0
      %v5460 = vadd.f32 0.0, %v5459
      %v5461 = vpop.f32.mrb[0].mxu0
      %v5462 = vpop.f32.mrb[0].mxu0
      %v5463 = vadd.f32 0.0, %v5462
      %v5464 = vpop.f32.mrb[0].mxu0
      %5465 = vmatprep.mubr.bf16.mxu0 0
      %5466 = vmatmul.mubr.bf16.gmra.mrb[0].mxu0 %v4768
      %v5467 = vpop.f32.mrb[0].mxu0
      %v5468 = vadd.f32 0.0, %v5467
      %v5469 = vpop.f32.mrb[0].mxu0
      %v5470 = vpop.f32.mrb[0].mxu0
      %v5471 = vadd.f32 0.0, %v5470
      %v5472 = vpop.f32.mrb[0].mxu0
      %5473 = vmatprep.mubr.bf16.mxu0 0
      %5474 = vmatmul.mubr.bf16.gmra.mrb[0].mxu0 %v4769
      %v5475 = vpop.f32.mrb[0].mxu0
      %v5476 = vadd.f32 0.0, %v5475
      %v5477 = vpop.f32.mrb[0].mxu0
      %v5478 = vpop.f32.mrb[0].mxu0
      %v5479 = vadd.f32 0.0, %v5478
      %v5480 = vpop.f32.mrb[0].mxu0
      %5481 = vmatprep.mubr.bf16.mxu0 0
      %5482 = vmatmul.mubr.bf16.gmra.mrb[0].mxu0 %v4770
      %v5483 = vpop.f32.mrb[0].mxu0
      %v5484 = vadd.f32 0.0, %v5483
      %v5485 = vpop.f32.mrb[0].mxu0
      %v5486 = vpop.f32.mrb[0].mxu0
      %v5487 = vadd.f32 0.0, %v5486
      %v5488 = vpop.f32.mrb[0].mxu0
      %5489 = vmatprep.mubr.bf16.mxu0 0
      %5490 = vmatmul.mubr.bf16.gmra.mrb[0].mxu0 %v4771
      %v5491 = vpop.f32.mrb[0].mxu0
      %v5492 = vadd.f32 0.0, %v5491
      %v5493 = vpop.f32.mrb[0].mxu0
      %v5494 = vpop.f32.mrb[0].mxu0
      %v5495 = vadd.f32 0.0, %v5494
      %v5496 = vpop.f32.mrb[0].mxu0
      %5497 = vmatprep.mubr.bf16.mxu0 0
      %5498 = vmatmul.mubr.bf16.gmra.mrb[0].mxu0 %v4772
      %v5499 = vpop.f32.mrb[0].mxu0
      %v5500 = vadd.f32 0.0, %v5499
      %v5501 = vpop.f32.mrb[0].mxu0
      %v5502 = vpop.f32.mrb[0].mxu0
      %v5503 = vadd.f32 0.0, %v5502
      %v5504 = vpop.f32.mrb[0].mxu0
      %5505 = vmatprep.mubr.bf16.mxu0 0
      %5506 = vmatmul.mubr.bf16.gmra.mrb[0].mxu0 %v5049
      %v5507 = vpop.f32.mrb[0].mxu0
      %v5508 = vadd.f32 0.0, %v5507
      %v5509 = vpop.f32.mrb[0].mxu0
      %v5510 = vpop.f32.mrb[0].mxu0
      %v5511 = vadd.f32 0.0, %v5510
      %v5512 = vpop.f32.mrb[0].mxu0
      %5513 = vmatprep.mubr.bf16.mxu0 0
      %5514 = vmatmul.mubr.bf16.gmra.mrb[0].mxu0 %v5311
      %v5515 = vpop.f32.mrb[0].mxu0
      %v5516 = vadd.f32 0.0, %v5515
      %v5517 = vpop.f32.mrb[0].mxu0
      %v5518 = vpop.f32.mrb[0].mxu0
      %v5519 = vadd.f32 0.0, %v5518
      %v5520 = vpop.f32.mrb[0].mxu0
      %5521 = vdwg.mxu0
      %v5522 = vadd.f32 %v5260, %v5396
      %v5523 = vadd.f32 %v5261, %v5399
      %v5524 = vadd.f32 %v5262, %v5404
      %v5525 = vadd.f32 %v5263, %v5407
      %v5526 = vadd.f32 %v5264, %v5412
      %v5527 = vadd.f32 %v5265, %v5415
      %v5528 = vadd.f32 %v5266, %v5420
      %v5529 = vadd.f32 %v5267, %v5423
      %v5530 = vadd.f32 %v5268, %v5428
      %v5531 = vadd.f32 %v5269, %v5431
      %v5532 = vadd.f32 %v5270, %v5436
      %v5533 = vadd.f32 %v5271, %v5439
      %v5534 = vadd.f32 %v5272, %v5444
      %v5535 = vadd.f32 %v5273, %v5447
      %v5536 = vadd.f32 %v5274, %v5452
      %v5537 = vadd.f32 %v5275, %v5455
      %v5538 = vadd.f32 %v5276, %v5460
      %v5539 = vadd.f32 %v5277, %v5463
      %v5540 = vadd.f32 %v5278, %v5468
      %v5541 = vadd.f32 %v5279, %v5471
      %v5542 = vadd.f32 %v5280, %v5476
      %v5543 = vadd.f32 %v5281, %v5479
      %v5544 = vadd.f32 %v5282, %v5484
      %v5545 = vadd.f32 %v5283, %v5487
      %v5546 = vadd.f32 %v5284, %v5492
      %v5547 = vadd.f32 %v5285, %v5495
      %v5548 = vadd.f32 %v5286, %v5500
      %v5549 = vadd.f32 %v5287, %v5503
      %v5550 = vadd.f32 %v5288, %v5508
      %v5551 = vadd.f32 %v5289, %v5511
      %v5552 = vadd.f32 %v5290, %v5516
      %v5553 = vadd.f32 %v5291, %v5519
      %s5554 = scalar_lea.vmem %s3, 384
      %v5555 = vld [vmem:[%s5554] sm:$0xf]
      %v5556 = vld [vmem:[%s5554 + $0x4] sm:$0xf]
      %v5557 = vld [vmem:[%s5554 + $0x8] sm:$0xf]
      %v5558 = vld [vmem:[%s5554 + $0xc] sm:$0xf]
      %v5559 = vld [vmem:[%s5554 + $0x10] sm:$0xf]
      %v5560 = vld [vmem:[%s5554 + $0x14] sm:$0xf]
      %v5561 = vld [vmem:[%s5554 + $0x18] sm:$0xf]
      %v5562 = vld [vmem:[%s5554 + $0x1c] sm:$0xf]
      %v5563 = vld [vmem:[%s5554 + $0x20] sm:$0xf]
      %v5564 = vld [vmem:[%s5554 + $0x24] sm:$0xf]
      %v5565 = vld [vmem:[%s5554 + $0x28] sm:$0xf]
      %v5566 = vld [vmem:[%s5554 + $0x2c] sm:$0xf]
      %v5567 = vld [vmem:[%s5554 + $0x30] sm:$0xf]
      %v5568 = vld [vmem:[%s5554 + $0x34] sm:$0xf]
      %v5569 = vld [vmem:[%s5554 + $0x38] sm:$0xf]
      %v5570 = vld [vmem:[%s5554 + $0x3c] sm:$0xf]
      %v5571 = vunpack.c.l.b16 %v3786
      %v5572 = vunpack.c.l.b16 %v3789
      %v5573 = vunpack.c.l.b16 %v3793
      %v5574 = vunpack.c.l.b16 %v3796
      %v5575 = vunpack.c.l.b16 %v3800
      %v5576 = vunpack.c.l.b16 %v3803
      %v5577 = vunpack.c.l.b16 %v3807
      %v5578 = vunpack.c.l.b16 %v3810
      %v5579 = vunpack.c.l.b16 %v3814
      %v5580 = vunpack.c.l.b16 %v3817
      %v5581 = vunpack.c.l.b16 %v3821
      %v5582 = vunpack.c.l.b16 %v3824
      %v5583 = vunpack.c.l.b16 %v3828
      %v5584 = vunpack.c.l.b16 %v3831
      %v5585 = vunpack.c.l.b16 %v3835
      %v5586 = vunpack.c.l.b16 %v3838
      %v5587 = vunpack.c.l.b16 %v3842
      %v5588 = vunpack.c.l.b16 %v3845
      %v5589 = vunpack.c.l.b16 %v3849
      %v5590 = vunpack.c.l.b16 %v3852
      %v5591 = vunpack.c.l.b16 %v3856
      %v5592 = vunpack.c.l.b16 %v3859
      %v5593 = vunpack.c.l.b16 %v3863
      %v5594 = vunpack.c.l.b16 %v3866
      %v5595 = vunpack.c.l.b16 %v3870
      %v5596 = vunpack.c.l.b16 %v3873
      %v5597 = vunpack.c.l.b16 %v3877
      %v5598 = vunpack.c.l.b16 %v3880
      %v5599 = vunpack.c.l.b16 %v3884
      %v5600 = vunpack.c.l.b16 %v3887
      %v5601 = vunpack.c.l.b16 %v3891
      %v5602 = vunpack.c.l.b16 %v3894
      %v5603 = vpack.c.b16 %v5572, %v5571
      %v5604 = vpack.c.b16 %v5574, %v5573
      %v5605 = vpack.c.b16 %v5576, %v5575
      %v5606 = vpack.c.b16 %v5578, %v5577
      %v5607 = vpack.c.b16 %v5580, %v5579
      %v5608 = vpack.c.b16 %v5582, %v5581
      %v5609 = vpack.c.b16 %v5584, %v5583
      %v5610 = vpack.c.b16 %v5586, %v5585
      %v5611 = vpack.c.b16 %v5588, %v5587
      %v5612 = vpack.c.b16 %v5590, %v5589
      %v5613 = vpack.c.b16 %v5592, %v5591
      %v5614 = vpack.c.b16 %v5594, %v5593
      %v5615 = vpack.c.b16 %v5596, %v5595
      %v5616 = vpack.c.b16 %v5598, %v5597
      %v5617 = vpack.c.b16 %v5600, %v5599
      %v5618 = vpack.c.b16 %v5602, %v5601
      %v5651 = vunpack.c.l.b16 %v5555
      %v5652 = vunpack.c.l.b16 %v5556
      %v5653 = vunpack.c.l.b16 %v5557
      %v5654 = vunpack.c.l.b16 %v5558
      %v5655 = vunpack.c.l.b16 %v5559
      %v5656 = vunpack.c.l.b16 %v5560
      %v5657 = vunpack.c.l.b16 %v5561
      %v5658 = vunpack.c.l.b16 %v5562
      %v5659 = vunpack.c.l.b16 %v5563
      %v5660 = vunpack.c.l.b16 %v5564
      %v5661 = vunpack.c.l.b16 %v5565
      %v5662 = vunpack.c.l.b16 %v5566
      %v5663 = vunpack.c.l.b16 %v5567
      %v5664 = vunpack.c.l.b16 %v5568
      %v5665 = vunpack.c.l.b16 %v5569
      %v5666 = vunpack.c.l.b16 %v5570
      %v5667 = vpack.c.b16 %v5652, %v5651
      %v5668 = vpack.c.b16 %v5654, %v5653
      %v5669 = vpack.c.b16 %v5656, %v5655
      %v5670 = vpack.c.b16 %v5658, %v5657
      %v5671 = vpack.c.b16 %v5660, %v5659
      %v5672 = vpack.c.b16 %v5662, %v5661
      %v5673 = vpack.c.b16 %v5664, %v5663
      %v5674 = vpack.c.b16 %v5666, %v5665
      %5683 = vmatprep.subr.bf16.mxu0 0
      %5684 = vmatpush1.bf16.msra.mxu0 %v5667
      %5685 = vmatprep.subr.bf16.mxu0 0
      %5686 = vmatpush1.bf16.msra.mxu0 %v5668
      %5687 = vmatprep.subr.bf16.mxu0 0
      %5688 = vmatpush1.bf16.msra.mxu0 %v5669
      %5689 = vmatprep.subr.bf16.mxu0 0
      %5690 = vmatpush1.bf16.msra.mxu0 %v5670
      %5691 = vmatprep.subr.bf16.mxu0 0
      %5692 = vmatpush1.bf16.msra.mxu0 %v5671
      %5693 = vmatprep.subr.bf16.mxu0 0
      %5694 = vmatpush1.bf16.msra.mxu0 %v5672
      %5695 = vmatprep.subr.bf16.mxu0 0
      %5696 = vmatpush1.bf16.msra.mxu0 %v5673
      %5697 = vmatprep.subr.bf16.mxu0 0
      %5698 = vmatpush1.bf16.msra.mxu0 %v5674
      %5699 = vmatprep.subr.bf16.mxu0 0
      %5700 = vmatpush1.bf16.msra.mxu0 0
      %5701 = vmatprep.subr.bf16.mxu0 0
      %5702 = vmatpush1.bf16.msra.mxu0 0
      %5703 = vmatprep.subr.bf16.mxu0 0
      %5704 = vmatpush1.bf16.msra.mxu0 0
      %5705 = vmatprep.subr.bf16.mxu0 0
      %5706 = vmatpush1.bf16.msra.mxu0 0
      %5707 = vmatprep.subr.bf16.mxu0 0
      %5708 = vmatpush1.bf16.msra.mxu0 0
      %5709 = vmatprep.subr.bf16.mxu0 0
      %5710 = vmatpush1.bf16.msra.mxu0 0
      %5711 = vmatprep.subr.bf16.mxu0 0
      %5712 = vmatpush1.bf16.msra.mxu0 0
      %5713 = vmatprep.subr.bf16.mxu0 0
      %5714 = vmatpush1.bf16.msra.mxu0 0
      %5715 = vmatprep.mubr.bf16.mxu0 0
      %5716 = vmatmul.mubr.bf16.gmra.mrb[0].mxu0 %v5603
      %v5717 = vpop.f32.mrb[0].mxu0
      %v5718 = vadd.f32 0.0, %v5717
      %v5719 = vpop.f32.mrb[0].mxu0
      %v5720 = vpop.f32.mrb[0].mxu0
      %v5721 = vadd.f32 0.0, %v5720
      %v5722 = vpop.f32.mrb[0].mxu0
      %5723 = vmatprep.mubr.bf16.mxu0 0
      %5724 = vmatmul.mubr.bf16.gmra.mrb[0].mxu0 %v5604
      %v5725 = vpop.f32.mrb[0].mxu0
      %v5726 = vadd.f32 0.0, %v5725
      %v5727 = vpop.f32.mrb[0].mxu0
      %v5728 = vpop.f32.mrb[0].mxu0
      %v5729 = vadd.f32 0.0, %v5728
      %v5730 = vpop.f32.mrb[0].mxu0
      %5731 = vmatprep.mubr.bf16.mxu0 0
      %5732 = vmatmul.mubr.bf16.gmra.mrb[0].mxu0 %v5605
      %v5733 = vpop.f32.mrb[0].mxu0
      %v5734 = vadd.f32 0.0, %v5733
      %v5735 = vpop.f32.mrb[0].mxu0
      %v5736 = vpop.f32.mrb[0].mxu0
      %v5737 = vadd.f32 0.0, %v5736
      %v5738 = vpop.f32.mrb[0].mxu0
      %5739 = vmatprep.mubr.bf16.mxu0 0
      %5740 = vmatmul.mubr.bf16.gmra.mrb[0].mxu0 %v5606
      %v5741 = vpop.f32.mrb[0].mxu0
      %v5742 = vadd.f32 0.0, %v5741
      %v5743 = vpop.f32.mrb[0].mxu0
      %v5744 = vpop.f32.mrb[0].mxu0
      %v5745 = vadd.f32 0.0, %v5744
      %v5746 = vpop.f32.mrb[0].mxu0
      %5747 = vmatprep.mubr.bf16.mxu0 0
      %5748 = vmatmul.mubr.bf16.gmra.mrb[0].mxu0 %v5607
      %v5749 = vpop.f32.mrb[0].mxu0
      %v5750 = vadd.f32 0.0, %v5749
      %v5751 = vpop.f32.mrb[0].mxu0
      %v5752 = vpop.f32.mrb[0].mxu0
      %v5753 = vadd.f32 0.0, %v5752
      %v5754 = vpop.f32.mrb[0].mxu0
      %5755 = vmatprep.mubr.bf16.mxu0 0
      %5756 = vmatmul.mubr.bf16.gmra.mrb[0].mxu0 %v5608
      %v5757 = vpop.f32.mrb[0].mxu0
      %v5758 = vadd.f32 0.0, %v5757
      %v5759 = vpop.f32.mrb[0].mxu0
      %v5760 = vpop.f32.mrb[0].mxu0
      %v5761 = vadd.f32 0.0, %v5760
      %v5762 = vpop.f32.mrb[0].mxu0
      %5763 = vmatprep.mubr.bf16.mxu0 0
      %5764 = vmatmul.mubr.bf16.gmra.mrb[0].mxu0 %v5609
      %v5765 = vpop.f32.mrb[0].mxu0
      %v5766 = vadd.f32 0.0, %v5765
      %v5767 = vpop.f32.mrb[0].mxu0
      %v5768 = vpop.f32.mrb[0].mxu0
      %v5769 = vadd.f32 0.0, %v5768
      %v5770 = vpop.f32.mrb[0].mxu0
      %5771 = vmatprep.mubr.bf16.mxu0 0
      %5772 = vmatmul.mubr.bf16.gmra.mrb[0].mxu0 %v5610
      %v5773 = vpop.f32.mrb[0].mxu0
      %v5774 = vadd.f32 0.0, %v5773
      %v5775 = vpop.f32.mrb[0].mxu0
      %v5776 = vpop.f32.mrb[0].mxu0
      %v5777 = vadd.f32 0.0, %v5776
      %v5778 = vpop.f32.mrb[0].mxu0
      %5779 = vmatprep.mubr.bf16.mxu0 0
      %5780 = vmatmul.mubr.bf16.gmra.mrb[0].mxu0 %v5611
      %v5781 = vpop.f32.mrb[0].mxu0
      %v5782 = vadd.f32 0.0, %v5781
      %v5783 = vpop.f32.mrb[0].mxu0
      %v5784 = vpop.f32.mrb[0].mxu0
      %v5785 = vadd.f32 0.0, %v5784
      %v5786 = vpop.f32.mrb[0].mxu0
      %5787 = vmatprep.mubr.bf16.mxu0 0
      %5788 = vmatmul.mubr.bf16.gmra.mrb[0].mxu0 %v5612
      %v5789 = vpop.f32.mrb[0].mxu0
      %v5790 = vadd.f32 0.0, %v5789
      %v5791 = vpop.f32.mrb[0].mxu0
      %v5792 = vpop.f32.mrb[0].mxu0
      %v5793 = vadd.f32 0.0, %v5792
      %v5794 = vpop.f32.mrb[0].mxu0
      %5795 = vmatprep.mubr.bf16.mxu0 0
      %5796 = vmatmul.mubr.bf16.gmra.mrb[0].mxu0 %v5613
      %v5797 = vpop.f32.mrb[0].mxu0
      %v5798 = vadd.f32 0.0, %v5797
      %v5799 = vpop.f32.mrb[0].mxu0
      %v5800 = vpop.f32.mrb[0].mxu0
      %v5801 = vadd.f32 0.0, %v5800
      %v5802 = vpop.f32.mrb[0].mxu0
      %5803 = vmatprep.mubr.bf16.mxu0 0
      %5804 = vmatmul.mubr.bf16.gmra.mrb[0].mxu0 %v5614
      %v5805 = vpop.f32.mrb[0].mxu0
      %v5806 = vadd.f32 0.0, %v5805
      %v5807 = vpop.f32.mrb[0].mxu0
      %v5808 = vpop.f32.mrb[0].mxu0
      %v5809 = vadd.f32 0.0, %v5808
      %v5810 = vpop.f32.mrb[0].mxu0
      %5811 = vmatprep.mubr.bf16.mxu0 0
      %5812 = vmatmul.mubr.bf16.gmra.mrb[0].mxu0 %v5615
      %v5813 = vpop.f32.mrb[0].mxu0
      %v5814 = vadd.f32 0.0, %v5813
      %v5815 = vpop.f32.mrb[0].mxu0
      %v5816 = vpop.f32.mrb[0].mxu0
      %v5817 = vadd.f32 0.0, %v5816
      %v5818 = vpop.f32.mrb[0].mxu0
      %5819 = vmatprep.mubr.bf16.mxu0 0
      %5820 = vmatmul.mubr.bf16.gmra.mrb[0].mxu0 %v5616
      %v5821 = vpop.f32.mrb[0].mxu0
      %v5822 = vadd.f32 0.0, %v5821
      %v5823 = vpop.f32.mrb[0].mxu0
      %v5824 = vpop.f32.mrb[0].mxu0
      %v5825 = vadd.f32 0.0, %v5824
      %v5826 = vpop.f32.mrb[0].mxu0
      %5827 = vmatprep.mubr.bf16.mxu0 0
      %5828 = vmatmul.mubr.bf16.gmra.mrb[0].mxu0 %v5617
      %v5829 = vpop.f32.mrb[0].mxu0
      %v5830 = vadd.f32 0.0, %v5829
      %v5831 = vpop.f32.mrb[0].mxu0
      %v5832 = vpop.f32.mrb[0].mxu0
      %v5833 = vadd.f32 0.0, %v5832
      %v5834 = vpop.f32.mrb[0].mxu0
      %5835 = vmatprep.mubr.bf16.mxu0 0
      %5836 = vmatmul.mubr.bf16.gmra.mrb[0].mxu0 %v5618
      %v5837 = vpop.f32.mrb[0].mxu0
      %v5838 = vadd.f32 0.0, %v5837
      %v5839 = vpop.f32.mrb[0].mxu0
      %v5840 = vpop.f32.mrb[0].mxu0
      %v5841 = vadd.f32 0.0, %v5840
      %v5842 = vpop.f32.mrb[0].mxu0
      %5843 = vdwg.mxu0
      %v5844 = vadd.f32 %v5522, %v5718
      %v5845 = vadd.f32 %v5523, %v5721
      %v5846 = vadd.f32 %v5524, %v5726
      %v5847 = vadd.f32 %v5525, %v5729
      %v5848 = vadd.f32 %v5526, %v5734
      %v5849 = vadd.f32 %v5527, %v5737
      %v5850 = vadd.f32 %v5528, %v5742
      %v5851 = vadd.f32 %v5529, %v5745
      %v5852 = vadd.f32 %v5530, %v5750
      %v5853 = vadd.f32 %v5531, %v5753
      %v5854 = vadd.f32 %v5532, %v5758
      %v5855 = vadd.f32 %v5533, %v5761
      %v5856 = vadd.f32 %v5534, %v5766
      %v5857 = vadd.f32 %v5535, %v5769
      %v5858 = vadd.f32 %v5536, %v5774
      %v5859 = vadd.f32 %v5537, %v5777
      %v5860 = vadd.f32 %v5538, %v5782
      %v5861 = vadd.f32 %v5539, %v5785
      %v5862 = vadd.f32 %v5540, %v5790
      %v5863 = vadd.f32 %v5541, %v5793
      %v5864 = vadd.f32 %v5542, %v5798
      %v5865 = vadd.f32 %v5543, %v5801
      %v5866 = vadd.f32 %v5544, %v5806
      %v5867 = vadd.f32 %v5545, %v5809
      %v5868 = vadd.f32 %v5546, %v5814
      %v5869 = vadd.f32 %v5547, %v5817
      %v5870 = vadd.f32 %v5548, %v5822
      %v5871 = vadd.f32 %v5549, %v5825
      %v5872 = vadd.f32 %v5550, %v5830
      %v5873 = vadd.f32 %v5551, %v5833
      %v5874 = vadd.f32 %v5552, %v5838
      %v5875 = vadd.f32 %v5553, %v5841
      %s5876 = scalar_lea.vmem %s3, 448
      %v5877 = vld [vmem:[%s5876] sm:$0xf]
      %v5878 = vld [vmem:[%s5876 + $0x4] sm:$0xf]
      %v5879 = vld [vmem:[%s5876 + $0x8] sm:$0xf]
      %v5880 = vld [vmem:[%s5876 + $0xc] sm:$0xf]
      %v5881 = vld [vmem:[%s5876 + $0x10] sm:$0xf]
      %v5882 = vld [vmem:[%s5876 + $0x14] sm:$0xf]
      %v5883 = vld [vmem:[%s5876 + $0x18] sm:$0xf]
      %v5884 = vld [vmem:[%s5876 + $0x1c] sm:$0xf]
      %v5885 = vld [vmem:[%s5876 + $0x20] sm:$0xf]
      %v5886 = vld [vmem:[%s5876 + $0x24] sm:$0xf]
      %v5887 = vld [vmem:[%s5876 + $0x28] sm:$0xf]
      %v5888 = vld [vmem:[%s5876 + $0x2c] sm:$0xf]
      %v5889 = vld [vmem:[%s5876 + $0x30] sm:$0xf]
      %v5890 = vld [vmem:[%s5876 + $0x34] sm:$0xf]
      %v5891 = vld [vmem:[%s5876 + $0x38] sm:$0xf]
      %v5892 = vld [vmem:[%s5876 + $0x3c] sm:$0xf]
      %v5893 = vunpack.c.l.b16 %v3898
      %v5894 = vunpack.c.l.b16 %v3901
      %v5895 = vpack.c.b16 %v5894, %v5893
      %v5913 = vunpack.c.l.b16 %v5877
      %v5914 = vunpack.c.l.b16 %v5878
      %v5915 = vunpack.c.l.b16 %v5879
      %v5916 = vunpack.c.l.b16 %v5880
      %v5917 = vunpack.c.l.b16 %v5881
      %v5918 = vunpack.c.l.b16 %v5882
      %v5919 = vunpack.c.l.b16 %v5883
      %v5920 = vunpack.c.l.b16 %v5884
      %v5921 = vunpack.c.l.b16 %v5885
      %v5922 = vunpack.c.l.b16 %v5886
      %v5923 = vunpack.c.l.b16 %v5887
      %v5924 = vunpack.c.l.b16 %v5888
      %v5925 = vunpack.c.l.b16 %v5889
      %v5926 = vunpack.c.l.b16 %v5890
      %v5927 = vunpack.c.l.b16 %v5891
      %v5928 = vunpack.c.l.b16 %v5892
      %v5929 = vpack.c.b16 %v5914, %v5913
      %v5930 = vpack.c.b16 %v5916, %v5915
      %v5931 = vpack.c.b16 %v5918, %v5917
      %v5932 = vpack.c.b16 %v5920, %v5919
      %v5933 = vpack.c.b16 %v5922, %v5921
      %v5934 = vpack.c.b16 %v5924, %v5923
      %v5935 = vpack.c.b16 %v5926, %v5925
      %v5936 = vpack.c.b16 %v5928, %v5927
      %5945 = vmatprep.subr.bf16.mxu0 0
      %5946 = vmatpush1.bf16.msra.mxu0 %v5929
      %5947 = vmatprep.subr.bf16.mxu0 0
      %5948 = vmatpush1.bf16.msra.mxu0 %v5930
      %5949 = vmatprep.subr.bf16.mxu0 0
      %5950 = vmatpush1.bf16.msra.mxu0 %v5931
      %5951 = vmatprep.subr.bf16.mxu0 0
      %5952 = vmatpush1.bf16.msra.mxu0 %v5932
      %5953 = vmatprep.subr.bf16.mxu0 0
      %5954 = vmatpush1.bf16.msra.mxu0 %v5933
      %5955 = vmatprep.subr.bf16.mxu0 0
      %5956 = vmatpush1.bf16.msra.mxu0 %v5934
      %5957 = vmatprep.subr.bf16.mxu0 0
      %5958 = vmatpush1.bf16.msra.mxu0 %v5935
      %5959 = vmatprep.subr.bf16.mxu0 0
      %5960 = vmatpush1.bf16.msra.mxu0 %v5936
      %5961 = vmatprep.subr.bf16.mxu0 0
      %5962 = vmatpush1.bf16.msra.mxu0 0
      %5963 = vmatprep.subr.bf16.mxu0 0
      %5964 = vmatpush1.bf16.msra.mxu0 0
      %5965 = vmatprep.subr.bf16.mxu0 0
      %5966 = vmatpush1.bf16.msra.mxu0 0
      %5967 = vmatprep.subr.bf16.mxu0 0
      %5968 = vmatpush1.bf16.msra.mxu0 0
      %5969 = vmatprep.subr.bf16.mxu0 0
      %5970 = vmatpush1.bf16.msra.mxu0 0
      %5971 = vmatprep.subr.bf16.mxu0 0
      %5972 = vmatpush1.bf16.msra.mxu0 0
      %5973 = vmatprep.subr.bf16.mxu0 0
      %5974 = vmatpush1.bf16.msra.mxu0 0
      %5975 = vmatprep.subr.bf16.mxu0 0
      %5976 = vmatpush1.bf16.msra.mxu0 0
      %5977 = vmatprep.mubr.bf16.mxu0 0
      %5978 = vmatmul.mubr.bf16.gmra.mrb[0].mxu0 %v5604
      %v5979 = vpop.f32.mrb[0].mxu0
      %v5980 = vadd.f32 0.0, %v5979
      %v5981 = vpop.f32.mrb[0].mxu0
      %v5982 = vpop.f32.mrb[0].mxu0
      %v5983 = vadd.f32 0.0, %v5982
      %v5984 = vpop.f32.mrb[0].mxu0
      %5985 = vmatprep.mubr.bf16.mxu0 0
      %5986 = vmatmul.mubr.bf16.gmra.mrb[0].mxu0 %v5605
      %v5987 = vpop.f32.mrb[0].mxu0
      %v5988 = vadd.f32 0.0, %v5987
      %v5989 = vpop.f32.mrb[0].mxu0
      %v5990 = vpop.f32.mrb[0].mxu0
      %v5991 = vadd.f32 0.0, %v5990
      %v5992 = vpop.f32.mrb[0].mxu0
      %5993 = vmatprep.mubr.bf16.mxu0 0
      %5994 = vmatmul.mubr.bf16.gmra.mrb[0].mxu0 %v5606
      %v5995 = vpop.f32.mrb[0].mxu0
      %v5996 = vadd.f32 0.0, %v5995
      %v5997 = vpop.f32.mrb[0].mxu0
      %v5998 = vpop.f32.mrb[0].mxu0
      %v5999 = vadd.f32 0.0, %v5998
      %v6000 = vpop.f32.mrb[0].mxu0
      %6001 = vmatprep.mubr.bf16.mxu0 0
      %6002 = vmatmul.mubr.bf16.gmra.mrb[0].mxu0 %v5607
      %v6003 = vpop.f32.mrb[0].mxu0
      %v6004 = vadd.f32 0.0, %v6003
      %v6005 = vpop.f32.mrb[0].mxu0
      %v6006 = vpop.f32.mrb[0].mxu0
      %v6007 = vadd.f32 0.0, %v6006
      %v6008 = vpop.f32.mrb[0].mxu0
      %6009 = vmatprep.mubr.bf16.mxu0 0
      %6010 = vmatmul.mubr.bf16.gmra.mrb[0].mxu0 %v5608
      %v6011 = vpop.f32.mrb[0].mxu0
      %v6012 = vadd.f32 0.0, %v6011
      %v6013 = vpop.f32.mrb[0].mxu0
      %v6014 = vpop.f32.mrb[0].mxu0
      %v6015 = vadd.f32 0.0, %v6014
      %v6016 = vpop.f32.mrb[0].mxu0
      %6017 = vmatprep.mubr.bf16.mxu0 0
      %6018 = vmatmul.mubr.bf16.gmra.mrb[0].mxu0 %v5609
      %v6019 = vpop.f32.mrb[0].mxu0
      %v6020 = vadd.f32 0.0, %v6019
      %v6021 = vpop.f32.mrb[0].mxu0
      %v6022 = vpop.f32.mrb[0].mxu0
      %v6023 = vadd.f32 0.0, %v6022
      %v6024 = vpop.f32.mrb[0].mxu0
      %6025 = vmatprep.mubr.bf16.mxu0 0
      %6026 = vmatmul.mubr.bf16.gmra.mrb[0].mxu0 %v5610
      %v6027 = vpop.f32.mrb[0].mxu0
      %v6028 = vadd.f32 0.0, %v6027
      %v6029 = vpop.f32.mrb[0].mxu0
      %v6030 = vpop.f32.mrb[0].mxu0
      %v6031 = vadd.f32 0.0, %v6030
      %v6032 = vpop.f32.mrb[0].mxu0
      %6033 = vmatprep.mubr.bf16.mxu0 0
      %6034 = vmatmul.mubr.bf16.gmra.mrb[0].mxu0 %v5611
      %v6035 = vpop.f32.mrb[0].mxu0
      %v6036 = vadd.f32 0.0, %v6035
      %v6037 = vpop.f32.mrb[0].mxu0
      %v6038 = vpop.f32.mrb[0].mxu0
      %v6039 = vadd.f32 0.0, %v6038
      %v6040 = vpop.f32.mrb[0].mxu0
      %6041 = vmatprep.mubr.bf16.mxu0 0
      %6042 = vmatmul.mubr.bf16.gmra.mrb[0].mxu0 %v5612
      %v6043 = vpop.f32.mrb[0].mxu0
      %v6044 = vadd.f32 0.0, %v6043
      %v6045 = vpop.f32.mrb[0].mxu0
      %v6046 = vpop.f32.mrb[0].mxu0
      %v6047 = vadd.f32 0.0, %v6046
      %v6048 = vpop.f32.mrb[0].mxu0
      %6049 = vmatprep.mubr.bf16.mxu0 0
      %6050 = vmatmul.mubr.bf16.gmra.mrb[0].mxu0 %v5613
      %v6051 = vpop.f32.mrb[0].mxu0
      %v6052 = vadd.f32 0.0, %v6051
      %v6053 = vpop.f32.mrb[0].mxu0
      %v6054 = vpop.f32.mrb[0].mxu0
      %v6055 = vadd.f32 0.0, %v6054
      %v6056 = vpop.f32.mrb[0].mxu0
      %6057 = vmatprep.mubr.bf16.mxu0 0
      %6058 = vmatmul.mubr.bf16.gmra.mrb[0].mxu0 %v5614
      %v6059 = vpop.f32.mrb[0].mxu0
      %v6060 = vadd.f32 0.0, %v6059
      %v6061 = vpop.f32.mrb[0].mxu0
      %v6062 = vpop.f32.mrb[0].mxu0
      %v6063 = vadd.f32 0.0, %v6062
      %v6064 = vpop.f32.mrb[0].mxu0
      %6065 = vmatprep.mubr.bf16.mxu0 0
      %6066 = vmatmul.mubr.bf16.gmra.mrb[0].mxu0 %v5615
      %v6067 = vpop.f32.mrb[0].mxu0
      %v6068 = vadd.f32 0.0, %v6067
      %v6069 = vpop.f32.mrb[0].mxu0
      %v6070 = vpop.f32.mrb[0].mxu0
      %v6071 = vadd.f32 0.0, %v6070
      %v6072 = vpop.f32.mrb[0].mxu0
      %6073 = vmatprep.mubr.bf16.mxu0 0
      %6074 = vmatmul.mubr.bf16.gmra.mrb[0].mxu0 %v5616
      %v6075 = vpop.f32.mrb[0].mxu0
      %v6076 = vadd.f32 0.0, %v6075
      %v6077 = vpop.f32.mrb[0].mxu0
      %v6078 = vpop.f32.mrb[0].mxu0
      %v6079 = vadd.f32 0.0, %v6078
      %v6080 = vpop.f32.mrb[0].mxu0
      %6081 = vmatprep.mubr.bf16.mxu0 0
      %6082 = vmatmul.mubr.bf16.gmra.mrb[0].mxu0 %v5617
      %v6083 = vpop.f32.mrb[0].mxu0
      %v6084 = vadd.f32 0.0, %v6083
      %v6085 = vpop.f32.mrb[0].mxu0
      %v6086 = vpop.f32.mrb[0].mxu0
      %v6087 = vadd.f32 0.0, %v6086
      %v6088 = vpop.f32.mrb[0].mxu0
      %6089 = vmatprep.mubr.bf16.mxu0 0
      %6090 = vmatmul.mubr.bf16.gmra.mrb[0].mxu0 %v5618
      %v6091 = vpop.f32.mrb[0].mxu0
      %v6092 = vadd.f32 0.0, %v6091
      %v6093 = vpop.f32.mrb[0].mxu0
      %v6094 = vpop.f32.mrb[0].mxu0
      %v6095 = vadd.f32 0.0, %v6094
      %v6096 = vpop.f32.mrb[0].mxu0
      %6097 = vmatprep.mubr.bf16.mxu0 0
      %6098 = vmatmul.mubr.bf16.gmra.mrb[0].mxu0 %v5895
      %v6099 = vpop.f32.mrb[0].mxu0
      %v6100 = vadd.f32 0.0, %v6099
      %v6101 = vpop.f32.mrb[0].mxu0
      %v6102 = vpop.f32.mrb[0].mxu0
      %v6103 = vadd.f32 0.0, %v6102
      %v6104 = vpop.f32.mrb[0].mxu0
      %6105 = vdwg.mxu0
      %v6106 = vadd.f32 %v5844, %v5980
      %v6107 = vadd.f32 %v5845, %v5983
      %v6108 = vadd.f32 %v5846, %v5988
      %v6109 = vadd.f32 %v5847, %v5991
      %v6110 = vadd.f32 %v5848, %v5996
      %v6111 = vadd.f32 %v5849, %v5999
      %v6112 = vadd.f32 %v5850, %v6004
      %v6113 = vadd.f32 %v5851, %v6007
      %v6114 = vadd.f32 %v5852, %v6012
      %v6115 = vadd.f32 %v5853, %v6015
      %v6116 = vadd.f32 %v5854, %v6020
      %v6117 = vadd.f32 %v5855, %v6023
      %v6118 = vadd.f32 %v5856, %v6028
      %v6119 = vadd.f32 %v5857, %v6031
      %v6120 = vadd.f32 %v5858, %v6036
      %v6121 = vadd.f32 %v5859, %v6039
      %v6122 = vadd.f32 %v5860, %v6044
      %v6123 = vadd.f32 %v5861, %v6047
      %v6124 = vadd.f32 %v5862, %v6052
      %v6125 = vadd.f32 %v5863, %v6055
      %v6126 = vadd.f32 %v5864, %v6060
      %v6127 = vadd.f32 %v5865, %v6063
      %v6128 = vadd.f32 %v5866, %v6068
      %v6129 = vadd.f32 %v5867, %v6071
      %v6130 = vadd.f32 %v5868, %v6076
      %v6131 = vadd.f32 %v5869, %v6079
      %v6132 = vadd.f32 %v5870, %v6084
      %v6133 = vadd.f32 %v5871, %v6087
      %v6134 = vadd.f32 %v5872, %v6092
      %v6135 = vadd.f32 %v5873, %v6095
      %v6136 = vadd.f32 %v5874, %v6100
      %v6137 = vadd.f32 %v5875, %v6103
      %s6138 = scalar_lea.vmem %s3, 512
      %v6139 = vld [vmem:[%s6138] sm:$0xf]
      %v6140 = vld [vmem:[%s6138 + $0x4] sm:$0xf]
      %v6141 = vld [vmem:[%s6138 + $0x8] sm:$0xf]
      %v6142 = vld [vmem:[%s6138 + $0xc] sm:$0xf]
      %v6143 = vld [vmem:[%s6138 + $0x10] sm:$0xf]
      %v6144 = vld [vmem:[%s6138 + $0x14] sm:$0xf]
      %v6145 = vld [vmem:[%s6138 + $0x18] sm:$0xf]
      %v6146 = vld [vmem:[%s6138 + $0x1c] sm:$0xf]
      %v6147 = vld [vmem:[%s6138 + $0x20] sm:$0xf]
      %v6148 = vld [vmem:[%s6138 + $0x24] sm:$0xf]
      %v6149 = vld [vmem:[%s6138 + $0x28] sm:$0xf]
      %v6150 = vld [vmem:[%s6138 + $0x2c] sm:$0xf]
      %v6151 = vld [vmem:[%s6138 + $0x30] sm:$0xf]
      %v6152 = vld [vmem:[%s6138 + $0x34] sm:$0xf]
      %v6153 = vld [vmem:[%s6138 + $0x38] sm:$0xf]
      %v6154 = vld [vmem:[%s6138 + $0x3c] sm:$0xf]
      %v6155 = vunpack.c.l.b16 %v3905
      %v6156 = vunpack.c.l.b16 %v3908
      %v6157 = vpack.c.b16 %v6156, %v6155
      %v6175 = vunpack.c.l.b16 %v6139
      %v6176 = vunpack.c.l.b16 %v6140
      %v6177 = vunpack.c.l.b16 %v6141
      %v6178 = vunpack.c.l.b16 %v6142
      %v6179 = vunpack.c.l.b16 %v6143
      %v6180 = vunpack.c.l.b16 %v6144
      %v6181 = vunpack.c.l.b16 %v6145
      %v6182 = vunpack.c.l.b16 %v6146
      %v6183 = vunpack.c.l.b16 %v6147
      %v6184 = vunpack.c.l.b16 %v6148
      %v6185 = vunpack.c.l.b16 %v6149
      %v6186 = vunpack.c.l.b16 %v6150
      %v6187 = vunpack.c.l.b16 %v6151
      %v6188 = vunpack.c.l.b16 %v6152
      %v6189 = vunpack.c.l.b16 %v6153
      %v6190 = vunpack.c.l.b16 %v6154
      %v6191 = vpack.c.b16 %v6176, %v6175
      %v6192 = vpack.c.b16 %v6178, %v6177
      %v6193 = vpack.c.b16 %v6180, %v6179
      %v6194 = vpack.c.b16 %v6182, %v6181
      %v6195 = vpack.c.b16 %v6184, %v6183
      %v6196 = vpack.c.b16 %v6186, %v6185
      %v6197 = vpack.c.b16 %v6188, %v6187
      %v6198 = vpack.c.b16 %v6190, %v6189
      %6207 = vmatprep.subr.bf16.mxu0 0
      %6208 = vmatpush1.bf16.msra.mxu0 %v6191
      %6209 = vmatprep.subr.bf16.mxu0 0
      %6210 = vmatpush1.bf16.msra.mxu0 %v6192
      %6211 = vmatprep.subr.bf16.mxu0 0
      %6212 = vmatpush1.bf16.msra.mxu0 %v6193
      %6213 = vmatprep.subr.bf16.mxu0 0
      %6214 = vmatpush1.bf16.msra.mxu0 %v6194
      %6215 = vmatprep.subr.bf16.mxu0 0
      %6216 = vmatpush1.bf16.msra.mxu0 %v6195
      %6217 = vmatprep.subr.bf16.mxu0 0
      %6218 = vmatpush1.bf16.msra.mxu0 %v6196
      %6219 = vmatprep.subr.bf16.mxu0 0
      %6220 = vmatpush1.bf16.msra.mxu0 %v6197
      %6221 = vmatprep.subr.bf16.mxu0 0
      %6222 = vmatpush1.bf16.msra.mxu0 %v6198
      %6223 = vmatprep.subr.bf16.mxu0 0
      %6224 = vmatpush1.bf16.msra.mxu0 0
      %6225 = vmatprep.subr.bf16.mxu0 0
      %6226 = vmatpush1.bf16.msra.mxu0 0
      %6227 = vmatprep.subr.bf16.mxu0 0
      %6228 = vmatpush1.bf16.msra.mxu0 0
      %6229 = vmatprep.subr.bf16.mxu0 0
      %6230 = vmatpush1.bf16.msra.mxu0 0
      %6231 = vmatprep.subr.bf16.mxu0 0
      %6232 = vmatpush1.bf16.msra.mxu0 0
      %6233 = vmatprep.subr.bf16.mxu0 0
      %6234 = vmatpush1.bf16.msra.mxu0 0
      %6235 = vmatprep.subr.bf16.mxu0 0
      %6236 = vmatpush1.bf16.msra.mxu0 0
      %6237 = vmatprep.subr.bf16.mxu0 0
      %6238 = vmatpush1.bf16.msra.mxu0 0
      %6239 = vmatprep.mubr.bf16.mxu0 0
      %6240 = vmatmul.mubr.bf16.gmra.mrb[0].mxu0 %v5605
      %v6241 = vpop.f32.mrb[0].mxu0
      %v6242 = vadd.f32 0.0, %v6241
      %v6243 = vpop.f32.mrb[0].mxu0
      %v6244 = vpop.f32.mrb[0].mxu0
      %v6245 = vadd.f32 0.0, %v6244
      %v6246 = vpop.f32.mrb[0].mxu0
      %6247 = vmatprep.mubr.bf16.mxu0 0
      %6248 = vmatmul.mubr.bf16.gmra.mrb[0].mxu0 %v5606
      %v6249 = vpop.f32.mrb[0].mxu0
      %v6250 = vadd.f32 0.0, %v6249
      %v6251 = vpop.f32.mrb[0].mxu0
      %v6252 = vpop.f32.mrb[0].mxu0
      %v6253 = vadd.f32 0.0, %v6252
      %v6254 = vpop.f32.mrb[0].mxu0
      %6255 = vmatprep.mubr.bf16.mxu0 0
      %6256 = vmatmul.mubr.bf16.gmra.mrb[0].mxu0 %v5607
      %v6257 = vpop.f32.mrb[0].mxu0
      %v6258 = vadd.f32 0.0, %v6257
      %v6259 = vpop.f32.mrb[0].mxu0
      %v6260 = vpop.f32.mrb[0].mxu0
      %v6261 = vadd.f32 0.0, %v6260
      %v6262 = vpop.f32.mrb[0].mxu0
      %6263 = vmatprep.mubr.bf16.mxu0 0
      %6264 = vmatmul.mubr.bf16.gmra.mrb[0].mxu0 %v5608
      %v6265 = vpop.f32.mrb[0].mxu0
      %v6266 = vadd.f32 0.0, %v6265
      %v6267 = vpop.f32.mrb[0].mxu0
      %v6268 = vpop.f32.mrb[0].mxu0
      %v6269 = vadd.f32 0.0, %v6268
      %v6270 = vpop.f32.mrb[0].mxu0
      %6271 = vmatprep.mubr.bf16.mxu0 0
      %6272 = vmatmul.mubr.bf16.gmra.mrb[0].mxu0 %v5609
      %v6273 = vpop.f32.mrb[0].mxu0
      %v6274 = vadd.f32 0.0, %v6273
      %v6275 = vpop.f32.mrb[0].mxu0
      %v6276 = vpop.f32.mrb[0].mxu0
      %v6277 = vadd.f32 0.0, %v6276
      %v6278 = vpop.f32.mrb[0].mxu0
      %6279 = vmatprep.mubr.bf16.mxu0 0
      %6280 = vmatmul.mubr.bf16.gmra.mrb[0].mxu0 %v5610
      %v6281 = vpop.f32.mrb[0].mxu0
      %v6282 = vadd.f32 0.0, %v6281
      %v6283 = vpop.f32.mrb[0].mxu0
      %v6284 = vpop.f32.mrb[0].mxu0
      %v6285 = vadd.f32 0.0, %v6284
      %v6286 = vpop.f32.mrb[0].mxu0
      %6287 = vmatprep.mubr.bf16.mxu0 0
      %6288 = vmatmul.mubr.bf16.gmra.mrb[0].mxu0 %v5611
      %v6289 = vpop.f32.mrb[0].mxu0
      %v6290 = vadd.f32 0.0, %v6289
      %v6291 = vpop.f32.mrb[0].mxu0
      %v6292 = vpop.f32.mrb[0].mxu0
      %v6293 = vadd.f32 0.0, %v6292
      %v6294 = vpop.f32.mrb[0].mxu0
      %6295 = vmatprep.mubr.bf16.mxu0 0
      %6296 = vmatmul.mubr.bf16.gmra.mrb[0].mxu0 %v5612
      %v6297 = vpop.f32.mrb[0].mxu0
      %v6298 = vadd.f32 0.0, %v6297
      %v6299 = vpop.f32.mrb[0].mxu0
      %v6300 = vpop.f32.mrb[0].mxu0
      %v6301 = vadd.f32 0.0, %v6300
      %v6302 = vpop.f32.mrb[0].mxu0
      %6303 = vmatprep.mubr.bf16.mxu0 0
      %6304 = vmatmul.mubr.bf16.gmra.mrb[0].mxu0 %v5613
      %v6305 = vpop.f32.mrb[0].mxu0
      %v6306 = vadd.f32 0.0, %v6305
      %v6307 = vpop.f32.mrb[0].mxu0
      %v6308 = vpop.f32.mrb[0].mxu0
      %v6309 = vadd.f32 0.0, %v6308
      %v6310 = vpop.f32.mrb[0].mxu0
      %6311 = vmatprep.mubr.bf16.mxu0 0
      %6312 = vmatmul.mubr.bf16.gmra.mrb[0].mxu0 %v5614
      %v6313 = vpop.f32.mrb[0].mxu0
      %v6314 = vadd.f32 0.0, %v6313
      %v6315 = vpop.f32.mrb[0].mxu0
      %v6316 = vpop.f32.mrb[0].mxu0
      %v6317 = vadd.f32 0.0, %v6316
      %v6318 = vpop.f32.mrb[0].mxu0
      %6319 = vmatprep.mubr.bf16.mxu0 0
      %6320 = vmatmul.mubr.bf16.gmra.mrb[0].mxu0 %v5615
      %v6321 = vpop.f32.mrb[0].mxu0
      %v6322 = vadd.f32 0.0, %v6321
      %v6323 = vpop.f32.mrb[0].mxu0
      %v6324 = vpop.f32.mrb[0].mxu0
      %v6325 = vadd.f32 0.0, %v6324
      %v6326 = vpop.f32.mrb[0].mxu0
      %6327 = vmatprep.mubr.bf16.mxu0 0
      %6328 = vmatmul.mubr.bf16.gmra.mrb[0].mxu0 %v5616
      %v6329 = vpop.f32.mrb[0].mxu0
      %v6330 = vadd.f32 0.0, %v6329
      %v6331 = vpop.f32.mrb[0].mxu0
      %v6332 = vpop.f32.mrb[0].mxu0
      %v6333 = vadd.f32 0.0, %v6332
      %v6334 = vpop.f32.mrb[0].mxu0
      %6335 = vmatprep.mubr.bf16.mxu0 0
      %6336 = vmatmul.mubr.bf16.gmra.mrb[0].mxu0 %v5617
      %v6337 = vpop.f32.mrb[0].mxu0
      %v6338 = vadd.f32 0.0, %v6337
      %v6339 = vpop.f32.mrb[0].mxu0
      %v6340 = vpop.f32.mrb[0].mxu0
      %v6341 = vadd.f32 0.0, %v6340
      %v6342 = vpop.f32.mrb[0].mxu0
      %6343 = vmatprep.mubr.bf16.mxu0 0
      %6344 = vmatmul.mubr.bf16.gmra.mrb[0].mxu0 %v5618
      %v6345 = vpop.f32.mrb[0].mxu0
      %v6346 = vadd.f32 0.0, %v6345
      %v6347 = vpop.f32.mrb[0].mxu0
      %v6348 = vpop.f32.mrb[0].mxu0
      %v6349 = vadd.f32 0.0, %v6348
      %v6350 = vpop.f32.mrb[0].mxu0
      %6351 = vmatprep.mubr.bf16.mxu0 0
      %6352 = vmatmul.mubr.bf16.gmra.mrb[0].mxu0 %v5895
      %v6353 = vpop.f32.mrb[0].mxu0
      %v6354 = vadd.f32 0.0, %v6353
      %v6355 = vpop.f32.mrb[0].mxu0
      %v6356 = vpop.f32.mrb[0].mxu0
      %v6357 = vadd.f32 0.0, %v6356
      %v6358 = vpop.f32.mrb[0].mxu0
      %6359 = vmatprep.mubr.bf16.mxu0 0
      %6360 = vmatmul.mubr.bf16.gmra.mrb[0].mxu0 %v6157
      %v6361 = vpop.f32.mrb[0].mxu0
      %v6362 = vadd.f32 0.0, %v6361
      %v6363 = vpop.f32.mrb[0].mxu0
      %v6364 = vpop.f32.mrb[0].mxu0
      %v6365 = vadd.f32 0.0, %v6364
      %v6366 = vpop.f32.mrb[0].mxu0
      %6367 = vdwg.mxu0
      %v6368 = vadd.f32 %v6106, %v6242
      %v6369 = vadd.f32 %v6107, %v6245
      %v6370 = vadd.f32 %v6108, %v6250
      %v6371 = vadd.f32 %v6109, %v6253
      %v6372 = vadd.f32 %v6110, %v6258
      %v6373 = vadd.f32 %v6111, %v6261
      %v6374 = vadd.f32 %v6112, %v6266
      %v6375 = vadd.f32 %v6113, %v6269
      %v6376 = vadd.f32 %v6114, %v6274
      %v6377 = vadd.f32 %v6115, %v6277
      %v6378 = vadd.f32 %v6116, %v6282
      %v6379 = vadd.f32 %v6117, %v6285
      %v6380 = vadd.f32 %v6118, %v6290
      %v6381 = vadd.f32 %v6119, %v6293
      %v6382 = vadd.f32 %v6120, %v6298
      %v6383 = vadd.f32 %v6121, %v6301
      %v6384 = vadd.f32 %v6122, %v6306
      %v6385 = vadd.f32 %v6123, %v6309
      %v6386 = vadd.f32 %v6124, %v6314
      %v6387 = vadd.f32 %v6125, %v6317
      %v6388 = vadd.f32 %v6126, %v6322
      %v6389 = vadd.f32 %v6127, %v6325
      %v6390 = vadd.f32 %v6128, %v6330
      %v6391 = vadd.f32 %v6129, %v6333
      %v6392 = vadd.f32 %v6130, %v6338
      %v6393 = vadd.f32 %v6131, %v6341
      %v6394 = vadd.f32 %v6132, %v6346
      %v6395 = vadd.f32 %v6133, %v6349
      %v6396 = vadd.f32 %v6134, %v6354
      %v6397 = vadd.f32 %v6135, %v6357
      %v6398 = vadd.f32 %v6136, %v6362
      %v6399 = vadd.f32 %v6137, %v6365
      %v6400 = vld [vmem:[%s4] sm:$0x1]
      %v6402 = vlaneseq
      %v6403 = vshrl.u32 %v6402, 7
      %v6404 = vsub.s32 0, %v6403
      %v6405 = vrot.slane %v6400, %v6404
      %v6407 = vadd.f32 %v6368, %v6405
      %v6408 = vadd.f32 %v6369, %v6405
      %v6409 = vadd.f32 %v6370, %v6405
      %v6410 = vadd.f32 %v6371, %v6405
      %v6411 = vadd.f32 %v6372, %v6405
      %v6412 = vadd.f32 %v6373, %v6405
      %v6413 = vadd.f32 %v6374, %v6405
      %v6414 = vadd.f32 %v6375, %v6405
      %v6415 = vadd.f32 %v6376, %v6405
      %v6416 = vadd.f32 %v6377, %v6405
      %v6417 = vadd.f32 %v6378, %v6405
      %v6418 = vadd.f32 %v6379, %v6405
      %v6419 = vadd.f32 %v6380, %v6405
      %v6420 = vadd.f32 %v6381, %v6405
      %v6421 = vadd.f32 %v6382, %v6405
      %v6422 = vadd.f32 %v6383, %v6405
      %v6423 = vadd.f32 %v6384, %v6405
      %v6424 = vadd.f32 %v6385, %v6405
      %v6425 = vadd.f32 %v6386, %v6405
      %v6426 = vadd.f32 %v6387, %v6405
      %v6427 = vadd.f32 %v6388, %v6405
      %v6428 = vadd.f32 %v6389, %v6405
      %v6429 = vadd.f32 %v6390, %v6405
      %v6430 = vadd.f32 %v6391, %v6405
      %v6431 = vadd.f32 %v6392, %v6405
      %v6432 = vadd.f32 %v6393, %v6405
      %v6433 = vadd.f32 %v6394, %v6405
      %v6434 = vadd.f32 %v6395, %v6405
      %v6435 = vadd.f32 %v6396, %v6405
      %v6436 = vadd.f32 %v6397, %v6405
      %v6437 = vadd.f32 %v6398, %v6405
      %v6438 = vadd.f32 %v6399, %v6405
      %v6439 = vmax.f32 %v6407, 0.0
      %v6440 = vmax.f32 %v6408, 0.0
      %v6441 = vmax.f32 %v6409, 0.0
      %v6442 = vmax.f32 %v6410, 0.0
      %v6443 = vmax.f32 %v6411, 0.0
      %v6444 = vmax.f32 %v6412, 0.0
      %v6445 = vmax.f32 %v6413, 0.0
      %v6446 = vmax.f32 %v6414, 0.0
      %v6447 = vmax.f32 %v6415, 0.0
      %v6448 = vmax.f32 %v6416, 0.0
      %v6449 = vmax.f32 %v6417, 0.0
      %v6450 = vmax.f32 %v6418, 0.0
      %v6451 = vmax.f32 %v6419, 0.0
      %v6452 = vmax.f32 %v6420, 0.0
      %v6453 = vmax.f32 %v6421, 0.0
      %v6454 = vmax.f32 %v6422, 0.0
      %v6455 = vmax.f32 %v6423, 0.0
      %v6456 = vmax.f32 %v6424, 0.0
      %v6457 = vmax.f32 %v6425, 0.0
      %v6458 = vmax.f32 %v6426, 0.0
      %v6459 = vmax.f32 %v6427, 0.0
      %v6460 = vmax.f32 %v6428, 0.0
      %v6461 = vmax.f32 %v6429, 0.0
      %v6462 = vmax.f32 %v6430, 0.0
      %v6463 = vmax.f32 %v6431, 0.0
      %v6464 = vmax.f32 %v6432, 0.0
      %v6465 = vmax.f32 %v6433, 0.0
      %v6466 = vmax.f32 %v6434, 0.0
      %v6467 = vmax.f32 %v6435, 0.0
      %v6468 = vmax.f32 %v6436, 0.0
      %v6469 = vmax.f32 %v6437, 0.0
      %v6470 = vmax.f32 %v6438, 0.0
      %6471 = vst.msk [vmem:[%s224] sm:$0xff] %vm2206, %v6439
      %6472 = vst.msk [vmem:[%s224 + $0x8] sm:$0xff] %vm2206, %v6440
      %6473 = vst.msk [vmem:[%s224 + $0x10] sm:$0xff] %vm2206, %v6441
      %6474 = vst.msk [vmem:[%s224 + $0x18] sm:$0xff] %vm2206, %v6442
      %6475 = vst.msk [vmem:[%s224 + $0x20] sm:$0xff] %vm2206, %v6443
      %6476 = vst.msk [vmem:[%s224 + $0x28] sm:$0xff] %vm2206, %v6444
      %6477 = vst.msk [vmem:[%s224 + $0x30] sm:$0xff] %vm2206, %v6445
      %6478 = vst.msk [vmem:[%s224 + $0x38] sm:$0xff] %vm2206, %v6446
      %6479 = vst.msk [vmem:[%s224 + $0x40] sm:$0xff] %vm2206, %v6447
      %6480 = vst.msk [vmem:[%s224 + $0x48] sm:$0xff] %vm2206, %v6448
      %6481 = vst.msk [vmem:[%s224 + $0x50] sm:$0xff] %vm2206, %v6449
      %6482 = vst.msk [vmem:[%s224 + $0x58] sm:$0xff] %vm2206, %v6450
      %6483 = vst.msk [vmem:[%s224 + $0x60] sm:$0xff] %vm2206, %v6451
      %6484 = vst.msk [vmem:[%s224 + $0x68] sm:$0xff] %vm2206, %v6452
      %6485 = vst.msk [vmem:[%s224 + $0x70] sm:$0xff] %vm2206, %v6453
      %6486 = vst.msk [vmem:[%s224 + $0x78] sm:$0xff] %vm2206, %v6454
      %6487 = vst.msk [vmem:[%s224 + $0x80] sm:$0xff] %vm2206, %v6455
      %6488 = vst.msk [vmem:[%s224 + $0x88] sm:$0xff] %vm2206, %v6456
      %6489 = vst.msk [vmem:[%s224 + $0x90] sm:$0xff] %vm2206, %v6457
      %6490 = vst.msk [vmem:[%s224 + $0x98] sm:$0xff] %vm2206, %v6458
      %6491 = vst.msk [vmem:[%s224 + $0xa0] sm:$0xff] %vm2206, %v6459
      %6492 = vst.msk [vmem:[%s224 + $0xa8] sm:$0xff] %vm2206, %v6460
      %6493 = vst.msk [vmem:[%s224 + $0xb0] sm:$0xff] %vm2206, %v6461
      %6494 = vst.msk [vmem:[%s224 + $0xb8] sm:$0xff] %vm2206, %v6462
      %6495 = vst.msk [vmem:[%s224 + $0xc0] sm:$0xff] %vm2206, %v6463
      %6496 = vst.msk [vmem:[%s224 + $0xc8] sm:$0xff] %vm2206, %v6464
      %6497 = vst.msk [vmem:[%s224 + $0xd0] sm:$0xff] %vm2206, %v6465
      %6498 = vst.msk [vmem:[%s224 + $0xd8] sm:$0xff] %vm2206, %v6466
      %6499 = vst.msk [vmem:[%s224 + $0xe0] sm:$0xff] %vm2206, %v6467
      %6500 = vst.msk [vmem:[%s224 + $0xe8] sm:$0xff] %vm2206, %v6468
      %6501 = vst.msk [vmem:[%s224 + $0xf0] sm:$0xff] %vm2206, %v6469
      %6502 = vst.msk [vmem:[%s224 + $0xf8] sm:$0xff] %vm2206, %v6470
      %p6503 = scmp.lt.s32.totalorder %s16, 1
      %s6504 = scalar_select %p6503, %s16, 1
      %s6505 = smul.addr %s6504, 32
      %s6506 = smul.addr %s6505, 8
      %s6507 = scalar_lea.vmem %s5, %s6506
      // Predicated region
      $region41: #{tpu_custom_call.1} parent=39 // pred_check
        %p6508 = pneg %p144
      $region42: #{tpu_custom_call.1} parent=39 // pred_check_branch
        %6510 = sbr.rel (%p6508) target = $region44
      $region43: #{tpu_custom_call.1} parent=39 // pred_region
        _
      $region44: #{tpu_custom_call.1} parent=39 // pred_fallthru
        _
    $region40: #{tpu_custom_call.1} parent=5 // pred_fallthru
      _
    %p6511 = scmp.le.s32.totalorder 2, %s11
    // Predicated region
    $region45: #{tpu_custom_call.1} parent=5 // pred_check
      %p6512 = pneg %p6511
    $region46: #{tpu_custom_call.1} parent=5 // pred_check_branch
      %6514 = sbr.rel (%p6512) target = $region48
    $region47: #{tpu_custom_call.1} parent=5 // pred_region
      %s6515 = ssub.s32 %s11, 2
      // Predicated region
      $region49: #{tpu_custom_call.1} parent=47 // pred_check
        %p6516 = pneg %p150
      $region50: #{tpu_custom_call.1} parent=47 // pred_check_branch
        %6518 = sbr.rel (%p6516) target = $region52
      $region51: #{tpu_custom_call.1} parent=47 // pred_region
        %p6519 = scmp.lt.s32.totalorder %s17, 1
        %s6520 = scalar_select %p6519, %s17, 1
        %s6521 = smul.addr %s6520, 32
        %s6522 = smul.addr %s6521, 8
        %s6523 = scalar_lea.vmem %s5, %s6522
      $region52: #{tpu_custom_call.1} parent=47 // pred_fallthru
        _
    $region48: #{tpu_custom_call.1} parent=5 // pred_fallthru
      _
  $region6: #{tpu_custom_call.1} parent=0 // loop_footer
    %s15 = sadd.s32 1, %s11
  $region7: #{tpu_custom_call.1} parent=0 // loop_footer_branch
    %10 = sbr.rel target = $region3
  $region8: #{tpu_custom_call.1} parent=0 // loop_exit
    _

</llo_original>
